<compile_context>
chip_gen: v7x
topology: tpu7x:2x2x1
jax: 0.10.0
libtpu: 0.0.40
codegen_flags: <defaults>
</compile_context>

<pallas_src>
import jax
import jax.numpy as jnp
from jax.experimental import pallas as pl
from jax.experimental.pallas import tpu as pltpu


def _round_up(x, m):
    return ((x + m - 1) // m) * m


def _make_decoder_kernel(n_layers, compute_dtype, acc_precision):
    """Kernel refs: (x_tile, w0, b0, w1, b1, ..., out_tile).

    Weights are (in, out) in `compute_dtype`; biases are (1, out) f32 and are
    added on the f32 MXU accumulator.  ReLU is applied *before* every linear
    except the first (matching nn.Sequential([Linear, ReLU, Linear, ...])),
    and runs on compute_dtype (packed bf16 vregs on v6e/v7x).
    """

    def kernel(*refs):
        x_ref = refs[0]
        out_ref = refs[-1]
        h = x_ref[...]                       # already compute_dtype (wrapper cast)
        for i in range(n_layers):
            w = refs[1 + 2 * i][...]
            b = refs[2 + 2 * i][...]         # (1, out) f32, broadcast-added once
            if i != 0:
                h = jnp.maximum(h.astype(compute_dtype), 0)
            h = jnp.dot(h, w, preferred_element_type=jnp.float32,
                        precision=acc_precision) + b
        out_ref[...] = h.astype(out_ref.dtype)

    return kernel


def decoder_block_forward(x, weights, biases, output_shape, *,
                          use_bf16=True, out_dtype=jnp.float32, tile_m=1024):
    """x: (B, channel_dims[0]); weights[i]: (in_i, out_i); biases[i]: (out_i,)."""
    n_layers = len(weights)
    B, c_in = x.shape
    assert weights[0].shape[0] == c_in
    out_dim = weights[-1].shape[1]

    compute_dtype = jnp.bfloat16 if use_bf16 else jnp.float32
    acc_precision = None if use_bf16 else jax.lax.Precision.HIGHEST

    # ---- Lane-dense weight prep (done once in the wrapper) -----------------
    dims = [c_in] + [w.shape[1] for w in weights]
    pdims = list(dims)
    for j in range(1, n_layers):             # intermediates only; keep c_in & out_dim
        pdims[j] = _round_up(dims[j], 128)

    weights_c, biases_2d = [], []
    for i in range(n_layers):
        w = weights[i].astype(compute_dtype)
        b = biases[i].astype(jnp.float32)
        pin, pout = pdims[i], pdims[i + 1]
        if (pin, pout) != w.shape:
            w = jnp.pad(w, ((0, pin - w.shape[0]), (0, pout - w.shape[1])))
        if pout != b.shape[0]:
            b = jnp.pad(b, (0, pout - b.shape[0]))
        weights_c.append(w)
        biases_2d.append(b.reshape(1, -1))

    # Cast x once (halves x DMA bytes on the bf16 path; no in-kernel round trip).
    x_c = x.astype(compute_dtype)

    # ---- VMEM budget -> batch tile ------------------------------------------
    try:
        vmem_cap = int(pltpu.get_tpu_info().vmem_capacity_bytes)
    except Exception:
        vmem_cap = 64 * 1024 * 1024
    if vmem_cap <= 0:
        vmem_cap = 64 * 1024 * 1024

    weight_bytes = sum(int(w.size) * w.dtype.itemsize for w in weights_c)
    bias_bytes = sum(int(b.size) * 4 for b in biases_2d)
    max_dim = max(pdims)
    out_itemsize = jnp.dtype(out_dtype).itemsize
    # Per-row VMEM: double-buffered x and out tiles + f32 running activation.
    per_row = (2 * pdims[0] * x_c.dtype.itemsize
               + 2 * out_dim * out_itemsize
               + 2 * max_dim * 4)

    budget = int(0.6 * vmem_cap) - weight_bytes - bias_bytes
    tm_cap = max(8, (budget // max(per_row, 1)) // 8 * 8)

    if B <= 8:
        tm = B                                # single full block (B == block dim)
    else:
        # >= 2 grid steps whenever B > 8 so the "parallel" batch axis spans
        # both v7x TensorCores; no need to match the MXU M dimension on any gen
        # (v5e included — do NOT drop to 128-row tiles there).
        tm_half = _round_up(pl.cdiv(_round_up(B, 8), 2), 8)
        tm = max(8, min(_round_up(tile_m, 8), tm_cap, tm_half))
    grid = (pl.cdiv(B, tm),)                  # partial trailing block handled by Pallas

    # ---- Specs ---------------------------------------------------------------
    operands = [x_c]
    for w, b in zip(weights_c, biases_2d):
        operands.append(w)
        operands.append(b)

    def build_in_specs(single_buffer_weights):
        specs = [pl.BlockSpec((tm, pdims[0]), lambda i: (i, 0))]
        wb_kw = (dict(pipeline_mode=pl.Buffered(1))
                 if single_buffer_weights else {})
        for w, b in zip(weights_c, biases_2d):
            specs.append(pl.BlockSpec(w.shape, lambda i: (0, 0), **wb_kw))  # resident
            specs.append(pl.BlockSpec(b.shape, lambda i: (0, 0), **wb_kw))  # resident
        return specs

    out_specs = pl.BlockSpec((tm, out_dim), lambda i: (i, 0))

    # VMEM limit: resident weights + per-step working set with 2x margin,
    # capped at 75% of queried physical VMEM (~48 MiB v7x, ~96 MiB v5e/v6e).
    needed = weight_bytes + bias_bytes + tm * per_row
    vmem_limit = int(min(int(0.75 * vmem_cap),
                         max(32 * 1024 * 1024, 2 * needed)))
    vmem_limit = min(max(vmem_limit, int(1.25 * needed)), vmem_cap)

    flops = 2 * B * sum(din * dout for din, dout in zip(dims[:-1], dims[1:]))
    bytes_accessed = (int(x_c.size) * x_c.dtype.itemsize + weight_bytes
                      + bias_bytes + B * out_dim * out_itemsize)
    cost = pl.CostEstimate(flops=flops, transcendentals=0,
                           bytes_accessed=bytes_accessed)

    def call(single_buffer_weights):
        return pl.pallas_call(
            _make_decoder_kernel(n_layers, compute_dtype, acc_precision),
            out_shape=jax.ShapeDtypeStruct((B, out_dim), out_dtype),
            grid=grid,
            in_specs=build_in_specs(single_buffer_weights),
            out_specs=out_specs,
            compiler_params=pltpu.CompilerParams(
                dimension_semantics=("parallel",),
                vmem_limit_bytes=vmem_limit),
            cost_estimate=cost,
        )(*operands)

    try:
        out = call(True)      # weights/biases single-buffered in VMEM
    except Exception:
        out = call(False)     # fallback: default double-buffering (still resident)

    # nn.Unflatten(1, output_shape): reshape feature dim into output_shape.
    return out.reshape((B,) + tuple(output_shape))


def init_params(key, channel_dims):
    """Deterministic init mimicking nn.Linear shapes: W (out,in), b (out,).
    Returned weights are pre-transposed to (in, out) for the kernel."""
    weights, biases = [], []
    for i in range(len(channel_dims) - 1):
        fan_in, fan_out = channel_dims[i], channel_dims[i + 1]
        key, kw, kb = jax.random.split(key, 3)
        bound = 1.0 / (fan_in ** 0.5)
        w = jax.random.uniform(kw, (fan_out, fan_in), jnp.float32, -bound, bound)
        b = jax.random.uniform(kb, (fan_out,), jnp.float32, -bound, bound)
        weights.append(w.T)          # (in, out) for x @ W
        biases.append(b)
    return weights, biases


def reference_forward(x, weights, biases, output_shape):
    """Pure-JAX f32 reference replicating the PyTorch module semantics."""
    h = x
    for i, (w, b) in enumerate(zip(weights, biases)):
        if i != 0:
            h = jnp.maximum(h, 0.0)
        h = jnp.dot(h, w, precision=jax.lax.Precision.HIGHEST) + b
    return h.reshape((x.shape[0],) + tuple(output_shape))


if __name__ == "__main__":
    # Small shapes consistent with the module:
    #   channel_dims = [32, 64, 128, 256], output_shape = (4, 8, 8)  (4*8*8 = 256)
    channel_dims = [32, 64, 128, 256]
    output_shape = (4, 8, 8)
    batch = 8

    key = jax.random.PRNGKey(0)
    key, kx = jax.random.split(key)
    x = jax.random.normal(kx, (batch, channel_dims[0]), jnp.float32)
    weights, biases = init_params(key, channel_dims)
    y_ref = reference_forward(x, weights, biases, output_shape)

    # 1) f32 path (HIGHEST-precision MXU): strict check vs reference.
    y_f32 = jax.block_until_ready(
        decoder_block_forward(x, weights, biases, output_shape, use_bf16=False))
    assert y_f32.shape == (batch,) + output_shape, y_f32.shape
    assert jnp.allclose(y_f32, y_ref, atol=1e-5, rtol=1e-5), "f32 mismatch vs reference"

    # 2) bf16-input / f32-accumulate path (perf path): loose check — the input
    #    cast is an intentional precision change.
    y_bf16 = jax.block_until_ready(
        decoder_block_forward(x, weights, biases, output_shape, use_bf16=True))
    assert y_bf16.shape == (batch,) + output_shape, y_bf16.shape
    assert jnp.allclose(y_bf16, y_ref, atol=0.1, rtol=0.1), "bf16 mismatch vs reference"

    # 3) Multi-step grid (>=2 parallel steps for v7x megacore) + partial last
    #    block (no wrapper pad / slice).
    key, kx2 = jax.random.split(key)
    x_big = jax.random.normal(kx2, (260, channel_dims[0]), jnp.float32)
    y_big = jax.block_until_ready(
        decoder_block_forward(x_big, weights, biases, output_shape, use_bf16=False))
    y_big_ref = reference_forward(x_big, weights, biases, output_shape)
    assert y_big.shape == (260,) + output_shape, y_big.shape
    assert jnp.allclose(y_big, y_big_ref, atol=1e-5, rtol=1e-5), "gridded mismatch"

    # 4) bf16 output path (halves the dominant output writeback).
    y_bf16_out = jax.block_until_ready(
        decoder_block_forward(x, weights, biases, output_shape, use_bf16=True,
                              out_dtype=jnp.bfloat16))
    assert y_bf16_out.dtype == jnp.bfloat16
    assert jnp.allclose(y_bf16_out.astype(jnp.float32), y_ref,
                        atol=0.15, rtol=0.15), "bf16-out mismatch vs reference"

    print("KERNEL_OK")
</pallas_src>

<mosaic_0001>
module attributes {stable_mosaic.version = 11 : i64} {
  func.func @kernel(%arg0: i32, %arg1: memref<8x32xf32, #tpu.memory_space<vmem>>, %arg2: memref<32x128xf32, #tpu.memory_space<vmem>>, %arg3: memref<1x128xf32, #tpu.memory_space<vmem>>, %arg4: memref<128x128xf32, #tpu.memory_space<vmem>>, %arg5: memref<1x128xf32, #tpu.memory_space<vmem>>, %arg6: memref<128x256xf32, #tpu.memory_space<vmem>>, %arg7: memref<1x256xf32, #tpu.memory_space<vmem>>, %arg8: memref<8x256xf32, #tpu.memory_space<vmem>>) attributes {dimension_semantics = [#tpu.dimension_semantics<parallel>], iteration_bounds = array<i64: 1>, scalar_prefetch = 0 : i64, scratch_operands = 0 : i64, tpu.core_type = #tpu.core_type<tc>, window_params = [{transform_indices = @transform_0, window_bounds = array<i64: 8, 32>}, {pipeline_mode = #tpu.pipeline_mode<synchronous>, transform_indices = @transform_1, window_bounds = array<i64: 32, 128>}, {pipeline_mode = #tpu.pipeline_mode<synchronous>, transform_indices = @transform_2, window_bounds = array<i64: 1, 128>}, {pipeline_mode = #tpu.pipeline_mode<synchronous>, transform_indices = @transform_3, window_bounds = array<i64: 128, 128>}, {pipeline_mode = #tpu.pipeline_mode<synchronous>, transform_indices = @transform_4, window_bounds = array<i64: 1, 128>}, {pipeline_mode = #tpu.pipeline_mode<synchronous>, transform_indices = @transform_5, window_bounds = array<i64: 128, 256>}, {pipeline_mode = #tpu.pipeline_mode<synchronous>, transform_indices = @transform_6, window_bounds = array<i64: 1, 256>}, {transform_indices = @transform_7, window_bounds = array<i64: 8, 256>}]} {
    %c0 = arith.constant 0 : index
    %c0_0 = arith.constant 0 : index
    %0 = vector.load %arg1[%c0, %c0_0] : memref<8x32xf32, #tpu.memory_space<vmem>>, vector<8x32xf32>
    %c0_1 = arith.constant 0 : index
    %c0_2 = arith.constant 0 : index
    %1 = vector.load %arg2[%c0_1, %c0_2] : memref<32x128xf32, #tpu.memory_space<vmem>>, vector<32x128xf32>
    %c0_3 = arith.constant 0 : index
    %c0_4 = arith.constant 0 : index
    %2 = vector.load %arg3[%c0_3, %c0_4] : memref<1x128xf32, #tpu.memory_space<vmem>>, vector<1x128xf32>
    %cst = arith.constant dense<0.000000e+00> : vector<8x128xf32>
    %3 = tpu.matmul %0, %1, %cst {dimension_numbers = #tpu.dot_dimension_numbers<[1], [0], [0], [1], [0, 0, 1, 1], [], []>, precision = #tpu.contract_precision<fp32>} : vector<8x32xf32>, vector<32x128xf32>, vector<8x128xf32> -> vector<8x128xf32>
    %4 = vector.broadcast %2 : vector<1x128xf32> to vector<8x128xf32>
    %5 = arith.addf %3, %4 : vector<8x128xf32>
    %c0_5 = arith.constant 0 : index
    %c0_6 = arith.constant 0 : index
    %6 = vector.load %arg4[%c0_5, %c0_6] : memref<128x128xf32, #tpu.memory_space<vmem>>, vector<128x128xf32>
    %c0_7 = arith.constant 0 : index
    %c0_8 = arith.constant 0 : index
    %7 = vector.load %arg5[%c0_7, %c0_8] : memref<1x128xf32, #tpu.memory_space<vmem>>, vector<1x128xf32>
    %cst_9 = arith.constant 0.000000e+00 : f32
    %8 = vector.broadcast %cst_9 : f32 to vector<8x128xf32>
    %9 = arith.maximumf %5, %8 : vector<8x128xf32>
    %cst_10 = arith.constant dense<0.000000e+00> : vector<8x128xf32>
    %10 = tpu.matmul %9, %6, %cst_10 {dimension_numbers = #tpu.dot_dimension_numbers<[1], [0], [0], [1], [0, 0, 1, 1], [], []>, precision = #tpu.contract_precision<fp32>} : vector<8x128xf32>, vector<128x128xf32>, vector<8x128xf32> -> vector<8x128xf32>
    %11 = vector.broadcast %7 : vector<1x128xf32> to vector<8x128xf32>
    %12 = arith.addf %10, %11 : vector<8x128xf32>
    %c0_11 = arith.constant 0 : index
    %c0_12 = arith.constant 0 : index
    %13 = vector.load %arg6[%c0_11, %c0_12] : memref<128x256xf32, #tpu.memory_space<vmem>>, vector<128x256xf32>
    %c0_13 = arith.constant 0 : index
    %c0_14 = arith.constant 0 : index
    %14 = vector.load %arg7[%c0_13, %c0_14] : memref<1x256xf32, #tpu.memory_space<vmem>>, vector<1x256xf32>
    %cst_15 = arith.constant 0.000000e+00 : f32
    %15 = vector.broadcast %cst_15 : f32 to vector<8x128xf32>
    %16 = arith.maximumf %12, %15 : vector<8x128xf32>
    %cst_16 = arith.constant dense<0.000000e+00> : vector<8x256xf32>
    %17 = tpu.matmul %16, %13, %cst_16 {dimension_numbers = #tpu.dot_dimension_numbers<[1], [0], [0], [1], [0, 0, 1, 1], [], []>, precision = #tpu.contract_precision<fp32>} : vector<8x128xf32>, vector<128x256xf32>, vector<8x256xf32> -> vector<8x256xf32>
    %18 = vector.broadcast %14 : vector<1x256xf32> to vector<8x256xf32>
    %19 = arith.addf %17, %18 : vector<8x256xf32>
    %c0_17 = arith.constant 0 : index
    %c0_18 = arith.constant 0 : index
    %20 = vector.load %arg8[%c0_17, %c0_18] : memref<8x256xf32, #tpu.memory_space<vmem>>, vector<8x256xf32>
    tpu.vector_store %arg8[%c0_17, %c0_18], %19 {strides = array<i32>} : memref<8x256xf32, #tpu.memory_space<vmem>>, vector<8x256xf32>,
    return
  }
  func.func @transform_0(%arg0: i32) -> (i32, i32) {
    %c0_i32 = arith.constant 0 : i32
    %c0_i32_0 = arith.constant 0 : i32
    return %arg0, %c0_i32 : i32, i32
  }
  func.func @transform_1(%arg0: i32) -> (i32, i32) {
    %c0_i32 = arith.constant 0 : i32
    %c0_i32_0 = arith.constant 0 : i32
    %c0_i32_1 = arith.constant 0 : i32
    return %c0_i32, %c0_i32_0 : i32, i32
  }
  func.func @transform_2(%arg0: i32) -> (i32, i32) {
    %c0_i32 = arith.constant 0 : i32
    %c0_i32_0 = arith.constant 0 : i32
    %c0_i32_1 = arith.constant 0 : i32
    return %c0_i32, %c0_i32_0 : i32, i32
  }
  func.func @transform_3(%arg0: i32) -> (i32, i32) {
    %c0_i32 = arith.constant 0 : i32
    %c0_i32_0 = arith.constant 0 : i32
    %c0_i32_1 = arith.constant 0 : i32
    return %c0_i32, %c0_i32_0 : i32, i32
  }
  func.func @transform_4(%arg0: i32) -> (i32, i32) {
    %c0_i32 = arith.constant 0 : i32
    %c0_i32_0 = arith.constant 0 : i32
    %c0_i32_1 = arith.constant 0 : i32
    return %c0_i32, %c0_i32_0 : i32, i32
  }
  func.func @transform_5(%arg0: i32) -> (i32, i32) {
    %c0_i32 = arith.constant 0 : i32
    %c0_i32_0 = arith.constant 0 : i32
    %c0_i32_1 = arith.constant 0 : i32
    return %c0_i32, %c0_i32_0 : i32, i32
  }
  func.func @transform_6(%arg0: i32) -> (i32, i32) {
    %c0_i32 = arith.constant 0 : i32
    %c0_i32_0 = arith.constant 0 : i32
    %c0_i32_1 = arith.constant 0 : i32
    return %c0_i32, %c0_i32_0 : i32, i32
  }
  func.func @transform_7(%arg0: i32) -> (i32, i32) {
    %c0_i32 = arith.constant 0 : i32
    %c0_i32_0 = arith.constant 0 : i32
    return %arg0, %c0_i32 : i32, i32
  }
}

module attributes {stable_mosaic.version = 11 : i64} {
  func.func @kernel(%arg0: i32, %arg1: memref<8x32xf32, #tpu.memory_space<vmem>>, %arg2: memref<32x128xf32, #tpu.memory_space<vmem>>, %arg3: memref<1x128xf32, #tpu.memory_space<vmem>>, %arg4: memref<128x128xf32, #tpu.memory_space<vmem>>, %arg5: memref<1x128xf32, #tpu.memory_space<vmem>>, %arg6: memref<128x256xf32, #tpu.memory_space<vmem>>, %arg7: memref<1x256xf32, #tpu.memory_space<vmem>>, %arg8: memref<8x256xf32, #tpu.memory_space<vmem>>) attributes {dimension_semantics = [#tpu.dimension_semantics<parallel>], iteration_bounds = array<i64: 1>, scalar_prefetch = 0 : i64, scratch_operands = 0 : i64, tpu.core_type = #tpu.core_type<tc>, window_params = [{transform_indices = @transform_0, window_bounds = array<i64: 8, 32>}, {pipeline_mode = #tpu.pipeline_mode<synchronous>, transform_indices = @transform_1, window_bounds = array<i64: 32, 128>}, {pipeline_mode = #tpu.pipeline_mode<synchronous>, transform_indices = @transform_2, window_bounds = array<i64: 1, 128>}, {pipeline_mode = #tpu.pipeline_mode<synchronous>, transform_indices = @transform_3, window_bounds = array<i64: 128, 128>}, {pipeline_mode = #tpu.pipeline_mode<synchronous>, transform_indices = @transform_4, window_bounds = array<i64: 1, 128>}, {pipeline_mode = #tpu.pipeline_mode<synchronous>, transform_indices = @transform_5, window_bounds = array<i64: 128, 256>}, {pipeline_mode = #tpu.pipeline_mode<synchronous>, transform_indices = @transform_6, window_bounds = array<i64: 1, 256>}, {transform_indices = @transform_7, window_bounds = array<i64: 8, 256>}]} {
    %c0 = arith.constant 0 : index
    %c0_0 = arith.constant 0 : index
    %0 = vector.load %arg1[%c0, %c0_0] : memref<8x32xf32, #tpu.memory_space<vmem>>, vector<8x32xf32>
    %c0_1 = arith.constant 0 : index
    %c0_2 = arith.constant 0 : index
    %1 = vector.load %arg2[%c0_1, %c0_2] : memref<32x128xf32, #tpu.memory_space<vmem>>, vector<32x128xf32>
    %c0_3 = arith.constant 0 : index
    %c0_4 = arith.constant 0 : index
    %2 = vector.load %arg3[%c0_3, %c0_4] : memref<1x128xf32, #tpu.memory_space<vmem>>, vector<1x128xf32>
    %cst = arith.constant dense<0.000000e+00> : vector<8x128xf32>
    %3 = tpu.matmul %0, %1, %cst {dimension_numbers = #tpu.dot_dimension_numbers<[1], [0], [0], [1], [0, 0, 1, 1], [], []>, precision = #tpu.contract_precision<fp32>} : vector<8x32xf32>, vector<32x128xf32>, vector<8x128xf32> -> vector<8x128xf32>
    %4 = vector.broadcast %2 : vector<1x128xf32> to vector<8x128xf32>
    %5 = arith.addf %3, %4 : vector<8x128xf32>
    %c0_5 = arith.constant 0 : index
    %c0_6 = arith.constant 0 : index
    %6 = vector.load %arg4[%c0_5, %c0_6] : memref<128x128xf32, #tpu.memory_space<vmem>>, vector<128x128xf32>
    %c0_7 = arith.constant 0 : index
    %c0_8 = arith.constant 0 : index
    %7 = vector.load %arg5[%c0_7, %c0_8] : memref<1x128xf32, #tpu.memory_space<vmem>>, vector<1x128xf32>
    %cst_9 = arith.constant 0.000000e+00 : f32
    %8 = vector.broadcast %cst_9 : f32 to vector<8x128xf32>
    %9 = arith.maximumf %5, %8 : vector<8x128xf32>
    %cst_10 = arith.constant dense<0.000000e+00> : vector<8x128xf32>
    %10 = tpu.matmul %9, %6, %cst_10 {dimension_numbers = #tpu.dot_dimension_numbers<[1], [0], [0], [1], [0, 0, 1, 1], [], []>, precision = #tpu.contract_precision<fp32>} : vector<8x128xf32>, vector<128x128xf32>, vector<8x128xf32> -> vector<8x128xf32>
    %11 = vector.broadcast %7 : vector<1x128xf32> to vector<8x128xf32>
    %12 = arith.addf %10, %11 : vector<8x128xf32>
    %c0_11 = arith.constant 0 : index
    %c0_12 = arith.constant 0 : index
    %13 = vector.load %arg6[%c0_11, %c0_12] : memref<128x256xf32, #tpu.memory_space<vmem>>, vector<128x256xf32>
    %c0_13 = arith.constant 0 : index
    %c0_14 = arith.constant 0 : index
    %14 = vector.load %arg7[%c0_13, %c0_14] : memref<1x256xf32, #tpu.memory_space<vmem>>, vector<1x256xf32>
    %cst_15 = arith.constant 0.000000e+00 : f32
    %15 = vector.broadcast %cst_15 : f32 to vector<8x128xf32>
    %16 = arith.maximumf %12, %15 : vector<8x128xf32>
    %cst_16 = arith.constant dense<0.000000e+00> : vector<8x256xf32>
    %17 = tpu.matmul %16, %13, %cst_16 {dimension_numbers = #tpu.dot_dimension_numbers<[1], [0], [0], [1], [0, 0, 1, 1], [], []>, precision = #tpu.contract_precision<fp32>} : vector<8x128xf32>, vector<128x256xf32>, vector<8x256xf32> -> vector<8x256xf32>
    %18 = vector.broadcast %14 : vector<1x256xf32> to vector<8x256xf32>
    %19 = arith.addf %17, %18 : vector<8x256xf32>
    %c0_17 = arith.constant 0 : index
    %c0_18 = arith.constant 0 : index
    %20 = vector.load %arg8[%c0_17, %c0_18] : memref<8x256xf32, #tpu.memory_space<vmem>>, vector<8x256xf32>
    tpu.vector_store %arg8[%c0_17, %c0_18], %19 {strides = array<i32>} : memref<8x256xf32, #tpu.memory_space<vmem>>, vector<8x256xf32>,
    return
  }
  func.func @transform_0(%arg0: i32) -> (i32, i32) {
    %c0_i32 = arith.constant 0 : i32
    %c0_i32_0 = arith.constant 0 : i32
    return %arg0, %c0_i32 : i32, i32
  }
  func.func @transform_1(%arg0: i32) -> (i32, i32) {
    %c0_i32 = arith.constant 0 : i32
    %c0_i32_0 = arith.constant 0 : i32
    %c0_i32_1 = arith.constant 0 : i32
    return %c0_i32, %c0_i32_0 : i32, i32
  }
  func.func @transform_2(%arg0: i32) -> (i32, i32) {
    %c0_i32 = arith.constant 0 : i32
    %c0_i32_0 = arith.constant 0 : i32
    %c0_i32_1 = arith.constant 0 : i32
    return %c0_i32, %c0_i32_0 : i32, i32
  }
  func.func @transform_3(%arg0: i32) -> (i32, i32) {
    %c0_i32 = arith.constant 0 : i32
    %c0_i32_0 = arith.constant 0 : i32
    %c0_i32_1 = arith.constant 0 : i32
    return %c0_i32, %c0_i32_0 : i32, i32
  }
  func.func @transform_4(%arg0: i32) -> (i32, i32) {
    %c0_i32 = arith.constant 0 : i32
    %c0_i32_0 = arith.constant 0 : i32
    %c0_i32_1 = arith.constant 0 : i32
    return %c0_i32, %c0_i32_0 : i32, i32
  }
  func.func @transform_5(%arg0: i32) -> (i32, i32) {
    %c0_i32 = arith.constant 0 : i32
    %c0_i32_0 = arith.constant 0 : i32
    %c0_i32_1 = arith.constant 0 : i32
    return %c0_i32, %c0_i32_0 : i32, i32
  }
  func.func @transform_6(%arg0: i32) -> (i32, i32) {
    %c0_i32 = arith.constant 0 : i32
    %c0_i32_0 = arith.constant 0 : i32
    %c0_i32_1 = arith.constant 0 : i32
    return %c0_i32, %c0_i32_0 : i32, i32
  }
  func.func @transform_7(%arg0: i32) -> (i32, i32) {
    %c0_i32 = arith.constant 0 : i32
    %c0_i32_0 = arith.constant 0 : i32
    return %arg0, %c0_i32 : i32, i32
  }
}

</mosaic_0001>

<llo_original>
// kernel: tpu_custom_call.1
$region0: #{tpu_custom_call.1}
  #allocation0 [shape = 'u32[]', space=smem, size = 0x4, offset = 0x4, fixed_abs, tag = 'smem constant byte address 0x4 - core index']
  #allocation1 [shape = 'u32[144,128]{1,0:T(1,128)}', space=vmem, size = 0x12000, scoped, tag = 'internal scratch']
  %s0 = inlined_call_operand.hbm [shape: f32[8,32], index: 0, kind: input, shape index: {}]
  %s1 = inlined_call_operand.hbm [shape: f32[32,128], index: 1, kind: input, shape index: {}]
  %s2 = inlined_call_operand.vmem [shape: f32[1,128], index: 2, kind: input, shape index: {}]
  %s3 = inlined_call_operand.hbm [shape: f32[128,128], index: 3, kind: input, shape index: {}]
  %s4 = inlined_call_operand.vmem [shape: f32[1,128], index: 4, kind: input, shape index: {}]
  %s5 = inlined_call_operand.hbm [shape: f32[128,256], index: 5, kind: input, shape index: {}]
  %s6 = inlined_call_operand.vmem [shape: f32[1,256], index: 6, kind: input, shape index: {}]
  %s7 = inlined_call_operand.hbm [shape: f32[8,256], index: 7, kind: output, shape index: {}]
  %s8 = sld [smem:[#allocation0]]
  $region54: #{tpu_custom_call.1} parent=0
    _
  %s10 = ssub.s32 1, %s8
  %s11 = scalar_select 0, %s10, %s8
  $region1: #{tpu_custom_call.1} parent=0
    #allocation2 [shape = 'u8[4096]{0}', space=vmem, size = 0x1000, scoped, tag = 'input window, operand 0, single buffered']
    #allocation3 [shape = 's32[1]{0}', space=sflag, size = 0x4, scoped, tag = 'scoped memory for tpu_custom_call.1']
    #allocation4 [shape = 's32[1]{0}', space=sflag, size = 0x4, scoped, tag = 'scoped memory for tpu_custom_call.1']
    #allocation5 [shape = 'u8[16384]{0}', space=vmem, size = 0x4000, scoped, tag = 'input window, operand 1, single buffered']
    #allocation6 [shape = 's32[1]{0}', space=sflag, size = 0x4, scoped, tag = 'scoped memory for tpu_custom_call.1']
    #allocation7 [shape = 'u8[65536]{0}', space=vmem, size = 0x10000, scoped, tag = 'input window, operand 3, single buffered']
    #allocation8 [shape = 'u8[131072]{0}', space=vmem, size = 0x20000, scoped, tag = 'input window, operand 5, single buffered']
    #allocation9 [shape = 's32[1]{0}', space=sflag, size = 0x4, scoped, tag = 'scoped memory for tpu_custom_call.1']
    #allocation10 [shape = 'u8[8192]{0}', space=vmem, size = 0x2000, scoped, tag = 'output window, operand 0, single buffered']
    %12 = vsyncpa [#allocation3], 0
    %13 = vsyncpa [#allocation6], 0
    %14 = vsyncpa [#allocation9], 0
    %15 = vsyncpa [#allocation4], 0
    // Predicated region
    $region2: #{tpu_custom_call.1} parent=1 // pred_check
      _
    $region3: #{tpu_custom_call.1} parent=1 // pred_check_branch
      %17 = sbr.rel (0) target = $region5
    $region4: #{tpu_custom_call.1} parent=1 // pred_region
      %s19 = ssub.s32 128, 128
      %20 = vsyncadd [#allocation3], %s19
      %s22 = sshll.u32 [#allocation2], 4
      %s23 = int_to_ptr.vmem [resolvable:$true] %s22
      %25 = dma.hbm_to_vmem [thread:$0]  %s0, 128, %s23, [#allocation3]
    $region5: #{tpu_custom_call.1} parent=1 // pred_fallthru
      _
    // Predicated region
    $region6: #{tpu_custom_call.1} parent=1 // pred_check
      _
    $region7: #{tpu_custom_call.1} parent=1 // pred_check_branch
      %27 = sbr.rel (0) target = $region9
    $region8: #{tpu_custom_call.1} parent=1 // pred_region
      %s29 = ssub.s32 512, 512
      %30 = vsyncadd [#allocation6], %s29
      %s31 = sshll.u32 [#allocation5], 4
      %s32 = int_to_ptr.vmem [resolvable:$true] %s31
      %37 = dma.hbm_to_vmem [thread:$0]  %s1, 512, %s32, [#allocation6], 128, 128, 8
    $region9: #{tpu_custom_call.1} parent=1 // pred_fallthru
      _
    // Predicated region
    $region10: #{tpu_custom_call.1} parent=1 // pred_check
      _
    $region11: #{tpu_custom_call.1} parent=1 // pred_check_branch
      %39 = sbr.rel (0) target = $region13
    $region12: #{tpu_custom_call.1} parent=1 // pred_region
      _
    $region13: #{tpu_custom_call.1} parent=1 // pred_fallthru
      _
    // Predicated region
    $region14: #{tpu_custom_call.1} parent=1 // pred_check
      _
    $region15: #{tpu_custom_call.1} parent=1 // pred_check_branch
      %41 = sbr.rel (0) target = $region17
    $region16: #{tpu_custom_call.1} parent=1 // pred_region
      %s43 = ssub.s32 2048, 2048
      %44 = vsyncadd [#allocation6], %s43
      %s45 = sshll.u32 [#allocation7], 4
      %s46 = int_to_ptr.vmem [resolvable:$true] %s45
      %51 = dma.hbm_to_vmem [thread:$0]  %s3, 2048, %s46, [#allocation6], 128, 128, 8
    $region17: #{tpu_custom_call.1} parent=1 // pred_fallthru
      _
    // Predicated region
    $region18: #{tpu_custom_call.1} parent=1 // pred_check
      _
    $region19: #{tpu_custom_call.1} parent=1 // pred_check_branch
      %53 = sbr.rel (0) target = $region21
    $region20: #{tpu_custom_call.1} parent=1 // pred_region
      _
    $region21: #{tpu_custom_call.1} parent=1 // pred_fallthru
      _
    // Predicated region
    $region22: #{tpu_custom_call.1} parent=1 // pred_check
      _
    $region23: #{tpu_custom_call.1} parent=1 // pred_check_branch
      %55 = sbr.rel (0) target = $region25
    $region24: #{tpu_custom_call.1} parent=1 // pred_region
      %s57 = ssub.s32 4096, 4096
      %58 = vsyncadd [#allocation9], %s57
      %s59 = sshll.u32 [#allocation8], 4
      %s60 = int_to_ptr.vmem [resolvable:$true] %s59
      %65 = dma.hbm_to_vmem [thread:$0]  %s5, 4096, %s60, [#allocation9], 256, 256, 16
    $region25: #{tpu_custom_call.1} parent=1 // pred_fallthru
      _
    // Predicated region
    $region26: #{tpu_custom_call.1} parent=1 // pred_check
      _
    $region27: #{tpu_custom_call.1} parent=1 // pred_check_branch
      %67 = sbr.rel (0) target = $region29
    $region28: #{tpu_custom_call.1} parent=1 // pred_region
      _
    $region29: #{tpu_custom_call.1} parent=1 // pred_fallthru
      _
    // Predicated region
    $region30: #{tpu_custom_call.1} parent=1 // pred_check
      _
    $region31: #{tpu_custom_call.1} parent=1 // pred_check_branch
      %69 = sbr.rel (0) target = $region33
    $region32: #{tpu_custom_call.1} parent=1 // pred_region
      %70 = dma.done [#allocation3], 128
    $region33: #{tpu_custom_call.1} parent=1 // pred_fallthru
      _
    // Predicated region
    $region34: #{tpu_custom_call.1} parent=1 // pred_check
      _
    $region35: #{tpu_custom_call.1} parent=1 // pred_check_branch
      %72 = sbr.rel (0) target = $region37
    $region36: #{tpu_custom_call.1} parent=1 // pred_region
      %73 = dma.done [#allocation6], 512
    $region37: #{tpu_custom_call.1} parent=1 // pred_fallthru
      _
    // Predicated region
    $region38: #{tpu_custom_call.1} parent=1 // pred_check
      _
    $region39: #{tpu_custom_call.1} parent=1 // pred_check_branch
      %75 = sbr.rel (0) target = $region41
    $region40: #{tpu_custom_call.1} parent=1 // pred_region
      %76 = dma.done [#allocation6], 2048
    $region41: #{tpu_custom_call.1} parent=1 // pred_fallthru
      _
    // Predicated region
    $region42: #{tpu_custom_call.1} parent=1 // pred_check
      _
    $region43: #{tpu_custom_call.1} parent=1 // pred_check_branch
      %78 = sbr.rel (0) target = $region45
    $region44: #{tpu_custom_call.1} parent=1 // pred_region
      %79 = dma.done [#allocation9], 4096
    $region45: #{tpu_custom_call.1} parent=1 // pred_fallthru
      _
    %v80 = vld [vmem:[#allocation2] sm:$0xff]
    %v81 = vld [vmem:[#allocation5] sm:$0xff]
    %v82 = vld [vmem:[#allocation5 + $0x8] sm:$0xff]
    %v83 = vld [vmem:[#allocation5 + $0x10] sm:$0xff]
    %v84 = vld [vmem:[#allocation5 + $0x18] sm:$0xff]
    %v85 = vld [vmem:[%s2] sm:$0x1]
    %v87 = vlaneseq
    %v88 = vshrl.u32 %v87, 7
    %v89 = vsub.s32 0, %v88
    %v90 = vrot.slane %v85, %v89
    %vm92 = vcmask 261120
    %v94 = vsel %vm92, %v80, 0
    %96 = vmatprep.subr.mxu0 0.0
    %v97 = vand.u32 %v81, 4294901760
    %98 = vmatpush1.msra.mxu0 %v97
    %99 = vmatprep.subr.mxu0 0.0
    %v100 = vand.u32 %v82, 4294901760
    %101 = vmatpush1.msra.mxu0 %v100
    %102 = vmatprep.subr.mxu0 0.0
    %v103 = vand.u32 %v83, 4294901760
    %104 = vmatpush1.msra.mxu0 %v103
    %105 = vmatprep.subr.mxu0 0.0
    %v106 = vand.u32 %v84, 4294901760
    %107 = vmatpush1.msra.mxu0 %v106
    %108 = vmatprep.subr.mxu0 0.0
    %109 = vmatpush1.msra.mxu0 0.0
    %110 = vmatprep.subr.mxu0 0.0
    %111 = vmatpush1.msra.mxu0 0.0
    %112 = vmatprep.subr.mxu0 0.0
    %113 = vmatpush1.msra.mxu0 0.0
    %114 = vmatprep.subr.mxu0 0.0
    %115 = vmatpush1.msra.mxu0 0.0
    %116 = vmatprep.subr.mxu0 0.0
    %117 = vmatpush1.msra.mxu0 0.0
    %118 = vmatprep.subr.mxu0 0.0
    %119 = vmatpush1.msra.mxu0 0.0
    %120 = vmatprep.subr.mxu0 0.0
    %121 = vmatpush1.msra.mxu0 0.0
    %122 = vmatprep.subr.mxu0 0.0
    %123 = vmatpush1.msra.mxu0 0.0
    %124 = vmatprep.subr.mxu0 0.0
    %125 = vmatpush1.msra.mxu0 0.0
    %126 = vmatprep.subr.mxu0 0.0
    %127 = vmatpush1.msra.mxu0 0.0
    %128 = vmatprep.subr.mxu0 0.0
    %129 = vmatpush1.msra.mxu0 0.0
    %130 = vmatprep.subr.mxu0 0.0
    %131 = vmatpush1.msra.mxu0 0.0
    %132 = vmatprep.subr.mxu0 0.0
    %133 = vmatpush1.msra.mxu0 0.0
    %134 = vmatprep.subr.mxu0 0.0
    %135 = vmatpush1.msra.mxu0 0.0
    %136 = vmatprep.subr.mxu0 0.0
    %137 = vmatpush1.msra.mxu0 0.0
    %138 = vmatprep.subr.mxu0 0.0
    %139 = vmatpush1.msra.mxu0 0.0
    %140 = vmatprep.subr.mxu0 0.0
    %141 = vmatpush1.msra.mxu0 0.0
    %142 = vmatprep.subr.mxu0 0.0
    %143 = vmatpush1.msra.mxu0 0.0
    %144 = vmatprep.subr.mxu0 0.0
    %145 = vmatpush1.msra.mxu0 0.0
    %146 = vmatprep.subr.mxu0 0.0
    %147 = vmatpush1.msra.mxu0 0.0
    %148 = vmatprep.subr.mxu0 0.0
    %149 = vmatpush1.msra.mxu0 0.0
    %150 = vmatprep.subr.mxu0 0.0
    %151 = vmatpush1.msra.mxu0 0.0
    %152 = vmatprep.subr.mxu0 0.0
    %153 = vmatpush1.msra.mxu0 0.0
    %154 = vmatprep.subr.mxu0 0.0
    %155 = vmatpush1.msra.mxu0 0.0
    %156 = vmatprep.subr.mxu0 0.0
    %157 = vmatpush1.msra.mxu0 0.0
    %158 = vmatprep.subr.mxu0 0.0
    %159 = vmatpush1.msra.mxu0 0.0
    %160 = vmatprep.subr.mxu0 0.0
    %161 = vmatpush1.msra.mxu0 0.0
    %162 = vmatprep.subr.mxu0 0.0
    %163 = vmatpush1.msra.mxu0 0.0
    %164 = vmatprep.mubr.f32.mxu0 0.0
    %v165 = vand.u32 %v94, 4294901760
    %v166 = vsub.f32 %v94, %v165
    %v167 = vand.u32 %v166, 4294901760
    %v168 = vsub.f32 %v166, %v167
    %v169 = vand.u32 %v168, 4294901760
    %170 = vmatmul.mubr.f32.gmra.mrb[0].mxu0 %v169
    %v171 = vpop.f32.mrb[0].mxu0
    %v172 = vadd.f32 %v90, %v171
    %v173 = vpop.f32.mrb[0].mxu0
    %174 = vdwg.mxu0
    %175 = vmatprep.subr.mxu0 0.0
    %v176 = vand.u32 %v81, 4294901760
    %v177 = vsub.f32 %v81, %v176
    %v178 = vand.u32 %v177, 4294901760
    %v179 = vsub.f32 %v177, %v178
    %v180 = vand.u32 %v179, 4294901760
    %181 = vmatpush1.msra.mxu0 %v180
    %182 = vmatprep.subr.mxu0 0.0
    %v183 = vand.u32 %v82, 4294901760
    %v184 = vsub.f32 %v82, %v183
    %v185 = vand.u32 %v184, 4294901760
    %v186 = vsub.f32 %v184, %v185
    %v187 = vand.u32 %v186, 4294901760
    %188 = vmatpush1.msra.mxu0 %v187
    %189 = vmatprep.subr.mxu0 0.0
    %v190 = vand.u32 %v83, 4294901760
    %v191 = vsub.f32 %v83, %v190
    %v192 = vand.u32 %v191, 4294901760
    %v193 = vsub.f32 %v191, %v192
    %v194 = vand.u32 %v193, 4294901760
    %195 = vmatpush1.msra.mxu0 %v194
    %196 = vmatprep.subr.mxu0 0.0
    %v197 = vand.u32 %v84, 4294901760
    %v198 = vsub.f32 %v84, %v197
    %v199 = vand.u32 %v198, 4294901760
    %v200 = vsub.f32 %v198, %v199
    %v201 = vand.u32 %v200, 4294901760
    %202 = vmatpush1.msra.mxu0 %v201
    %203 = vmatprep.subr.mxu0 0.0
    %204 = vmatpush1.msra.mxu0 0.0
    %205 = vmatprep.subr.mxu0 0.0
    %206 = vmatpush1.msra.mxu0 0.0
    %207 = vmatprep.subr.mxu0 0.0
    %208 = vmatpush1.msra.mxu0 0.0
    %209 = vmatprep.subr.mxu0 0.0
    %210 = vmatpush1.msra.mxu0 0.0
    %211 = vmatprep.subr.mxu0 0.0
    %212 = vmatpush1.msra.mxu0 0.0
    %213 = vmatprep.subr.mxu0 0.0
    %214 = vmatpush1.msra.mxu0 0.0
    %215 = vmatprep.subr.mxu0 0.0
    %216 = vmatpush1.msra.mxu0 0.0
    %217 = vmatprep.subr.mxu0 0.0
    %218 = vmatpush1.msra.mxu0 0.0
    %219 = vmatprep.subr.mxu0 0.0
    %220 = vmatpush1.msra.mxu0 0.0
    %221 = vmatprep.subr.mxu0 0.0
    %222 = vmatpush1.msra.mxu0 0.0
    %223 = vmatprep.subr.mxu0 0.0
    %224 = vmatpush1.msra.mxu0 0.0
    %225 = vmatprep.subr.mxu0 0.0
    %226 = vmatpush1.msra.mxu0 0.0
    %227 = vmatprep.subr.mxu0 0.0
    %228 = vmatpush1.msra.mxu0 0.0
    %229 = vmatprep.subr.mxu0 0.0
    %230 = vmatpush1.msra.mxu0 0.0
    %231 = vmatprep.subr.mxu0 0.0
    %232 = vmatpush1.msra.mxu0 0.0
    %233 = vmatprep.subr.mxu0 0.0
    %234 = vmatpush1.msra.mxu0 0.0
    %235 = vmatprep.subr.mxu0 0.0
    %236 = vmatpush1.msra.mxu0 0.0
    %237 = vmatprep.subr.mxu0 0.0
    %238 = vmatpush1.msra.mxu0 0.0
    %239 = vmatprep.subr.mxu0 0.0
    %240 = vmatpush1.msra.mxu0 0.0
    %241 = vmatprep.subr.mxu0 0.0
    %242 = vmatpush1.msra.mxu0 0.0
    %243 = vmatprep.subr.mxu0 0.0
    %244 = vmatpush1.msra.mxu0 0.0
    %245 = vmatprep.subr.mxu0 0.0
    %246 = vmatpush1.msra.mxu0 0.0
    %247 = vmatprep.subr.mxu0 0.0
    %248 = vmatpush1.msra.mxu0 0.0
    %249 = vmatprep.subr.mxu0 0.0
    %250 = vmatpush1.msra.mxu0 0.0
    %251 = vmatprep.subr.mxu0 0.0
    %252 = vmatpush1.msra.mxu0 0.0
    %253 = vmatprep.subr.mxu0 0.0
    %254 = vmatpush1.msra.mxu0 0.0
    %255 = vmatprep.subr.mxu0 0.0
    %256 = vmatpush1.msra.mxu0 0.0
    %257 = vmatprep.subr.mxu0 0.0
    %258 = vmatpush1.msra.mxu0 0.0
    %259 = vmatprep.mubr.f32.mxu0 0.0
    %v260 = vand.u32 %v94, 4294901760
    %261 = vmatmul.mubr.f32.gmra.mrb[0].mxu0 %v260
    %v262 = vpop.f32.mrb[0].mxu0
    %v263 = vadd.f32 %v172, %v262
    %v264 = vpop.f32.mrb[0].mxu0
    %265 = vdwg.mxu0
    %266 = vmatprep.subr.mxu0 0.0
    %v267 = vand.u32 %v81, 4294901760
    %v268 = vsub.f32 %v81, %v267
    %269 = vmatpush1.msra.mxu0 %v268
    %270 = vmatprep.subr.mxu0 0.0
    %v271 = vand.u32 %v82, 4294901760
    %v272 = vsub.f32 %v82, %v271
    %273 = vmatpush1.msra.mxu0 %v272
    %274 = vmatprep.subr.mxu0 0.0
    %v275 = vand.u32 %v83, 4294901760
    %v276 = vsub.f32 %v83, %v275
    %277 = vmatpush1.msra.mxu0 %v276
    %278 = vmatprep.subr.mxu0 0.0
    %v279 = vand.u32 %v84, 4294901760
    %v280 = vsub.f32 %v84, %v279
    %281 = vmatpush1.msra.mxu0 %v280
    %282 = vmatprep.subr.mxu0 0.0
    %283 = vmatpush1.msra.mxu0 0.0
    %284 = vmatprep.subr.mxu0 0.0
    %285 = vmatpush1.msra.mxu0 0.0
    %286 = vmatprep.subr.mxu0 0.0
    %287 = vmatpush1.msra.mxu0 0.0
    %288 = vmatprep.subr.mxu0 0.0
    %289 = vmatpush1.msra.mxu0 0.0
    %290 = vmatprep.subr.mxu0 0.0
    %291 = vmatpush1.msra.mxu0 0.0
    %292 = vmatprep.subr.mxu0 0.0
    %293 = vmatpush1.msra.mxu0 0.0
    %294 = vmatprep.subr.mxu0 0.0
    %295 = vmatpush1.msra.mxu0 0.0
    %296 = vmatprep.subr.mxu0 0.0
    %297 = vmatpush1.msra.mxu0 0.0
    %298 = vmatprep.subr.mxu0 0.0
    %299 = vmatpush1.msra.mxu0 0.0
    %300 = vmatprep.subr.mxu0 0.0
    %301 = vmatpush1.msra.mxu0 0.0
    %302 = vmatprep.subr.mxu0 0.0
    %303 = vmatpush1.msra.mxu0 0.0
    %304 = vmatprep.subr.mxu0 0.0
    %305 = vmatpush1.msra.mxu0 0.0
    %306 = vmatprep.subr.mxu0 0.0
    %307 = vmatpush1.msra.mxu0 0.0
    %308 = vmatprep.subr.mxu0 0.0
    %309 = vmatpush1.msra.mxu0 0.0
    %310 = vmatprep.subr.mxu0 0.0
    %311 = vmatpush1.msra.mxu0 0.0
    %312 = vmatprep.subr.mxu0 0.0
    %313 = vmatpush1.msra.mxu0 0.0
    %314 = vmatprep.subr.mxu0 0.0
    %315 = vmatpush1.msra.mxu0 0.0
    %316 = vmatprep.subr.mxu0 0.0
    %317 = vmatpush1.msra.mxu0 0.0
    %318 = vmatprep.subr.mxu0 0.0
    %319 = vmatpush1.msra.mxu0 0.0
    %320 = vmatprep.subr.mxu0 0.0
    %321 = vmatpush1.msra.mxu0 0.0
    %322 = vmatprep.subr.mxu0 0.0
    %323 = vmatpush1.msra.mxu0 0.0
    %324 = vmatprep.subr.mxu0 0.0
    %325 = vmatpush1.msra.mxu0 0.0
    %326 = vmatprep.subr.mxu0 0.0
    %327 = vmatpush1.msra.mxu0 0.0
    %328 = vmatprep.subr.mxu0 0.0
    %329 = vmatpush1.msra.mxu0 0.0
    %330 = vmatprep.subr.mxu0 0.0
    %331 = vmatpush1.msra.mxu0 0.0
    %332 = vmatprep.subr.mxu0 0.0
    %333 = vmatpush1.msra.mxu0 0.0
    %334 = vmatprep.subr.mxu0 0.0
    %335 = vmatpush1.msra.mxu0 0.0
    %336 = vmatprep.subr.mxu0 0.0
    %337 = vmatpush1.msra.mxu0 0.0
    %338 = vmatprep.mubr.f32.mxu0 0.0
    %v339 = vand.u32 %v94, 4294901760
    %v340 = vsub.f32 %v94, %v339
    %341 = vmatmul.mubr.f32.gmra.mrb[0].mxu0 %v340
    %v342 = vpop.f32.mrb[0].mxu0
    %v343 = vadd.f32 %v263, %v342
    %v344 = vpop.f32.mrb[0].mxu0
    %345 = vdwg.mxu0
    %346 = vmatprep.subr.mxu0 0.0
    %v347 = vand.u32 %v81, 4294901760
    %348 = vmatpush1.msra.mxu0 %v347
    %349 = vmatprep.subr.mxu0 0.0
    %v350 = vand.u32 %v82, 4294901760
    %351 = vmatpush1.msra.mxu0 %v350
    %352 = vmatprep.subr.mxu0 0.0
    %v353 = vand.u32 %v83, 4294901760
    %354 = vmatpush1.msra.mxu0 %v353
    %355 = vmatprep.subr.mxu0 0.0
    %v356 = vand.u32 %v84, 4294901760
    %357 = vmatpush1.msra.mxu0 %v356
    %358 = vmatprep.subr.mxu0 0.0
    %359 = vmatpush1.msra.mxu0 0.0
    %360 = vmatprep.subr.mxu0 0.0
    %361 = vmatpush1.msra.mxu0 0.0
    %362 = vmatprep.subr.mxu0 0.0
    %363 = vmatpush1.msra.mxu0 0.0
    %364 = vmatprep.subr.mxu0 0.0
    %365 = vmatpush1.msra.mxu0 0.0
    %366 = vmatprep.subr.mxu0 0.0
    %367 = vmatpush1.msra.mxu0 0.0
    %368 = vmatprep.subr.mxu0 0.0
    %369 = vmatpush1.msra.mxu0 0.0
    %370 = vmatprep.subr.mxu0 0.0
    %371 = vmatpush1.msra.mxu0 0.0
    %372 = vmatprep.subr.mxu0 0.0
    %373 = vmatpush1.msra.mxu0 0.0
    %374 = vmatprep.subr.mxu0 0.0
    %375 = vmatpush1.msra.mxu0 0.0
    %376 = vmatprep.subr.mxu0 0.0
    %377 = vmatpush1.msra.mxu0 0.0
    %378 = vmatprep.subr.mxu0 0.0
    %379 = vmatpush1.msra.mxu0 0.0
    %380 = vmatprep.subr.mxu0 0.0
    %381 = vmatpush1.msra.mxu0 0.0
    %382 = vmatprep.subr.mxu0 0.0
    %383 = vmatpush1.msra.mxu0 0.0
    %384 = vmatprep.subr.mxu0 0.0
    %385 = vmatpush1.msra.mxu0 0.0
    %386 = vmatprep.subr.mxu0 0.0
    %387 = vmatpush1.msra.mxu0 0.0
    %388 = vmatprep.subr.mxu0 0.0
    %389 = vmatpush1.msra.mxu0 0.0
    %390 = vmatprep.subr.mxu0 0.0
    %391 = vmatpush1.msra.mxu0 0.0
    %392 = vmatprep.subr.mxu0 0.0
    %393 = vmatpush1.msra.mxu0 0.0
    %394 = vmatprep.subr.mxu0 0.0
    %395 = vmatpush1.msra.mxu0 0.0
    %396 = vmatprep.subr.mxu0 0.0
    %397 = vmatpush1.msra.mxu0 0.0
    %398 = vmatprep.subr.mxu0 0.0
    %399 = vmatpush1.msra.mxu0 0.0
    %400 = vmatprep.subr.mxu0 0.0
    %401 = vmatpush1.msra.mxu0 0.0
    %402 = vmatprep.subr.mxu0 0.0
    %403 = vmatpush1.msra.mxu0 0.0
    %404 = vmatprep.subr.mxu0 0.0
    %405 = vmatpush1.msra.mxu0 0.0
    %406 = vmatprep.subr.mxu0 0.0
    %407 = vmatpush1.msra.mxu0 0.0
    %408 = vmatprep.subr.mxu0 0.0
    %409 = vmatpush1.msra.mxu0 0.0
    %410 = vmatprep.subr.mxu0 0.0
    %411 = vmatpush1.msra.mxu0 0.0
    %412 = vmatprep.subr.mxu0 0.0
    %413 = vmatpush1.msra.mxu0 0.0
    %414 = vmatprep.mubr.f32.mxu0 0.0
    %v415 = vand.u32 %v94, 4294901760
    %v416 = vsub.f32 %v94, %v415
    %v417 = vand.u32 %v416, 4294901760
    %418 = vmatmul.mubr.f32.gmra.mrb[0].mxu0 %v417
    %v419 = vpop.f32.mrb[0].mxu0
    %v420 = vadd.f32 %v343, %v419
    %v421 = vpop.f32.mrb[0].mxu0
    %422 = vdwg.mxu0
    %423 = vmatprep.subr.mxu0 0.0
    %v424 = vand.u32 %v81, 4294901760
    %v425 = vsub.f32 %v81, %v424
    %v426 = vand.u32 %v425, 4294901760
    %427 = vmatpush1.msra.mxu0 %v426
    %428 = vmatprep.subr.mxu0 0.0
    %v429 = vand.u32 %v82, 4294901760
    %v430 = vsub.f32 %v82, %v429
    %v431 = vand.u32 %v430, 4294901760
    %432 = vmatpush1.msra.mxu0 %v431
    %433 = vmatprep.subr.mxu0 0.0
    %v434 = vand.u32 %v83, 4294901760
    %v435 = vsub.f32 %v83, %v434
    %v436 = vand.u32 %v435, 4294901760
    %437 = vmatpush1.msra.mxu0 %v436
    %438 = vmatprep.subr.mxu0 0.0
    %v439 = vand.u32 %v84, 4294901760
    %v440 = vsub.f32 %v84, %v439
    %v441 = vand.u32 %v440, 4294901760
    %442 = vmatpush1.msra.mxu0 %v441
    %443 = vmatprep.subr.mxu0 0.0
    %444 = vmatpush1.msra.mxu0 0.0
    %445 = vmatprep.subr.mxu0 0.0
    %446 = vmatpush1.msra.mxu0 0.0
    %447 = vmatprep.subr.mxu0 0.0
    %448 = vmatpush1.msra.mxu0 0.0
    %449 = vmatprep.subr.mxu0 0.0
    %450 = vmatpush1.msra.mxu0 0.0
    %451 = vmatprep.subr.mxu0 0.0
    %452 = vmatpush1.msra.mxu0 0.0
    %453 = vmatprep.subr.mxu0 0.0
    %454 = vmatpush1.msra.mxu0 0.0
    %455 = vmatprep.subr.mxu0 0.0
    %456 = vmatpush1.msra.mxu0 0.0
    %457 = vmatprep.subr.mxu0 0.0
    %458 = vmatpush1.msra.mxu0 0.0
    %459 = vmatprep.subr.mxu0 0.0
    %460 = vmatpush1.msra.mxu0 0.0
    %461 = vmatprep.subr.mxu0 0.0
    %462 = vmatpush1.msra.mxu0 0.0
    %463 = vmatprep.subr.mxu0 0.0
    %464 = vmatpush1.msra.mxu0 0.0
    %465 = vmatprep.subr.mxu0 0.0
    %466 = vmatpush1.msra.mxu0 0.0
    %467 = vmatprep.subr.mxu0 0.0
    %468 = vmatpush1.msra.mxu0 0.0
    %469 = vmatprep.subr.mxu0 0.0
    %470 = vmatpush1.msra.mxu0 0.0
    %471 = vmatprep.subr.mxu0 0.0
    %472 = vmatpush1.msra.mxu0 0.0
    %473 = vmatprep.subr.mxu0 0.0
    %474 = vmatpush1.msra.mxu0 0.0
    %475 = vmatprep.subr.mxu0 0.0
    %476 = vmatpush1.msra.mxu0 0.0
    %477 = vmatprep.subr.mxu0 0.0
    %478 = vmatpush1.msra.mxu0 0.0
    %479 = vmatprep.subr.mxu0 0.0
    %480 = vmatpush1.msra.mxu0 0.0
    %481 = vmatprep.subr.mxu0 0.0
    %482 = vmatpush1.msra.mxu0 0.0
    %483 = vmatprep.subr.mxu0 0.0
    %484 = vmatpush1.msra.mxu0 0.0
    %485 = vmatprep.subr.mxu0 0.0
    %486 = vmatpush1.msra.mxu0 0.0
    %487 = vmatprep.subr.mxu0 0.0
    %488 = vmatpush1.msra.mxu0 0.0
    %489 = vmatprep.subr.mxu0 0.0
    %490 = vmatpush1.msra.mxu0 0.0
    %491 = vmatprep.subr.mxu0 0.0
    %492 = vmatpush1.msra.mxu0 0.0
    %493 = vmatprep.subr.mxu0 0.0
    %494 = vmatpush1.msra.mxu0 0.0
    %495 = vmatprep.subr.mxu0 0.0
    %496 = vmatpush1.msra.mxu0 0.0
    %497 = vmatprep.subr.mxu0 0.0
    %498 = vmatpush1.msra.mxu0 0.0
    %499 = vmatprep.mubr.f32.mxu0 0.0
    %v500 = vand.u32 %v94, 4294901760
    %501 = vmatmul.mubr.f32.gmra.mrb[0].mxu0 %v500
    %v502 = vpop.f32.mrb[0].mxu0
    %v503 = vadd.f32 %v420, %v502
    %v504 = vpop.f32.mrb[0].mxu0
    %505 = vdwg.mxu0
    %506 = vmatprep.subr.mxu0 0.0
    %v507 = vand.u32 %v81, 4294901760
    %508 = vmatpush1.msra.mxu0 %v507
    %509 = vmatprep.subr.mxu0 0.0
    %v510 = vand.u32 %v82, 4294901760
    %511 = vmatpush1.msra.mxu0 %v510
    %512 = vmatprep.subr.mxu0 0.0
    %v513 = vand.u32 %v83, 4294901760
    %514 = vmatpush1.msra.mxu0 %v513
    %515 = vmatprep.subr.mxu0 0.0
    %v516 = vand.u32 %v84, 4294901760
    %517 = vmatpush1.msra.mxu0 %v516
    %518 = vmatprep.subr.mxu0 0.0
    %519 = vmatpush1.msra.mxu0 0.0
    %520 = vmatprep.subr.mxu0 0.0
    %521 = vmatpush1.msra.mxu0 0.0
    %522 = vmatprep.subr.mxu0 0.0
    %523 = vmatpush1.msra.mxu0 0.0
    %524 = vmatprep.subr.mxu0 0.0
    %525 = vmatpush1.msra.mxu0 0.0
    %526 = vmatprep.subr.mxu0 0.0
    %527 = vmatpush1.msra.mxu0 0.0
    %528 = vmatprep.subr.mxu0 0.0
    %529 = vmatpush1.msra.mxu0 0.0
    %530 = vmatprep.subr.mxu0 0.0
    %531 = vmatpush1.msra.mxu0 0.0
    %532 = vmatprep.subr.mxu0 0.0
    %533 = vmatpush1.msra.mxu0 0.0
    %534 = vmatprep.subr.mxu0 0.0
    %535 = vmatpush1.msra.mxu0 0.0
    %536 = vmatprep.subr.mxu0 0.0
    %537 = vmatpush1.msra.mxu0 0.0
    %538 = vmatprep.subr.mxu0 0.0
    %539 = vmatpush1.msra.mxu0 0.0
    %540 = vmatprep.subr.mxu0 0.0
    %541 = vmatpush1.msra.mxu0 0.0
    %542 = vmatprep.subr.mxu0 0.0
    %543 = vmatpush1.msra.mxu0 0.0
    %544 = vmatprep.subr.mxu0 0.0
    %545 = vmatpush1.msra.mxu0 0.0
    %546 = vmatprep.subr.mxu0 0.0
    %547 = vmatpush1.msra.mxu0 0.0
    %548 = vmatprep.subr.mxu0 0.0
    %549 = vmatpush1.msra.mxu0 0.0
    %550 = vmatprep.subr.mxu0 0.0
    %551 = vmatpush1.msra.mxu0 0.0
    %552 = vmatprep.subr.mxu0 0.0
    %553 = vmatpush1.msra.mxu0 0.0
    %554 = vmatprep.subr.mxu0 0.0
    %555 = vmatpush1.msra.mxu0 0.0
    %556 = vmatprep.subr.mxu0 0.0
    %557 = vmatpush1.msra.mxu0 0.0
    %558 = vmatprep.subr.mxu0 0.0
    %559 = vmatpush1.msra.mxu0 0.0
    %560 = vmatprep.subr.mxu0 0.0
    %561 = vmatpush1.msra.mxu0 0.0
    %562 = vmatprep.subr.mxu0 0.0
    %563 = vmatpush1.msra.mxu0 0.0
    %564 = vmatprep.subr.mxu0 0.0
    %565 = vmatpush1.msra.mxu0 0.0
    %566 = vmatprep.subr.mxu0 0.0
    %567 = vmatpush1.msra.mxu0 0.0
    %568 = vmatprep.subr.mxu0 0.0
    %569 = vmatpush1.msra.mxu0 0.0
    %570 = vmatprep.subr.mxu0 0.0
    %571 = vmatpush1.msra.mxu0 0.0
    %572 = vmatprep.subr.mxu0 0.0
    %573 = vmatpush1.msra.mxu0 0.0
    %574 = vmatprep.mubr.f32.mxu0 0.0
    %v575 = vand.u32 %v94, 4294901760
    %576 = vmatmul.mubr.f32.gmra.mrb[0].mxu0 %v575
    %v577 = vpop.f32.mrb[0].mxu0
    %v578 = vadd.f32 %v503, %v577
    %v579 = vpop.f32.mrb[0].mxu0
    %580 = vdwg.mxu0
    %v581 = vld [vmem:[#allocation7] sm:$0xff]
    %v582 = vld [vmem:[#allocation7 + $0x8] sm:$0xff]
    %v583 = vld [vmem:[#allocation7 + $0x10] sm:$0xff]
    %v584 = vld [vmem:[#allocation7 + $0x18] sm:$0xff]
    %v585 = vld [vmem:[#allocation7 + $0x20] sm:$0xff]
    %v586 = vld [vmem:[#allocation7 + $0x28] sm:$0xff]
    %v587 = vld [vmem:[#allocation7 + $0x30] sm:$0xff]
    %v588 = vld [vmem:[#allocation7 + $0x38] sm:$0xff]
    %v589 = vld [vmem:[#allocation7 + $0x40] sm:$0xff]
    %v590 = vld [vmem:[#allocation7 + $0x48] sm:$0xff]
    %v591 = vld [vmem:[#allocation7 + $0x50] sm:$0xff]
    %v592 = vld [vmem:[#allocation7 + $0x58] sm:$0xff]
    %v593 = vld [vmem:[#allocation7 + $0x60] sm:$0xff]
    %v594 = vld [vmem:[#allocation7 + $0x68] sm:$0xff]
    %v595 = vld [vmem:[#allocation7 + $0x70] sm:$0xff]
    %v596 = vld [vmem:[#allocation7 + $0x78] sm:$0xff]
    %v597 = vld [vmem:[%s4] sm:$0x1]
    %v598 = vmax.f32 %v578, 0.0
    %v600 = vlaneseq
    %v601 = vshrl.u32 %v600, 7
    %v602 = vsub.s32 0, %v601
    %v603 = vrot.slane %v597, %v602
    %605 = vmatprep.subr.mxu0 0.0
    %v606 = vand.u32 %v581, 4294901760
    %607 = vmatpush1.msra.mxu0 %v606
    %608 = vmatprep.subr.mxu0 0.0
    %v609 = vand.u32 %v582, 4294901760
    %610 = vmatpush1.msra.mxu0 %v609
    %611 = vmatprep.subr.mxu0 0.0
    %v612 = vand.u32 %v583, 4294901760
    %613 = vmatpush1.msra.mxu0 %v612
    %614 = vmatprep.subr.mxu0 0.0
    %v615 = vand.u32 %v584, 4294901760
    %616 = vmatpush1.msra.mxu0 %v615
    %617 = vmatprep.subr.mxu0 0.0
    %v618 = vand.u32 %v585, 4294901760
    %619 = vmatpush1.msra.mxu0 %v618
    %620 = vmatprep.subr.mxu0 0.0
    %v621 = vand.u32 %v586, 4294901760
    %622 = vmatpush1.msra.mxu0 %v621
    %623 = vmatprep.subr.mxu0 0.0
    %v624 = vand.u32 %v587, 4294901760
    %625 = vmatpush1.msra.mxu0 %v624
    %626 = vmatprep.subr.mxu0 0.0
    %v627 = vand.u32 %v588, 4294901760
    %628 = vmatpush1.msra.mxu0 %v627
    %629 = vmatprep.subr.mxu0 0.0
    %v630 = vand.u32 %v589, 4294901760
    %631 = vmatpush1.msra.mxu0 %v630
    %632 = vmatprep.subr.mxu0 0.0
    %v633 = vand.u32 %v590, 4294901760
    %634 = vmatpush1.msra.mxu0 %v633
    %635 = vmatprep.subr.mxu0 0.0
    %v636 = vand.u32 %v591, 4294901760
    %637 = vmatpush1.msra.mxu0 %v636
    %638 = vmatprep.subr.mxu0 0.0
    %v639 = vand.u32 %v592, 4294901760
    %640 = vmatpush1.msra.mxu0 %v639
    %641 = vmatprep.subr.mxu0 0.0
    %v642 = vand.u32 %v593, 4294901760
    %643 = vmatpush1.msra.mxu0 %v642
    %644 = vmatprep.subr.mxu0 0.0
    %v645 = vand.u32 %v594, 4294901760
    %646 = vmatpush1.msra.mxu0 %v645
    %647 = vmatprep.subr.mxu0 0.0
    %v648 = vand.u32 %v595, 4294901760
    %649 = vmatpush1.msra.mxu0 %v648
    %650 = vmatprep.subr.mxu0 0.0
    %v651 = vand.u32 %v596, 4294901760
    %652 = vmatpush1.msra.mxu0 %v651
    %653 = vmatprep.subr.mxu0 0.0
    %654 = vmatpush1.msra.mxu0 0.0
    %655 = vmatprep.subr.mxu0 0.0
    %656 = vmatpush1.msra.mxu0 0.0
    %657 = vmatprep.subr.mxu0 0.0
    %658 = vmatpush1.msra.mxu0 0.0
    %659 = vmatprep.subr.mxu0 0.0
    %660 = vmatpush1.msra.mxu0 0.0
    %661 = vmatprep.subr.mxu0 0.0
    %662 = vmatpush1.msra.mxu0 0.0
    %663 = vmatprep.subr.mxu0 0.0
    %664 = vmatpush1.msra.mxu0 0.0
    %665 = vmatprep.subr.mxu0 0.0
    %666 = vmatpush1.msra.mxu0 0.0
    %667 = vmatprep.subr.mxu0 0.0
    %668 = vmatpush1.msra.mxu0 0.0
    %669 = vmatprep.subr.mxu0 0.0
    %670 = vmatpush1.msra.mxu0 0.0
    %671 = vmatprep.subr.mxu0 0.0
    %672 = vmatpush1.msra.mxu0 0.0
    %673 = vmatprep.subr.mxu0 0.0
    %674 = vmatpush1.msra.mxu0 0.0
    %675 = vmatprep.subr.mxu0 0.0
    %676 = vmatpush1.msra.mxu0 0.0
    %677 = vmatprep.subr.mxu0 0.0
    %678 = vmatpush1.msra.mxu0 0.0
    %679 = vmatprep.subr.mxu0 0.0
    %680 = vmatpush1.msra.mxu0 0.0
    %681 = vmatprep.subr.mxu0 0.0
    %682 = vmatpush1.msra.mxu0 0.0
    %683 = vmatprep.subr.mxu0 0.0
    %684 = vmatpush1.msra.mxu0 0.0
    %685 = vmatprep.mubr.f32.mxu0 0.0
    %v686 = vand.u32 %v598, 4294901760
    %v687 = vsub.f32 %v598, %v686
    %v688 = vand.u32 %v687, 4294901760
    %v689 = vsub.f32 %v687, %v688
    %v690 = vand.u32 %v689, 4294901760
    %691 = vmatmul.mubr.f32.gmra.mrb[0].mxu0 %v690
    %v692 = vpop.f32.mrb[0].mxu0
    %v693 = vadd.f32 %v603, %v692
    %v694 = vpop.f32.mrb[0].mxu0
    %695 = vdwg.mxu0
    %696 = vmatprep.subr.mxu0 0.0
    %v697 = vand.u32 %v581, 4294901760
    %v698 = vsub.f32 %v581, %v697
    %v699 = vand.u32 %v698, 4294901760
    %v700 = vsub.f32 %v698, %v699
    %v701 = vand.u32 %v700, 4294901760
    %702 = vmatpush1.msra.mxu0 %v701
    %703 = vmatprep.subr.mxu0 0.0
    %v704 = vand.u32 %v582, 4294901760
    %v705 = vsub.f32 %v582, %v704
    %v706 = vand.u32 %v705, 4294901760
    %v707 = vsub.f32 %v705, %v706
    %v708 = vand.u32 %v707, 4294901760
    %709 = vmatpush1.msra.mxu0 %v708
    %710 = vmatprep.subr.mxu0 0.0
    %v711 = vand.u32 %v583, 4294901760
    %v712 = vsub.f32 %v583, %v711
    %v713 = vand.u32 %v712, 4294901760
    %v714 = vsub.f32 %v712, %v713
    %v715 = vand.u32 %v714, 4294901760
    %716 = vmatpush1.msra.mxu0 %v715
    %717 = vmatprep.subr.mxu0 0.0
    %v718 = vand.u32 %v584, 4294901760
    %v719 = vsub.f32 %v584, %v718
    %v720 = vand.u32 %v719, 4294901760
    %v721 = vsub.f32 %v719, %v720
    %v722 = vand.u32 %v721, 4294901760
    %723 = vmatpush1.msra.mxu0 %v722
    %724 = vmatprep.subr.mxu0 0.0
    %v725 = vand.u32 %v585, 4294901760
    %v726 = vsub.f32 %v585, %v725
    %v727 = vand.u32 %v726, 4294901760
    %v728 = vsub.f32 %v726, %v727
    %v729 = vand.u32 %v728, 4294901760
    %730 = vmatpush1.msra.mxu0 %v729
    %731 = vmatprep.subr.mxu0 0.0
    %v732 = vand.u32 %v586, 4294901760
    %v733 = vsub.f32 %v586, %v732
    %v734 = vand.u32 %v733, 4294901760
    %v735 = vsub.f32 %v733, %v734
    %v736 = vand.u32 %v735, 4294901760
    %737 = vmatpush1.msra.mxu0 %v736
    %738 = vmatprep.subr.mxu0 0.0
    %v739 = vand.u32 %v587, 4294901760
    %v740 = vsub.f32 %v587, %v739
    %v741 = vand.u32 %v740, 4294901760
    %v742 = vsub.f32 %v740, %v741
    %v743 = vand.u32 %v742, 4294901760
    %744 = vmatpush1.msra.mxu0 %v743
    %745 = vmatprep.subr.mxu0 0.0
    %v746 = vand.u32 %v588, 4294901760
    %v747 = vsub.f32 %v588, %v746
    %v748 = vand.u32 %v747, 4294901760
    %v749 = vsub.f32 %v747, %v748
    %v750 = vand.u32 %v749, 4294901760
    %751 = vmatpush1.msra.mxu0 %v750
    %752 = vmatprep.subr.mxu0 0.0
    %v753 = vand.u32 %v589, 4294901760
    %v754 = vsub.f32 %v589, %v753
    %v755 = vand.u32 %v754, 4294901760
    %v756 = vsub.f32 %v754, %v755
    %v757 = vand.u32 %v756, 4294901760
    %758 = vmatpush1.msra.mxu0 %v757
    %759 = vmatprep.subr.mxu0 0.0
    %v760 = vand.u32 %v590, 4294901760
    %v761 = vsub.f32 %v590, %v760
    %v762 = vand.u32 %v761, 4294901760
    %v763 = vsub.f32 %v761, %v762
    %v764 = vand.u32 %v763, 4294901760
    %765 = vmatpush1.msra.mxu0 %v764
    %766 = vmatprep.subr.mxu0 0.0
    %v767 = vand.u32 %v591, 4294901760
    %v768 = vsub.f32 %v591, %v767
    %v769 = vand.u32 %v768, 4294901760
    %v770 = vsub.f32 %v768, %v769
    %v771 = vand.u32 %v770, 4294901760
    %772 = vmatpush1.msra.mxu0 %v771
    %773 = vmatprep.subr.mxu0 0.0
    %v774 = vand.u32 %v592, 4294901760
    %v775 = vsub.f32 %v592, %v774
    %v776 = vand.u32 %v775, 4294901760
    %v777 = vsub.f32 %v775, %v776
    %v778 = vand.u32 %v777, 4294901760
    %779 = vmatpush1.msra.mxu0 %v778
    %780 = vmatprep.subr.mxu0 0.0
    %v781 = vand.u32 %v593, 4294901760
    %v782 = vsub.f32 %v593, %v781
    %v783 = vand.u32 %v782, 4294901760
    %v784 = vsub.f32 %v782, %v783
    %v785 = vand.u32 %v784, 4294901760
    %786 = vmatpush1.msra.mxu0 %v785
    %787 = vmatprep.subr.mxu0 0.0
    %v788 = vand.u32 %v594, 4294901760
    %v789 = vsub.f32 %v594, %v788
    %v790 = vand.u32 %v789, 4294901760
    %v791 = vsub.f32 %v789, %v790
    %v792 = vand.u32 %v791, 4294901760
    %793 = vmatpush1.msra.mxu0 %v792
    %794 = vmatprep.subr.mxu0 0.0
    %v795 = vand.u32 %v595, 4294901760
    %v796 = vsub.f32 %v595, %v795
    %v797 = vand.u32 %v796, 4294901760
    %v798 = vsub.f32 %v796, %v797
    %v799 = vand.u32 %v798, 4294901760
    %800 = vmatpush1.msra.mxu0 %v799
    %801 = vmatprep.subr.mxu0 0.0
    %v802 = vand.u32 %v596, 4294901760
    %v803 = vsub.f32 %v596, %v802
    %v804 = vand.u32 %v803, 4294901760
    %v805 = vsub.f32 %v803, %v804
    %v806 = vand.u32 %v805, 4294901760
    %807 = vmatpush1.msra.mxu0 %v806
    %808 = vmatprep.subr.mxu0 0.0
    %809 = vmatpush1.msra.mxu0 0.0
    %810 = vmatprep.subr.mxu0 0.0
    %811 = vmatpush1.msra.mxu0 0.0
    %812 = vmatprep.subr.mxu0 0.0
    %813 = vmatpush1.msra.mxu0 0.0
    %814 = vmatprep.subr.mxu0 0.0
    %815 = vmatpush1.msra.mxu0 0.0
    %816 = vmatprep.subr.mxu0 0.0
    %817 = vmatpush1.msra.mxu0 0.0
    %818 = vmatprep.subr.mxu0 0.0
    %819 = vmatpush1.msra.mxu0 0.0
    %820 = vmatprep.subr.mxu0 0.0
    %821 = vmatpush1.msra.mxu0 0.0
    %822 = vmatprep.subr.mxu0 0.0
    %823 = vmatpush1.msra.mxu0 0.0
    %824 = vmatprep.subr.mxu0 0.0
    %825 = vmatpush1.msra.mxu0 0.0
    %826 = vmatprep.subr.mxu0 0.0
    %827 = vmatpush1.msra.mxu0 0.0
    %828 = vmatprep.subr.mxu0 0.0
    %829 = vmatpush1.msra.mxu0 0.0
    %830 = vmatprep.subr.mxu0 0.0
    %831 = vmatpush1.msra.mxu0 0.0
    %832 = vmatprep.subr.mxu0 0.0
    %833 = vmatpush1.msra.mxu0 0.0
    %834 = vmatprep.subr.mxu0 0.0
    %835 = vmatpush1.msra.mxu0 0.0
    %836 = vmatprep.subr.mxu0 0.0
    %837 = vmatpush1.msra.mxu0 0.0
    %838 = vmatprep.subr.mxu0 0.0
    %839 = vmatpush1.msra.mxu0 0.0
    %840 = vmatprep.mubr.f32.mxu0 0.0
    %v841 = vand.u32 %v598, 4294901760
    %842 = vmatmul.mubr.f32.gmra.mrb[0].mxu0 %v841
    %v843 = vpop.f32.mrb[0].mxu0
    %v844 = vadd.f32 %v693, %v843
    %v845 = vpop.f32.mrb[0].mxu0
    %846 = vdwg.mxu0
    %847 = vmatprep.subr.mxu0 0.0
    %v848 = vand.u32 %v581, 4294901760
    %v849 = vsub.f32 %v581, %v848
    %850 = vmatpush1.msra.mxu0 %v849
    %851 = vmatprep.subr.mxu0 0.0
    %v852 = vand.u32 %v582, 4294901760
    %v853 = vsub.f32 %v582, %v852
    %854 = vmatpush1.msra.mxu0 %v853
    %855 = vmatprep.subr.mxu0 0.0
    %v856 = vand.u32 %v583, 4294901760
    %v857 = vsub.f32 %v583, %v856
    %858 = vmatpush1.msra.mxu0 %v857
    %859 = vmatprep.subr.mxu0 0.0
    %v860 = vand.u32 %v584, 4294901760
    %v861 = vsub.f32 %v584, %v860
    %862 = vmatpush1.msra.mxu0 %v861
    %863 = vmatprep.subr.mxu0 0.0
    %v864 = vand.u32 %v585, 4294901760
    %v865 = vsub.f32 %v585, %v864
    %866 = vmatpush1.msra.mxu0 %v865
    %867 = vmatprep.subr.mxu0 0.0
    %v868 = vand.u32 %v586, 4294901760
    %v869 = vsub.f32 %v586, %v868
    %870 = vmatpush1.msra.mxu0 %v869
    %871 = vmatprep.subr.mxu0 0.0
    %v872 = vand.u32 %v587, 4294901760
    %v873 = vsub.f32 %v587, %v872
    %874 = vmatpush1.msra.mxu0 %v873
    %875 = vmatprep.subr.mxu0 0.0
    %v876 = vand.u32 %v588, 4294901760
    %v877 = vsub.f32 %v588, %v876
    %878 = vmatpush1.msra.mxu0 %v877
    %879 = vmatprep.subr.mxu0 0.0
    %v880 = vand.u32 %v589, 4294901760
    %v881 = vsub.f32 %v589, %v880
    %882 = vmatpush1.msra.mxu0 %v881
    %883 = vmatprep.subr.mxu0 0.0
    %v884 = vand.u32 %v590, 4294901760
    %v885 = vsub.f32 %v590, %v884
    %886 = vmatpush1.msra.mxu0 %v885
    %887 = vmatprep.subr.mxu0 0.0
    %v888 = vand.u32 %v591, 4294901760
    %v889 = vsub.f32 %v591, %v888
    %890 = vmatpush1.msra.mxu0 %v889
    %891 = vmatprep.subr.mxu0 0.0
    %v892 = vand.u32 %v592, 4294901760
    %v893 = vsub.f32 %v592, %v892
    %894 = vmatpush1.msra.mxu0 %v893
    %895 = vmatprep.subr.mxu0 0.0
    %v896 = vand.u32 %v593, 4294901760
    %v897 = vsub.f32 %v593, %v896
    %898 = vmatpush1.msra.mxu0 %v897
    %899 = vmatprep.subr.mxu0 0.0
    %v900 = vand.u32 %v594, 4294901760
    %v901 = vsub.f32 %v594, %v900
    %902 = vmatpush1.msra.mxu0 %v901
    %903 = vmatprep.subr.mxu0 0.0
    %v904 = vand.u32 %v595, 4294901760
    %v905 = vsub.f32 %v595, %v904
    %906 = vmatpush1.msra.mxu0 %v905
    %907 = vmatprep.subr.mxu0 0.0
    %v908 = vand.u32 %v596, 4294901760
    %v909 = vsub.f32 %v596, %v908
    %910 = vmatpush1.msra.mxu0 %v909
    %911 = vmatprep.subr.mxu0 0.0
    %912 = vmatpush1.msra.mxu0 0.0
    %913 = vmatprep.subr.mxu0 0.0
    %914 = vmatpush1.msra.mxu0 0.0
    %915 = vmatprep.subr.mxu0 0.0
    %916 = vmatpush1.msra.mxu0 0.0
    %917 = vmatprep.subr.mxu0 0.0
    %918 = vmatpush1.msra.mxu0 0.0
    %919 = vmatprep.subr.mxu0 0.0
    %920 = vmatpush1.msra.mxu0 0.0
    %921 = vmatprep.subr.mxu0 0.0
    %922 = vmatpush1.msra.mxu0 0.0
    %923 = vmatprep.subr.mxu0 0.0
    %924 = vmatpush1.msra.mxu0 0.0
    %925 = vmatprep.subr.mxu0 0.0
    %926 = vmatpush1.msra.mxu0 0.0
    %927 = vmatprep.subr.mxu0 0.0
    %928 = vmatpush1.msra.mxu0 0.0
    %929 = vmatprep.subr.mxu0 0.0
    %930 = vmatpush1.msra.mxu0 0.0
    %931 = vmatprep.subr.mxu0 0.0
    %932 = vmatpush1.msra.mxu0 0.0
    %933 = vmatprep.subr.mxu0 0.0
    %934 = vmatpush1.msra.mxu0 0.0
    %935 = vmatprep.subr.mxu0 0.0
    %936 = vmatpush1.msra.mxu0 0.0
    %937 = vmatprep.subr.mxu0 0.0
    %938 = vmatpush1.msra.mxu0 0.0
    %939 = vmatprep.subr.mxu0 0.0
    %940 = vmatpush1.msra.mxu0 0.0
    %941 = vmatprep.subr.mxu0 0.0
    %942 = vmatpush1.msra.mxu0 0.0
    %943 = vmatprep.mubr.f32.mxu0 0.0
    %v944 = vand.u32 %v598, 4294901760
    %v945 = vsub.f32 %v598, %v944
    %946 = vmatmul.mubr.f32.gmra.mrb[0].mxu0 %v945
    %v947 = vpop.f32.mrb[0].mxu0
    %v948 = vadd.f32 %v844, %v947
    %v949 = vpop.f32.mrb[0].mxu0
    %950 = vdwg.mxu0
    %951 = vmatprep.subr.mxu0 0.0
    %v952 = vand.u32 %v581, 4294901760
    %953 = vmatpush1.msra.mxu0 %v952
    %954 = vmatprep.subr.mxu0 0.0
    %v955 = vand.u32 %v582, 4294901760
    %956 = vmatpush1.msra.mxu0 %v955
    %957 = vmatprep.subr.mxu0 0.0
    %v958 = vand.u32 %v583, 4294901760
    %959 = vmatpush1.msra.mxu0 %v958
    %960 = vmatprep.subr.mxu0 0.0
    %v961 = vand.u32 %v584, 4294901760
    %962 = vmatpush1.msra.mxu0 %v961
    %963 = vmatprep.subr.mxu0 0.0
    %v964 = vand.u32 %v585, 4294901760
    %965 = vmatpush1.msra.mxu0 %v964
    %966 = vmatprep.subr.mxu0 0.0
    %v967 = vand.u32 %v586, 4294901760
    %968 = vmatpush1.msra.mxu0 %v967
    %969 = vmatprep.subr.mxu0 0.0
    %v970 = vand.u32 %v587, 4294901760
    %971 = vmatpush1.msra.mxu0 %v970
    %972 = vmatprep.subr.mxu0 0.0
    %v973 = vand.u32 %v588, 4294901760
    %974 = vmatpush1.msra.mxu0 %v973
    %975 = vmatprep.subr.mxu0 0.0
    %v976 = vand.u32 %v589, 4294901760
    %977 = vmatpush1.msra.mxu0 %v976
    %978 = vmatprep.subr.mxu0 0.0
    %v979 = vand.u32 %v590, 4294901760
    %980 = vmatpush1.msra.mxu0 %v979
    %981 = vmatprep.subr.mxu0 0.0
    %v982 = vand.u32 %v591, 4294901760
    %983 = vmatpush1.msra.mxu0 %v982
    %984 = vmatprep.subr.mxu0 0.0
    %v985 = vand.u32 %v592, 4294901760
    %986 = vmatpush1.msra.mxu0 %v985
    %987 = vmatprep.subr.mxu0 0.0
    %v988 = vand.u32 %v593, 4294901760
    %989 = vmatpush1.msra.mxu0 %v988
    %990 = vmatprep.subr.mxu0 0.0
    %v991 = vand.u32 %v594, 4294901760
    %992 = vmatpush1.msra.mxu0 %v991
    %993 = vmatprep.subr.mxu0 0.0
    %v994 = vand.u32 %v595, 4294901760
    %995 = vmatpush1.msra.mxu0 %v994
    %996 = vmatprep.subr.mxu0 0.0
    %v997 = vand.u32 %v596, 4294901760
    %998 = vmatpush1.msra.mxu0 %v997
    %999 = vmatprep.subr.mxu0 0.0
    %1000 = vmatpush1.msra.mxu0 0.0
    %1001 = vmatprep.subr.mxu0 0.0
    %1002 = vmatpush1.msra.mxu0 0.0
    %1003 = vmatprep.subr.mxu0 0.0
    %1004 = vmatpush1.msra.mxu0 0.0
    %1005 = vmatprep.subr.mxu0 0.0
    %1006 = vmatpush1.msra.mxu0 0.0
    %1007 = vmatprep.subr.mxu0 0.0
    %1008 = vmatpush1.msra.mxu0 0.0
    %1009 = vmatprep.subr.mxu0 0.0
    %1010 = vmatpush1.msra.mxu0 0.0
    %1011 = vmatprep.subr.mxu0 0.0
    %1012 = vmatpush1.msra.mxu0 0.0
    %1013 = vmatprep.subr.mxu0 0.0
    %1014 = vmatpush1.msra.mxu0 0.0
    %1015 = vmatprep.subr.mxu0 0.0
    %1016 = vmatpush1.msra.mxu0 0.0
    %1017 = vmatprep.subr.mxu0 0.0
    %1018 = vmatpush1.msra.mxu0 0.0
    %1019 = vmatprep.subr.mxu0 0.0
    %1020 = vmatpush1.msra.mxu0 0.0
    %1021 = vmatprep.subr.mxu0 0.0
    %1022 = vmatpush1.msra.mxu0 0.0
    %1023 = vmatprep.subr.mxu0 0.0
    %1024 = vmatpush1.msra.mxu0 0.0
    %1025 = vmatprep.subr.mxu0 0.0
    %1026 = vmatpush1.msra.mxu0 0.0
    %1027 = vmatprep.subr.mxu0 0.0
    %1028 = vmatpush1.msra.mxu0 0.0
    %1029 = vmatprep.subr.mxu0 0.0
    %1030 = vmatpush1.msra.mxu0 0.0
    %1031 = vmatprep.mubr.f32.mxu0 0.0
    %v1032 = vand.u32 %v598, 4294901760
    %v1033 = vsub.f32 %v598, %v1032
    %v1034 = vand.u32 %v1033, 4294901760
    %1035 = vmatmul.mubr.f32.gmra.mrb[0].mxu0 %v1034
    %v1036 = vpop.f32.mrb[0].mxu0
    %v1037 = vadd.f32 %v948, %v1036
    %v1038 = vpop.f32.mrb[0].mxu0
    %1039 = vdwg.mxu0
    %1040 = vmatprep.subr.mxu0 0.0
    %v1041 = vand.u32 %v581, 4294901760
    %v1042 = vsub.f32 %v581, %v1041
    %v1043 = vand.u32 %v1042, 4294901760
    %1044 = vmatpush1.msra.mxu0 %v1043
    %1045 = vmatprep.subr.mxu0 0.0
    %v1046 = vand.u32 %v582, 4294901760
    %v1047 = vsub.f32 %v582, %v1046
    %v1048 = vand.u32 %v1047, 4294901760
    %1049 = vmatpush1.msra.mxu0 %v1048
    %1050 = vmatprep.subr.mxu0 0.0
    %v1051 = vand.u32 %v583, 4294901760
    %v1052 = vsub.f32 %v583, %v1051
    %v1053 = vand.u32 %v1052, 4294901760
    %1054 = vmatpush1.msra.mxu0 %v1053
    %1055 = vmatprep.subr.mxu0 0.0
    %v1056 = vand.u32 %v584, 4294901760
    %v1057 = vsub.f32 %v584, %v1056
    %v1058 = vand.u32 %v1057, 4294901760
    %1059 = vmatpush1.msra.mxu0 %v1058
    %1060 = vmatprep.subr.mxu0 0.0
    %v1061 = vand.u32 %v585, 4294901760
    %v1062 = vsub.f32 %v585, %v1061
    %v1063 = vand.u32 %v1062, 4294901760
    %1064 = vmatpush1.msra.mxu0 %v1063
    %1065 = vmatprep.subr.mxu0 0.0
    %v1066 = vand.u32 %v586, 4294901760
    %v1067 = vsub.f32 %v586, %v1066
    %v1068 = vand.u32 %v1067, 4294901760
    %1069 = vmatpush1.msra.mxu0 %v1068
    %1070 = vmatprep.subr.mxu0 0.0
    %v1071 = vand.u32 %v587, 4294901760
    %v1072 = vsub.f32 %v587, %v1071
    %v1073 = vand.u32 %v1072, 4294901760
    %1074 = vmatpush1.msra.mxu0 %v1073
    %1075 = vmatprep.subr.mxu0 0.0
    %v1076 = vand.u32 %v588, 4294901760
    %v1077 = vsub.f32 %v588, %v1076
    %v1078 = vand.u32 %v1077, 4294901760
    %1079 = vmatpush1.msra.mxu0 %v1078
    %1080 = vmatprep.subr.mxu0 0.0
    %v1081 = vand.u32 %v589, 4294901760
    %v1082 = vsub.f32 %v589, %v1081
    %v1083 = vand.u32 %v1082, 4294901760
    %1084 = vmatpush1.msra.mxu0 %v1083
    %1085 = vmatprep.subr.mxu0 0.0
    %v1086 = vand.u32 %v590, 4294901760
    %v1087 = vsub.f32 %v590, %v1086
    %v1088 = vand.u32 %v1087, 4294901760
    %1089 = vmatpush1.msra.mxu0 %v1088
    %1090 = vmatprep.subr.mxu0 0.0
    %v1091 = vand.u32 %v591, 4294901760
    %v1092 = vsub.f32 %v591, %v1091
    %v1093 = vand.u32 %v1092, 4294901760
    %1094 = vmatpush1.msra.mxu0 %v1093
    %1095 = vmatprep.subr.mxu0 0.0
    %v1096 = vand.u32 %v592, 4294901760
    %v1097 = vsub.f32 %v592, %v1096
    %v1098 = vand.u32 %v1097, 4294901760
    %1099 = vmatpush1.msra.mxu0 %v1098
    %1100 = vmatprep.subr.mxu0 0.0
    %v1101 = vand.u32 %v593, 4294901760
    %v1102 = vsub.f32 %v593, %v1101
    %v1103 = vand.u32 %v1102, 4294901760
    %1104 = vmatpush1.msra.mxu0 %v1103
    %1105 = vmatprep.subr.mxu0 0.0
    %v1106 = vand.u32 %v594, 4294901760
    %v1107 = vsub.f32 %v594, %v1106
    %v1108 = vand.u32 %v1107, 4294901760
    %1109 = vmatpush1.msra.mxu0 %v1108
    %1110 = vmatprep.subr.mxu0 0.0
    %v1111 = vand.u32 %v595, 4294901760
    %v1112 = vsub.f32 %v595, %v1111
    %v1113 = vand.u32 %v1112, 4294901760
    %1114 = vmatpush1.msra.mxu0 %v1113
    %1115 = vmatprep.subr.mxu0 0.0
    %v1116 = vand.u32 %v596, 4294901760
    %v1117 = vsub.f32 %v596, %v1116
    %v1118 = vand.u32 %v1117, 4294901760
    %1119 = vmatpush1.msra.mxu0 %v1118
    %1120 = vmatprep.subr.mxu0 0.0
    %1121 = vmatpush1.msra.mxu0 0.0
    %1122 = vmatprep.subr.mxu0 0.0
    %1123 = vmatpush1.msra.mxu0 0.0
    %1124 = vmatprep.subr.mxu0 0.0
    %1125 = vmatpush1.msra.mxu0 0.0
    %1126 = vmatprep.subr.mxu0 0.0
    %1127 = vmatpush1.msra.mxu0 0.0
    %1128 = vmatprep.subr.mxu0 0.0
    %1129 = vmatpush1.msra.mxu0 0.0
    %1130 = vmatprep.subr.mxu0 0.0
    %1131 = vmatpush1.msra.mxu0 0.0
    %1132 = vmatprep.subr.mxu0 0.0
    %1133 = vmatpush1.msra.mxu0 0.0
    %1134 = vmatprep.subr.mxu0 0.0
    %1135 = vmatpush1.msra.mxu0 0.0
    %1136 = vmatprep.subr.mxu0 0.0
    %1137 = vmatpush1.msra.mxu0 0.0
    %1138 = vmatprep.subr.mxu0 0.0
    %1139 = vmatpush1.msra.mxu0 0.0
    %1140 = vmatprep.subr.mxu0 0.0
    %1141 = vmatpush1.msra.mxu0 0.0
    %1142 = vmatprep.subr.mxu0 0.0
    %1143 = vmatpush1.msra.mxu0 0.0
    %1144 = vmatprep.subr.mxu0 0.0
    %1145 = vmatpush1.msra.mxu0 0.0
    %1146 = vmatprep.subr.mxu0 0.0
    %1147 = vmatpush1.msra.mxu0 0.0
    %1148 = vmatprep.subr.mxu0 0.0
    %1149 = vmatpush1.msra.mxu0 0.0
    %1150 = vmatprep.subr.mxu0 0.0
    %1151 = vmatpush1.msra.mxu0 0.0
    %1152 = vmatprep.mubr.f32.mxu0 0.0
    %v1153 = vand.u32 %v598, 4294901760
    %1154 = vmatmul.mubr.f32.gmra.mrb[0].mxu0 %v1153
    %v1155 = vpop.f32.mrb[0].mxu0
    %v1156 = vadd.f32 %v1037, %v1155
    %v1157 = vpop.f32.mrb[0].mxu0
    %1158 = vdwg.mxu0
    %1159 = vmatprep.subr.mxu0 0.0
    %v1160 = vand.u32 %v581, 4294901760
    %1161 = vmatpush1.msra.mxu0 %v1160
    %1162 = vmatprep.subr.mxu0 0.0
    %v1163 = vand.u32 %v582, 4294901760
    %1164 = vmatpush1.msra.mxu0 %v1163
    %1165 = vmatprep.subr.mxu0 0.0
    %v1166 = vand.u32 %v583, 4294901760
    %1167 = vmatpush1.msra.mxu0 %v1166
    %1168 = vmatprep.subr.mxu0 0.0
    %v1169 = vand.u32 %v584, 4294901760
    %1170 = vmatpush1.msra.mxu0 %v1169
    %1171 = vmatprep.subr.mxu0 0.0
    %v1172 = vand.u32 %v585, 4294901760
    %1173 = vmatpush1.msra.mxu0 %v1172
    %1174 = vmatprep.subr.mxu0 0.0
    %v1175 = vand.u32 %v586, 4294901760
    %1176 = vmatpush1.msra.mxu0 %v1175
    %1177 = vmatprep.subr.mxu0 0.0
    %v1178 = vand.u32 %v587, 4294901760
    %1179 = vmatpush1.msra.mxu0 %v1178
    %1180 = vmatprep.subr.mxu0 0.0
    %v1181 = vand.u32 %v588, 4294901760
    %1182 = vmatpush1.msra.mxu0 %v1181
    %1183 = vmatprep.subr.mxu0 0.0
    %v1184 = vand.u32 %v589, 4294901760
    %1185 = vmatpush1.msra.mxu0 %v1184
    %1186 = vmatprep.subr.mxu0 0.0
    %v1187 = vand.u32 %v590, 4294901760
    %1188 = vmatpush1.msra.mxu0 %v1187
    %1189 = vmatprep.subr.mxu0 0.0
    %v1190 = vand.u32 %v591, 4294901760
    %1191 = vmatpush1.msra.mxu0 %v1190
    %1192 = vmatprep.subr.mxu0 0.0
    %v1193 = vand.u32 %v592, 4294901760
    %1194 = vmatpush1.msra.mxu0 %v1193
    %1195 = vmatprep.subr.mxu0 0.0
    %v1196 = vand.u32 %v593, 4294901760
    %1197 = vmatpush1.msra.mxu0 %v1196
    %1198 = vmatprep.subr.mxu0 0.0
    %v1199 = vand.u32 %v594, 4294901760
    %1200 = vmatpush1.msra.mxu0 %v1199
    %1201 = vmatprep.subr.mxu0 0.0
    %v1202 = vand.u32 %v595, 4294901760
    %1203 = vmatpush1.msra.mxu0 %v1202
    %1204 = vmatprep.subr.mxu0 0.0
    %v1205 = vand.u32 %v596, 4294901760
    %1206 = vmatpush1.msra.mxu0 %v1205
    %1207 = vmatprep.subr.mxu0 0.0
    %1208 = vmatpush1.msra.mxu0 0.0
    %1209 = vmatprep.subr.mxu0 0.0
    %1210 = vmatpush1.msra.mxu0 0.0
    %1211 = vmatprep.subr.mxu0 0.0
    %1212 = vmatpush1.msra.mxu0 0.0
    %1213 = vmatprep.subr.mxu0 0.0
    %1214 = vmatpush1.msra.mxu0 0.0
    %1215 = vmatprep.subr.mxu0 0.0
    %1216 = vmatpush1.msra.mxu0 0.0
    %1217 = vmatprep.subr.mxu0 0.0
    %1218 = vmatpush1.msra.mxu0 0.0
    %1219 = vmatprep.subr.mxu0 0.0
    %1220 = vmatpush1.msra.mxu0 0.0
    %1221 = vmatprep.subr.mxu0 0.0
    %1222 = vmatpush1.msra.mxu0 0.0
    %1223 = vmatprep.subr.mxu0 0.0
    %1224 = vmatpush1.msra.mxu0 0.0
    %1225 = vmatprep.subr.mxu0 0.0
    %1226 = vmatpush1.msra.mxu0 0.0
    %1227 = vmatprep.subr.mxu0 0.0
    %1228 = vmatpush1.msra.mxu0 0.0
    %1229 = vmatprep.subr.mxu0 0.0
    %1230 = vmatpush1.msra.mxu0 0.0
    %1231 = vmatprep.subr.mxu0 0.0
    %1232 = vmatpush1.msra.mxu0 0.0
    %1233 = vmatprep.subr.mxu0 0.0
    %1234 = vmatpush1.msra.mxu0 0.0
    %1235 = vmatprep.subr.mxu0 0.0
    %1236 = vmatpush1.msra.mxu0 0.0
    %1237 = vmatprep.subr.mxu0 0.0
    %1238 = vmatpush1.msra.mxu0 0.0
    %1239 = vmatprep.mubr.f32.mxu0 0.0
    %v1240 = vand.u32 %v598, 4294901760
    %1241 = vmatmul.mubr.f32.gmra.mrb[0].mxu0 %v1240
    %v1242 = vpop.f32.mrb[0].mxu0
    %v1243 = vadd.f32 %v1156, %v1242
    %v1244 = vpop.f32.mrb[0].mxu0
    %1245 = vdwg.mxu0
    %v1246 = vld [vmem:[#allocation8] sm:$0xff]
    %v1247 = vld [vmem:[#allocation8 + $0x8] sm:$0xff]
    %v1248 = vld [vmem:[#allocation8 + $0x10] sm:$0xff]
    %v1249 = vld [vmem:[#allocation8 + $0x18] sm:$0xff]
    %v1250 = vld [vmem:[#allocation8 + $0x20] sm:$0xff]
    %v1251 = vld [vmem:[#allocation8 + $0x28] sm:$0xff]
    %v1252 = vld [vmem:[#allocation8 + $0x30] sm:$0xff]
    %v1253 = vld [vmem:[#allocation8 + $0x38] sm:$0xff]
    %v1254 = vld [vmem:[#allocation8 + $0x40] sm:$0xff]
    %v1255 = vld [vmem:[#allocation8 + $0x48] sm:$0xff]
    %v1256 = vld [vmem:[#allocation8 + $0x50] sm:$0xff]
    %v1257 = vld [vmem:[#allocation8 + $0x58] sm:$0xff]
    %v1258 = vld [vmem:[#allocation8 + $0x60] sm:$0xff]
    %v1259 = vld [vmem:[#allocation8 + $0x68] sm:$0xff]
    %v1260 = vld [vmem:[#allocation8 + $0x70] sm:$0xff]
    %v1261 = vld [vmem:[#allocation8 + $0x78] sm:$0xff]
    %v1262 = vld [vmem:[#allocation8 + $0x80] sm:$0xff]
    %v1263 = vld [vmem:[#allocation8 + $0x88] sm:$0xff]
    %v1264 = vld [vmem:[#allocation8 + $0x90] sm:$0xff]
    %v1265 = vld [vmem:[#allocation8 + $0x98] sm:$0xff]
    %v1266 = vld [vmem:[#allocation8 + $0xa0] sm:$0xff]
    %v1267 = vld [vmem:[#allocation8 + $0xa8] sm:$0xff]
    %v1268 = vld [vmem:[#allocation8 + $0xb0] sm:$0xff]
    %v1269 = vld [vmem:[#allocation8 + $0xb8] sm:$0xff]
    %v1270 = vld [vmem:[#allocation8 + $0xc0] sm:$0xff]
    %v1271 = vld [vmem:[#allocation8 + $0xc8] sm:$0xff]
    %v1272 = vld [vmem:[#allocation8 + $0xd0] sm:$0xff]
    %v1273 = vld [vmem:[#allocation8 + $0xd8] sm:$0xff]
    %v1274 = vld [vmem:[#allocation8 + $0xe0] sm:$0xff]
    %v1275 = vld [vmem:[#allocation8 + $0xe8] sm:$0xff]
    %v1276 = vld [vmem:[#allocation8 + $0xf0] sm:$0xff]
    %v1277 = vld [vmem:[#allocation8 + $0xf8] sm:$0xff]
    %v1278 = vld [vmem:[%s6] sm:$0x3]
    %v1279 = vmax.f32 %v1243, 0.0
    %v1281 = vlaneseq
    %v1282 = vshrl.u32 %v1281, 7
    %v1283 = vsub.s32 0, %v1282
    %v1284 = vrot.slane %v1278, %v1283
    %v1285 = vlaneseq
    %v1286 = vshrl.u32 %v1285, 7
    %v1287 = vsub.s32 1, %v1286
    %v1288 = vrot.slane %v1278, %v1287
    %v1291 = vand.u32 %v1247, 4294901760
    %1292 = vmatprep.subr.mxu0 %v1291
    %v1293 = vand.u32 %v1246, 4294901760
    %1294 = vmatpush1.msra.mxu0 %v1293
    %v1295 = vand.u32 %v1249, 4294901760
    %1296 = vmatprep.subr.mxu0 %v1295
    %v1297 = vand.u32 %v1248, 4294901760
    %1298 = vmatpush1.msra.mxu0 %v1297
    %v1299 = vand.u32 %v1251, 4294901760
    %1300 = vmatprep.subr.mxu0 %v1299
    %v1301 = vand.u32 %v1250, 4294901760
    %1302 = vmatpush1.msra.mxu0 %v1301
    %v1303 = vand.u32 %v1253, 4294901760
    %1304 = vmatprep.subr.mxu0 %v1303
    %v1305 = vand.u32 %v1252, 4294901760
    %1306 = vmatpush1.msra.mxu0 %v1305
    %v1307 = vand.u32 %v1255, 4294901760
    %1308 = vmatprep.subr.mxu0 %v1307
    %v1309 = vand.u32 %v1254, 4294901760
    %1310 = vmatpush1.msra.mxu0 %v1309
    %v1311 = vand.u32 %v1257, 4294901760
    %1312 = vmatprep.subr.mxu0 %v1311
    %v1313 = vand.u32 %v1256, 4294901760
    %1314 = vmatpush1.msra.mxu0 %v1313
    %v1315 = vand.u32 %v1259, 4294901760
    %1316 = vmatprep.subr.mxu0 %v1315
    %v1317 = vand.u32 %v1258, 4294901760
    %1318 = vmatpush1.msra.mxu0 %v1317
    %v1319 = vand.u32 %v1261, 4294901760
    %1320 = vmatprep.subr.mxu0 %v1319
    %v1321 = vand.u32 %v1260, 4294901760
    %1322 = vmatpush1.msra.mxu0 %v1321
    %v1323 = vand.u32 %v1263, 4294901760
    %1324 = vmatprep.subr.mxu0 %v1323
    %v1325 = vand.u32 %v1262, 4294901760
    %1326 = vmatpush1.msra.mxu0 %v1325
    %v1327 = vand.u32 %v1265, 4294901760
    %1328 = vmatprep.subr.mxu0 %v1327
    %v1329 = vand.u32 %v1264, 4294901760
    %1330 = vmatpush1.msra.mxu0 %v1329
    %v1331 = vand.u32 %v1267, 4294901760
    %1332 = vmatprep.subr.mxu0 %v1331
    %v1333 = vand.u32 %v1266, 4294901760
    %1334 = vmatpush1.msra.mxu0 %v1333
    %v1335 = vand.u32 %v1269, 4294901760
    %1336 = vmatprep.subr.mxu0 %v1335
    %v1337 = vand.u32 %v1268, 4294901760
    %1338 = vmatpush1.msra.mxu0 %v1337
    %v1339 = vand.u32 %v1271, 4294901760
    %1340 = vmatprep.subr.mxu0 %v1339
    %v1341 = vand.u32 %v1270, 4294901760
    %1342 = vmatpush1.msra.mxu0 %v1341
    %v1343 = vand.u32 %v1273, 4294901760
    %1344 = vmatprep.subr.mxu0 %v1343
    %v1345 = vand.u32 %v1272, 4294901760
    %1346 = vmatpush1.msra.mxu0 %v1345
    %v1347 = vand.u32 %v1275, 4294901760
    %1348 = vmatprep.subr.mxu0 %v1347
    %v1349 = vand.u32 %v1274, 4294901760
    %1350 = vmatpush1.msra.mxu0 %v1349
    %v1351 = vand.u32 %v1277, 4294901760
    %1352 = vmatprep.subr.mxu0 %v1351
    %v1353 = vand.u32 %v1276, 4294901760
    %1354 = vmatpush1.msra.mxu0 %v1353
    %1355 = vmatprep.subr.mxu0 0.0
    %1356 = vmatpush1.msra.mxu0 0.0
    %1357 = vmatprep.subr.mxu0 0.0
    %1358 = vmatpush1.msra.mxu0 0.0
    %1359 = vmatprep.subr.mxu0 0.0
    %1360 = vmatpush1.msra.mxu0 0.0
    %1361 = vmatprep.subr.mxu0 0.0
    %1362 = vmatpush1.msra.mxu0 0.0
    %1363 = vmatprep.subr.mxu0 0.0
    %1364 = vmatpush1.msra.mxu0 0.0
    %1365 = vmatprep.subr.mxu0 0.0
    %1366 = vmatpush1.msra.mxu0 0.0
    %1367 = vmatprep.subr.mxu0 0.0
    %1368 = vmatpush1.msra.mxu0 0.0
    %1369 = vmatprep.subr.mxu0 0.0
    %1370 = vmatpush1.msra.mxu0 0.0
    %1371 = vmatprep.subr.mxu0 0.0
    %1372 = vmatpush1.msra.mxu0 0.0
    %1373 = vmatprep.subr.mxu0 0.0
    %1374 = vmatpush1.msra.mxu0 0.0
    %1375 = vmatprep.subr.mxu0 0.0
    %1376 = vmatpush1.msra.mxu0 0.0
    %1377 = vmatprep.subr.mxu0 0.0
    %1378 = vmatpush1.msra.mxu0 0.0
    %1379 = vmatprep.subr.mxu0 0.0
    %1380 = vmatpush1.msra.mxu0 0.0
    %1381 = vmatprep.subr.mxu0 0.0
    %1382 = vmatpush1.msra.mxu0 0.0
    %1383 = vmatprep.subr.mxu0 0.0
    %1384 = vmatpush1.msra.mxu0 0.0
    %1385 = vmatprep.subr.mxu0 0.0
    %1386 = vmatpush1.msra.mxu0 0.0
    %1387 = vmatprep.mubr.f32.mxu0 0.0
    %v1388 = vand.u32 %v1279, 4294901760
    %v1389 = vsub.f32 %v1279, %v1388
    %v1390 = vand.u32 %v1389, 4294901760
    %v1391 = vsub.f32 %v1389, %v1390
    %v1392 = vand.u32 %v1391, 4294901760
    %1393 = vmatmul.mubr.f32.gmra.mrb[0].mxu0 %v1392
    %v1394 = vpop.f32.mrb[0].mxu0
    %v1395 = vadd.f32 %v1284, %v1394
    %v1396 = vpop.f32.mrb[0].mxu0
    %v1397 = vadd.f32 %v1288, %v1396
    %1398 = vdwg.mxu0
    %v1399 = vand.u32 %v1247, 4294901760
    %v1400 = vsub.f32 %v1247, %v1399
    %v1401 = vand.u32 %v1400, 4294901760
    %v1402 = vsub.f32 %v1400, %v1401
    %v1403 = vand.u32 %v1402, 4294901760
    %1404 = vmatprep.subr.mxu0 %v1403
    %v1405 = vand.u32 %v1246, 4294901760
    %v1406 = vsub.f32 %v1246, %v1405
    %v1407 = vand.u32 %v1406, 4294901760
    %v1408 = vsub.f32 %v1406, %v1407
    %v1409 = vand.u32 %v1408, 4294901760
    %1410 = vmatpush1.msra.mxu0 %v1409
    %v1411 = vand.u32 %v1249, 4294901760
    %v1412 = vsub.f32 %v1249, %v1411
    %v1413 = vand.u32 %v1412, 4294901760
    %v1414 = vsub.f32 %v1412, %v1413
    %v1415 = vand.u32 %v1414, 4294901760
    %1416 = vmatprep.subr.mxu0 %v1415
    %v1417 = vand.u32 %v1248, 4294901760
    %v1418 = vsub.f32 %v1248, %v1417
    %v1419 = vand.u32 %v1418, 4294901760
    %v1420 = vsub.f32 %v1418, %v1419
    %v1421 = vand.u32 %v1420, 4294901760
    %1422 = vmatpush1.msra.mxu0 %v1421
    %v1423 = vand.u32 %v1251, 4294901760
    %v1424 = vsub.f32 %v1251, %v1423
    %v1425 = vand.u32 %v1424, 4294901760
    %v1426 = vsub.f32 %v1424, %v1425
    %v1427 = vand.u32 %v1426, 4294901760
    %1428 = vmatprep.subr.mxu0 %v1427
    %v1429 = vand.u32 %v1250, 4294901760
    %v1430 = vsub.f32 %v1250, %v1429
    %v1431 = vand.u32 %v1430, 4294901760
    %v1432 = vsub.f32 %v1430, %v1431
    %v1433 = vand.u32 %v1432, 4294901760
    %1434 = vmatpush1.msra.mxu0 %v1433
    %v1435 = vand.u32 %v1253, 4294901760
    %v1436 = vsub.f32 %v1253, %v1435
    %v1437 = vand.u32 %v1436, 4294901760
    %v1438 = vsub.f32 %v1436, %v1437
    %v1439 = vand.u32 %v1438, 4294901760
    %1440 = vmatprep.subr.mxu0 %v1439
    %v1441 = vand.u32 %v1252, 4294901760
    %v1442 = vsub.f32 %v1252, %v1441
    %v1443 = vand.u32 %v1442, 4294901760
    %v1444 = vsub.f32 %v1442, %v1443
    %v1445 = vand.u32 %v1444, 4294901760
    %1446 = vmatpush1.msra.mxu0 %v1445
    %v1447 = vand.u32 %v1255, 4294901760
    %v1448 = vsub.f32 %v1255, %v1447
    %v1449 = vand.u32 %v1448, 4294901760
    %v1450 = vsub.f32 %v1448, %v1449
    %v1451 = vand.u32 %v1450, 4294901760
    %1452 = vmatprep.subr.mxu0 %v1451
    %v1453 = vand.u32 %v1254, 4294901760
    %v1454 = vsub.f32 %v1254, %v1453
    %v1455 = vand.u32 %v1454, 4294901760
    %v1456 = vsub.f32 %v1454, %v1455
    %v1457 = vand.u32 %v1456, 4294901760
    %1458 = vmatpush1.msra.mxu0 %v1457
    %v1459 = vand.u32 %v1257, 4294901760
    %v1460 = vsub.f32 %v1257, %v1459
    %v1461 = vand.u32 %v1460, 4294901760
    %v1462 = vsub.f32 %v1460, %v1461
    %v1463 = vand.u32 %v1462, 4294901760
    %1464 = vmatprep.subr.mxu0 %v1463
    %v1465 = vand.u32 %v1256, 4294901760
    %v1466 = vsub.f32 %v1256, %v1465
    %v1467 = vand.u32 %v1466, 4294901760
    %v1468 = vsub.f32 %v1466, %v1467
    %v1469 = vand.u32 %v1468, 4294901760
    %1470 = vmatpush1.msra.mxu0 %v1469
    %v1471 = vand.u32 %v1259, 4294901760
    %v1472 = vsub.f32 %v1259, %v1471
    %v1473 = vand.u32 %v1472, 4294901760
    %v1474 = vsub.f32 %v1472, %v1473
    %v1475 = vand.u32 %v1474, 4294901760
    %1476 = vmatprep.subr.mxu0 %v1475
    %v1477 = vand.u32 %v1258, 4294901760
    %v1478 = vsub.f32 %v1258, %v1477
    %v1479 = vand.u32 %v1478, 4294901760
    %v1480 = vsub.f32 %v1478, %v1479
    %v1481 = vand.u32 %v1480, 4294901760
    %1482 = vmatpush1.msra.mxu0 %v1481
    %v1483 = vand.u32 %v1261, 4294901760
    %v1484 = vsub.f32 %v1261, %v1483
    %v1485 = vand.u32 %v1484, 4294901760
    %v1486 = vsub.f32 %v1484, %v1485
    %v1487 = vand.u32 %v1486, 4294901760
    %1488 = vmatprep.subr.mxu0 %v1487
    %v1489 = vand.u32 %v1260, 4294901760
    %v1490 = vsub.f32 %v1260, %v1489
    %v1491 = vand.u32 %v1490, 4294901760
    %v1492 = vsub.f32 %v1490, %v1491
    %v1493 = vand.u32 %v1492, 4294901760
    %1494 = vmatpush1.msra.mxu0 %v1493
    %v1495 = vand.u32 %v1263, 4294901760
    %v1496 = vsub.f32 %v1263, %v1495
    %v1497 = vand.u32 %v1496, 4294901760
    %v1498 = vsub.f32 %v1496, %v1497
    %v1499 = vand.u32 %v1498, 4294901760
    %1500 = vmatprep.subr.mxu0 %v1499
    %v1501 = vand.u32 %v1262, 4294901760
    %v1502 = vsub.f32 %v1262, %v1501
    %v1503 = vand.u32 %v1502, 4294901760
    %v1504 = vsub.f32 %v1502, %v1503
    %v1505 = vand.u32 %v1504, 4294901760
    %1506 = vmatpush1.msra.mxu0 %v1505
    %v1507 = vand.u32 %v1265, 4294901760
    %v1508 = vsub.f32 %v1265, %v1507
    %v1509 = vand.u32 %v1508, 4294901760
    %v1510 = vsub.f32 %v1508, %v1509
    %v1511 = vand.u32 %v1510, 4294901760
    %1512 = vmatprep.subr.mxu0 %v1511
    %v1513 = vand.u32 %v1264, 4294901760
    %v1514 = vsub.f32 %v1264, %v1513
    %v1515 = vand.u32 %v1514, 4294901760
    %v1516 = vsub.f32 %v1514, %v1515
    %v1517 = vand.u32 %v1516, 4294901760
    %1518 = vmatpush1.msra.mxu0 %v1517
    %v1519 = vand.u32 %v1267, 4294901760
    %v1520 = vsub.f32 %v1267, %v1519
    %v1521 = vand.u32 %v1520, 4294901760
    %v1522 = vsub.f32 %v1520, %v1521
    %v1523 = vand.u32 %v1522, 4294901760
    %1524 = vmatprep.subr.mxu0 %v1523
    %v1525 = vand.u32 %v1266, 4294901760
    %v1526 = vsub.f32 %v1266, %v1525
    %v1527 = vand.u32 %v1526, 4294901760
    %v1528 = vsub.f32 %v1526, %v1527
    %v1529 = vand.u32 %v1528, 4294901760
    %1530 = vmatpush1.msra.mxu0 %v1529
    %v1531 = vand.u32 %v1269, 4294901760
    %v1532 = vsub.f32 %v1269, %v1531
    %v1533 = vand.u32 %v1532, 4294901760
    %v1534 = vsub.f32 %v1532, %v1533
    %v1535 = vand.u32 %v1534, 4294901760
    %1536 = vmatprep.subr.mxu0 %v1535
    %v1537 = vand.u32 %v1268, 4294901760
    %v1538 = vsub.f32 %v1268, %v1537
    %v1539 = vand.u32 %v1538, 4294901760
    %v1540 = vsub.f32 %v1538, %v1539
    %v1541 = vand.u32 %v1540, 4294901760
    %1542 = vmatpush1.msra.mxu0 %v1541
    %v1543 = vand.u32 %v1271, 4294901760
    %v1544 = vsub.f32 %v1271, %v1543
    %v1545 = vand.u32 %v1544, 4294901760
    %v1546 = vsub.f32 %v1544, %v1545
    %v1547 = vand.u32 %v1546, 4294901760
    %1548 = vmatprep.subr.mxu0 %v1547
    %v1549 = vand.u32 %v1270, 4294901760
    %v1550 = vsub.f32 %v1270, %v1549
    %v1551 = vand.u32 %v1550, 4294901760
    %v1552 = vsub.f32 %v1550, %v1551
    %v1553 = vand.u32 %v1552, 4294901760
    %1554 = vmatpush1.msra.mxu0 %v1553
    %v1555 = vand.u32 %v1273, 4294901760
    %v1556 = vsub.f32 %v1273, %v1555
    %v1557 = vand.u32 %v1556, 4294901760
    %v1558 = vsub.f32 %v1556, %v1557
    %v1559 = vand.u32 %v1558, 4294901760
    %1560 = vmatprep.subr.mxu0 %v1559
    %v1561 = vand.u32 %v1272, 4294901760
    %v1562 = vsub.f32 %v1272, %v1561
    %v1563 = vand.u32 %v1562, 4294901760
    %v1564 = vsub.f32 %v1562, %v1563
    %v1565 = vand.u32 %v1564, 4294901760
    %1566 = vmatpush1.msra.mxu0 %v1565
    %v1567 = vand.u32 %v1275, 4294901760
    %v1568 = vsub.f32 %v1275, %v1567
    %v1569 = vand.u32 %v1568, 4294901760
    %v1570 = vsub.f32 %v1568, %v1569
    %v1571 = vand.u32 %v1570, 4294901760
    %1572 = vmatprep.subr.mxu0 %v1571
    %v1573 = vand.u32 %v1274, 4294901760
    %v1574 = vsub.f32 %v1274, %v1573
    %v1575 = vand.u32 %v1574, 4294901760
    %v1576 = vsub.f32 %v1574, %v1575
    %v1577 = vand.u32 %v1576, 4294901760
    %1578 = vmatpush1.msra.mxu0 %v1577
    %v1579 = vand.u32 %v1277, 4294901760
    %v1580 = vsub.f32 %v1277, %v1579
    %v1581 = vand.u32 %v1580, 4294901760
    %v1582 = vsub.f32 %v1580, %v1581
    %v1583 = vand.u32 %v1582, 4294901760
    %1584 = vmatprep.subr.mxu0 %v1583
    %v1585 = vand.u32 %v1276, 4294901760
    %v1586 = vsub.f32 %v1276, %v1585
    %v1587 = vand.u32 %v1586, 4294901760
    %v1588 = vsub.f32 %v1586, %v1587
    %v1589 = vand.u32 %v1588, 4294901760
    %1590 = vmatpush1.msra.mxu0 %v1589
    %1591 = vmatprep.subr.mxu0 0.0
    %1592 = vmatpush1.msra.mxu0 0.0
    %1593 = vmatprep.subr.mxu0 0.0
    %1594 = vmatpush1.msra.mxu0 0.0
    %1595 = vmatprep.subr.mxu0 0.0
    %1596 = vmatpush1.msra.mxu0 0.0
    %1597 = vmatprep.subr.mxu0 0.0
    %1598 = vmatpush1.msra.mxu0 0.0
    %1599 = vmatprep.subr.mxu0 0.0
    %1600 = vmatpush1.msra.mxu0 0.0
    %1601 = vmatprep.subr.mxu0 0.0
    %1602 = vmatpush1.msra.mxu0 0.0
    %1603 = vmatprep.subr.mxu0 0.0
    %1604 = vmatpush1.msra.mxu0 0.0
    %1605 = vmatprep.subr.mxu0 0.0
    %1606 = vmatpush1.msra.mxu0 0.0
    %1607 = vmatprep.subr.mxu0 0.0
    %1608 = vmatpush1.msra.mxu0 0.0
    %1609 = vmatprep.subr.mxu0 0.0
    %1610 = vmatpush1.msra.mxu0 0.0
    %1611 = vmatprep.subr.mxu0 0.0
    %1612 = vmatpush1.msra.mxu0 0.0
    %1613 = vmatprep.subr.mxu0 0.0
    %1614 = vmatpush1.msra.mxu0 0.0
    %1615 = vmatprep.subr.mxu0 0.0
    %1616 = vmatpush1.msra.mxu0 0.0
    %1617 = vmatprep.subr.mxu0 0.0
    %1618 = vmatpush1.msra.mxu0 0.0
    %1619 = vmatprep.subr.mxu0 0.0
    %1620 = vmatpush1.msra.mxu0 0.0
    %1621 = vmatprep.subr.mxu0 0.0
    %1622 = vmatpush1.msra.mxu0 0.0
    %1623 = vmatprep.mubr.f32.mxu0 0.0
    %v1624 = vand.u32 %v1279, 4294901760
    %1625 = vmatmul.mubr.f32.gmra.mrb[0].mxu0 %v1624
    %v1626 = vpop.f32.mrb[0].mxu0
    %v1627 = vadd.f32 %v1395, %v1626
    %v1628 = vpop.f32.mrb[0].mxu0
    %v1629 = vadd.f32 %v1397, %v1628
    %1630 = vdwg.mxu0
    %v1631 = vand.u32 %v1247, 4294901760
    %v1632 = vsub.f32 %v1247, %v1631
    %1633 = vmatprep.subr.mxu0 %v1632
    %v1634 = vand.u32 %v1246, 4294901760
    %v1635 = vsub.f32 %v1246, %v1634
    %1636 = vmatpush1.msra.mxu0 %v1635
    %v1637 = vand.u32 %v1249, 4294901760
    %v1638 = vsub.f32 %v1249, %v1637
    %1639 = vmatprep.subr.mxu0 %v1638
    %v1640 = vand.u32 %v1248, 4294901760
    %v1641 = vsub.f32 %v1248, %v1640
    %1642 = vmatpush1.msra.mxu0 %v1641
    %v1643 = vand.u32 %v1251, 4294901760
    %v1644 = vsub.f32 %v1251, %v1643
    %1645 = vmatprep.subr.mxu0 %v1644
    %v1646 = vand.u32 %v1250, 4294901760
    %v1647 = vsub.f32 %v1250, %v1646
    %1648 = vmatpush1.msra.mxu0 %v1647
    %v1649 = vand.u32 %v1253, 4294901760
    %v1650 = vsub.f32 %v1253, %v1649
    %1651 = vmatprep.subr.mxu0 %v1650
    %v1652 = vand.u32 %v1252, 4294901760
    %v1653 = vsub.f32 %v1252, %v1652
    %1654 = vmatpush1.msra.mxu0 %v1653
    %v1655 = vand.u32 %v1255, 4294901760
    %v1656 = vsub.f32 %v1255, %v1655
    %1657 = vmatprep.subr.mxu0 %v1656
    %v1658 = vand.u32 %v1254, 4294901760
    %v1659 = vsub.f32 %v1254, %v1658
    %1660 = vmatpush1.msra.mxu0 %v1659
    %v1661 = vand.u32 %v1257, 4294901760
    %v1662 = vsub.f32 %v1257, %v1661
    %1663 = vmatprep.subr.mxu0 %v1662
    %v1664 = vand.u32 %v1256, 4294901760
    %v1665 = vsub.f32 %v1256, %v1664
    %1666 = vmatpush1.msra.mxu0 %v1665
    %v1667 = vand.u32 %v1259, 4294901760
    %v1668 = vsub.f32 %v1259, %v1667
    %1669 = vmatprep.subr.mxu0 %v1668
    %v1670 = vand.u32 %v1258, 4294901760
    %v1671 = vsub.f32 %v1258, %v1670
    %1672 = vmatpush1.msra.mxu0 %v1671
    %v1673 = vand.u32 %v1261, 4294901760
    %v1674 = vsub.f32 %v1261, %v1673
    %1675 = vmatprep.subr.mxu0 %v1674
    %v1676 = vand.u32 %v1260, 4294901760
    %v1677 = vsub.f32 %v1260, %v1676
    %1678 = vmatpush1.msra.mxu0 %v1677
    %v1679 = vand.u32 %v1263, 4294901760
    %v1680 = vsub.f32 %v1263, %v1679
    %1681 = vmatprep.subr.mxu0 %v1680
    %v1682 = vand.u32 %v1262, 4294901760
    %v1683 = vsub.f32 %v1262, %v1682
    %1684 = vmatpush1.msra.mxu0 %v1683
    %v1685 = vand.u32 %v1265, 4294901760
    %v1686 = vsub.f32 %v1265, %v1685
    %1687 = vmatprep.subr.mxu0 %v1686
    %v1688 = vand.u32 %v1264, 4294901760
    %v1689 = vsub.f32 %v1264, %v1688
    %1690 = vmatpush1.msra.mxu0 %v1689
    %v1691 = vand.u32 %v1267, 4294901760
    %v1692 = vsub.f32 %v1267, %v1691
    %1693 = vmatprep.subr.mxu0 %v1692
    %v1694 = vand.u32 %v1266, 4294901760
    %v1695 = vsub.f32 %v1266, %v1694
    %1696 = vmatpush1.msra.mxu0 %v1695
    %v1697 = vand.u32 %v1269, 4294901760
    %v1698 = vsub.f32 %v1269, %v1697
    %1699 = vmatprep.subr.mxu0 %v1698
    %v1700 = vand.u32 %v1268, 4294901760
    %v1701 = vsub.f32 %v1268, %v1700
    %1702 = vmatpush1.msra.mxu0 %v1701
    %v1703 = vand.u32 %v1271, 4294901760
    %v1704 = vsub.f32 %v1271, %v1703
    %1705 = vmatprep.subr.mxu0 %v1704
    %v1706 = vand.u32 %v1270, 4294901760
    %v1707 = vsub.f32 %v1270, %v1706
    %1708 = vmatpush1.msra.mxu0 %v1707
    %v1709 = vand.u32 %v1273, 4294901760
    %v1710 = vsub.f32 %v1273, %v1709
    %1711 = vmatprep.subr.mxu0 %v1710
    %v1712 = vand.u32 %v1272, 4294901760
    %v1713 = vsub.f32 %v1272, %v1712
    %1714 = vmatpush1.msra.mxu0 %v1713
    %v1715 = vand.u32 %v1275, 4294901760
    %v1716 = vsub.f32 %v1275, %v1715
    %1717 = vmatprep.subr.mxu0 %v1716
    %v1718 = vand.u32 %v1274, 4294901760
    %v1719 = vsub.f32 %v1274, %v1718
    %1720 = vmatpush1.msra.mxu0 %v1719
    %v1721 = vand.u32 %v1277, 4294901760
    %v1722 = vsub.f32 %v1277, %v1721
    %1723 = vmatprep.subr.mxu0 %v1722
    %v1724 = vand.u32 %v1276, 4294901760
    %v1725 = vsub.f32 %v1276, %v1724
    %1726 = vmatpush1.msra.mxu0 %v1725
    %1727 = vmatprep.subr.mxu0 0.0
    %1728 = vmatpush1.msra.mxu0 0.0
    %1729 = vmatprep.subr.mxu0 0.0
    %1730 = vmatpush1.msra.mxu0 0.0
    %1731 = vmatprep.subr.mxu0 0.0
    %1732 = vmatpush1.msra.mxu0 0.0
    %1733 = vmatprep.subr.mxu0 0.0
    %1734 = vmatpush1.msra.mxu0 0.0
    %1735 = vmatprep.subr.mxu0 0.0
    %1736 = vmatpush1.msra.mxu0 0.0
    %1737 = vmatprep.subr.mxu0 0.0
    %1738 = vmatpush1.msra.mxu0 0.0
    %1739 = vmatprep.subr.mxu0 0.0
    %1740 = vmatpush1.msra.mxu0 0.0
    %1741 = vmatprep.subr.mxu0 0.0
    %1742 = vmatpush1.msra.mxu0 0.0
    %1743 = vmatprep.subr.mxu0 0.0
    %1744 = vmatpush1.msra.mxu0 0.0
    %1745 = vmatprep.subr.mxu0 0.0
    %1746 = vmatpush1.msra.mxu0 0.0
    %1747 = vmatprep.subr.mxu0 0.0
    %1748 = vmatpush1.msra.mxu0 0.0
    %1749 = vmatprep.subr.mxu0 0.0
    %1750 = vmatpush1.msra.mxu0 0.0
    %1751 = vmatprep.subr.mxu0 0.0
    %1752 = vmatpush1.msra.mxu0 0.0
    %1753 = vmatprep.subr.mxu0 0.0
    %1754 = vmatpush1.msra.mxu0 0.0
    %1755 = vmatprep.subr.mxu0 0.0
    %1756 = vmatpush1.msra.mxu0 0.0
    %1757 = vmatprep.subr.mxu0 0.0
    %1758 = vmatpush1.msra.mxu0 0.0
    %1759 = vmatprep.mubr.f32.mxu0 0.0
    %v1760 = vand.u32 %v1279, 4294901760
    %v1761 = vsub.f32 %v1279, %v1760
    %1762 = vmatmul.mubr.f32.gmra.mrb[0].mxu0 %v1761
    %v1763 = vpop.f32.mrb[0].mxu0
    %v1764 = vadd.f32 %v1627, %v1763
    %v1765 = vpop.f32.mrb[0].mxu0
    %v1766 = vadd.f32 %v1629, %v1765
    %1767 = vdwg.mxu0
    %v1768 = vand.u32 %v1247, 4294901760
    %1769 = vmatprep.subr.mxu0 %v1768
    %v1770 = vand.u32 %v1246, 4294901760
    %1771 = vmatpush1.msra.mxu0 %v1770
    %v1772 = vand.u32 %v1249, 4294901760
    %1773 = vmatprep.subr.mxu0 %v1772
    %v1774 = vand.u32 %v1248, 4294901760
    %1775 = vmatpush1.msra.mxu0 %v1774
    %v1776 = vand.u32 %v1251, 4294901760
    %1777 = vmatprep.subr.mxu0 %v1776
    %v1778 = vand.u32 %v1250, 4294901760
    %1779 = vmatpush1.msra.mxu0 %v1778
    %v1780 = vand.u32 %v1253, 4294901760
    %1781 = vmatprep.subr.mxu0 %v1780
    %v1782 = vand.u32 %v1252, 4294901760
    %1783 = vmatpush1.msra.mxu0 %v1782
    %v1784 = vand.u32 %v1255, 4294901760
    %1785 = vmatprep.subr.mxu0 %v1784
    %v1786 = vand.u32 %v1254, 4294901760
    %1787 = vmatpush1.msra.mxu0 %v1786
    %v1788 = vand.u32 %v1257, 4294901760
    %1789 = vmatprep.subr.mxu0 %v1788
    %v1790 = vand.u32 %v1256, 4294901760
    %1791 = vmatpush1.msra.mxu0 %v1790
    %v1792 = vand.u32 %v1259, 4294901760
    %1793 = vmatprep.subr.mxu0 %v1792
    %v1794 = vand.u32 %v1258, 4294901760
    %1795 = vmatpush1.msra.mxu0 %v1794
    %v1796 = vand.u32 %v1261, 4294901760
    %1797 = vmatprep.subr.mxu0 %v1796
    %v1798 = vand.u32 %v1260, 4294901760
    %1799 = vmatpush1.msra.mxu0 %v1798
    %v1800 = vand.u32 %v1263, 4294901760
    %1801 = vmatprep.subr.mxu0 %v1800
    %v1802 = vand.u32 %v1262, 4294901760
    %1803 = vmatpush1.msra.mxu0 %v1802
    %v1804 = vand.u32 %v1265, 4294901760
    %1805 = vmatprep.subr.mxu0 %v1804
    %v1806 = vand.u32 %v1264, 4294901760
    %1807 = vmatpush1.msra.mxu0 %v1806
    %v1808 = vand.u32 %v1267, 4294901760
    %1809 = vmatprep.subr.mxu0 %v1808
    %v1810 = vand.u32 %v1266, 4294901760
    %1811 = vmatpush1.msra.mxu0 %v1810
    %v1812 = vand.u32 %v1269, 4294901760
    %1813 = vmatprep.subr.mxu0 %v1812
    %v1814 = vand.u32 %v1268, 4294901760
    %1815 = vmatpush1.msra.mxu0 %v1814
    %v1816 = vand.u32 %v1271, 4294901760
    %1817 = vmatprep.subr.mxu0 %v1816
    %v1818 = vand.u32 %v1270, 4294901760
    %1819 = vmatpush1.msra.mxu0 %v1818
    %v1820 = vand.u32 %v1273, 4294901760
    %1821 = vmatprep.subr.mxu0 %v1820
    %v1822 = vand.u32 %v1272, 4294901760
    %1823 = vmatpush1.msra.mxu0 %v1822
    %v1824 = vand.u32 %v1275, 4294901760
    %1825 = vmatprep.subr.mxu0 %v1824
    %v1826 = vand.u32 %v1274, 4294901760
    %1827 = vmatpush1.msra.mxu0 %v1826
    %v1828 = vand.u32 %v1277, 4294901760
    %1829 = vmatprep.subr.mxu0 %v1828
    %v1830 = vand.u32 %v1276, 4294901760
    %1831 = vmatpush1.msra.mxu0 %v1830
    %1832 = vmatprep.subr.mxu0 0.0
    %1833 = vmatpush1.msra.mxu0 0.0
    %1834 = vmatprep.subr.mxu0 0.0
    %1835 = vmatpush1.msra.mxu0 0.0
    %1836 = vmatprep.subr.mxu0 0.0
    %1837 = vmatpush1.msra.mxu0 0.0
    %1838 = vmatprep.subr.mxu0 0.0
    %1839 = vmatpush1.msra.mxu0 0.0
    %1840 = vmatprep.subr.mxu0 0.0
    %1841 = vmatpush1.msra.mxu0 0.0
    %1842 = vmatprep.subr.mxu0 0.0
    %1843 = vmatpush1.msra.mxu0 0.0
    %1844 = vmatprep.subr.mxu0 0.0
    %1845 = vmatpush1.msra.mxu0 0.0
    %1846 = vmatprep.subr.mxu0 0.0
    %1847 = vmatpush1.msra.mxu0 0.0
    %1848 = vmatprep.subr.mxu0 0.0
    %1849 = vmatpush1.msra.mxu0 0.0
    %1850 = vmatprep.subr.mxu0 0.0
    %1851 = vmatpush1.msra.mxu0 0.0
    %1852 = vmatprep.subr.mxu0 0.0
    %1853 = vmatpush1.msra.mxu0 0.0
    %1854 = vmatprep.subr.mxu0 0.0
    %1855 = vmatpush1.msra.mxu0 0.0
    %1856 = vmatprep.subr.mxu0 0.0
    %1857 = vmatpush1.msra.mxu0 0.0
    %1858 = vmatprep.subr.mxu0 0.0
    %1859 = vmatpush1.msra.mxu0 0.0
    %1860 = vmatprep.subr.mxu0 0.0
    %1861 = vmatpush1.msra.mxu0 0.0
    %1862 = vmatprep.subr.mxu0 0.0
    %1863 = vmatpush1.msra.mxu0 0.0
    %1864 = vmatprep.mubr.f32.mxu0 0.0
    %v1865 = vand.u32 %v1279, 4294901760
    %v1866 = vsub.f32 %v1279, %v1865
    %v1867 = vand.u32 %v1866, 4294901760
    %1868 = vmatmul.mubr.f32.gmra.mrb[0].mxu0 %v1867
    %v1869 = vpop.f32.mrb[0].mxu0
    %v1870 = vadd.f32 %v1764, %v1869
    %v1871 = vpop.f32.mrb[0].mxu0
    %v1872 = vadd.f32 %v1766, %v1871
    %1873 = vdwg.mxu0
    %v1874 = vand.u32 %v1247, 4294901760
    %v1875 = vsub.f32 %v1247, %v1874
    %v1876 = vand.u32 %v1875, 4294901760
    %1877 = vmatprep.subr.mxu0 %v1876
    %v1878 = vand.u32 %v1246, 4294901760
    %v1879 = vsub.f32 %v1246, %v1878
    %v1880 = vand.u32 %v1879, 4294901760
    %1881 = vmatpush1.msra.mxu0 %v1880
    %v1882 = vand.u32 %v1249, 4294901760
    %v1883 = vsub.f32 %v1249, %v1882
    %v1884 = vand.u32 %v1883, 4294901760
    %1885 = vmatprep.subr.mxu0 %v1884
    %v1886 = vand.u32 %v1248, 4294901760
    %v1887 = vsub.f32 %v1248, %v1886
    %v1888 = vand.u32 %v1887, 4294901760
    %1889 = vmatpush1.msra.mxu0 %v1888
    %v1890 = vand.u32 %v1251, 4294901760
    %v1891 = vsub.f32 %v1251, %v1890
    %v1892 = vand.u32 %v1891, 4294901760
    %1893 = vmatprep.subr.mxu0 %v1892
    %v1894 = vand.u32 %v1250, 4294901760
    %v1895 = vsub.f32 %v1250, %v1894
    %v1896 = vand.u32 %v1895, 4294901760
    %1897 = vmatpush1.msra.mxu0 %v1896
    %v1898 = vand.u32 %v1253, 4294901760
    %v1899 = vsub.f32 %v1253, %v1898
    %v1900 = vand.u32 %v1899, 4294901760
    %1901 = vmatprep.subr.mxu0 %v1900
    %v1902 = vand.u32 %v1252, 4294901760
    %v1903 = vsub.f32 %v1252, %v1902
    %v1904 = vand.u32 %v1903, 4294901760
    %1905 = vmatpush1.msra.mxu0 %v1904
    %v1906 = vand.u32 %v1255, 4294901760
    %v1907 = vsub.f32 %v1255, %v1906
    %v1908 = vand.u32 %v1907, 4294901760
    %1909 = vmatprep.subr.mxu0 %v1908
    %v1910 = vand.u32 %v1254, 4294901760
    %v1911 = vsub.f32 %v1254, %v1910
    %v1912 = vand.u32 %v1911, 4294901760
    %1913 = vmatpush1.msra.mxu0 %v1912
    %v1914 = vand.u32 %v1257, 4294901760
    %v1915 = vsub.f32 %v1257, %v1914
    %v1916 = vand.u32 %v1915, 4294901760
    %1917 = vmatprep.subr.mxu0 %v1916
    %v1918 = vand.u32 %v1256, 4294901760
    %v1919 = vsub.f32 %v1256, %v1918
    %v1920 = vand.u32 %v1919, 4294901760
    %1921 = vmatpush1.msra.mxu0 %v1920
    %v1922 = vand.u32 %v1259, 4294901760
    %v1923 = vsub.f32 %v1259, %v1922
    %v1924 = vand.u32 %v1923, 4294901760
    %1925 = vmatprep.subr.mxu0 %v1924
    %v1926 = vand.u32 %v1258, 4294901760
    %v1927 = vsub.f32 %v1258, %v1926
    %v1928 = vand.u32 %v1927, 4294901760
    %1929 = vmatpush1.msra.mxu0 %v1928
    %v1930 = vand.u32 %v1261, 4294901760
    %v1931 = vsub.f32 %v1261, %v1930
    %v1932 = vand.u32 %v1931, 4294901760
    %1933 = vmatprep.subr.mxu0 %v1932
    %v1934 = vand.u32 %v1260, 4294901760
    %v1935 = vsub.f32 %v1260, %v1934
    %v1936 = vand.u32 %v1935, 4294901760
    %1937 = vmatpush1.msra.mxu0 %v1936
    %v1938 = vand.u32 %v1263, 4294901760
    %v1939 = vsub.f32 %v1263, %v1938
    %v1940 = vand.u32 %v1939, 4294901760
    %1941 = vmatprep.subr.mxu0 %v1940
    %v1942 = vand.u32 %v1262, 4294901760
    %v1943 = vsub.f32 %v1262, %v1942
    %v1944 = vand.u32 %v1943, 4294901760
    %1945 = vmatpush1.msra.mxu0 %v1944
    %v1946 = vand.u32 %v1265, 4294901760
    %v1947 = vsub.f32 %v1265, %v1946
    %v1948 = vand.u32 %v1947, 4294901760
    %1949 = vmatprep.subr.mxu0 %v1948
    %v1950 = vand.u32 %v1264, 4294901760
    %v1951 = vsub.f32 %v1264, %v1950
    %v1952 = vand.u32 %v1951, 4294901760
    %1953 = vmatpush1.msra.mxu0 %v1952
    %v1954 = vand.u32 %v1267, 4294901760
    %v1955 = vsub.f32 %v1267, %v1954
    %v1956 = vand.u32 %v1955, 4294901760
    %1957 = vmatprep.subr.mxu0 %v1956
    %v1958 = vand.u32 %v1266, 4294901760
    %v1959 = vsub.f32 %v1266, %v1958
    %v1960 = vand.u32 %v1959, 4294901760
    %1961 = vmatpush1.msra.mxu0 %v1960
    %v1962 = vand.u32 %v1269, 4294901760
    %v1963 = vsub.f32 %v1269, %v1962
    %v1964 = vand.u32 %v1963, 4294901760
    %1965 = vmatprep.subr.mxu0 %v1964
    %v1966 = vand.u32 %v1268, 4294901760
    %v1967 = vsub.f32 %v1268, %v1966
    %v1968 = vand.u32 %v1967, 4294901760
    %1969 = vmatpush1.msra.mxu0 %v1968
    %v1970 = vand.u32 %v1271, 4294901760
    %v1971 = vsub.f32 %v1271, %v1970
    %v1972 = vand.u32 %v1971, 4294901760
    %1973 = vmatprep.subr.mxu0 %v1972
    %v1974 = vand.u32 %v1270, 4294901760
    %v1975 = vsub.f32 %v1270, %v1974
    %v1976 = vand.u32 %v1975, 4294901760
    %1977 = vmatpush1.msra.mxu0 %v1976
    %v1978 = vand.u32 %v1273, 4294901760
    %v1979 = vsub.f32 %v1273, %v1978
    %v1980 = vand.u32 %v1979, 4294901760
    %1981 = vmatprep.subr.mxu0 %v1980
    %v1982 = vand.u32 %v1272, 4294901760
    %v1983 = vsub.f32 %v1272, %v1982
    %v1984 = vand.u32 %v1983, 4294901760
    %1985 = vmatpush1.msra.mxu0 %v1984
    %v1986 = vand.u32 %v1275, 4294901760
    %v1987 = vsub.f32 %v1275, %v1986
    %v1988 = vand.u32 %v1987, 4294901760
    %1989 = vmatprep.subr.mxu0 %v1988
    %v1990 = vand.u32 %v1274, 4294901760
    %v1991 = vsub.f32 %v1274, %v1990
    %v1992 = vand.u32 %v1991, 4294901760
    %1993 = vmatpush1.msra.mxu0 %v1992
    %v1994 = vand.u32 %v1277, 4294901760
    %v1995 = vsub.f32 %v1277, %v1994
    %v1996 = vand.u32 %v1995, 4294901760
    %1997 = vmatprep.subr.mxu0 %v1996
    %v1998 = vand.u32 %v1276, 4294901760
    %v1999 = vsub.f32 %v1276, %v1998
    %v2000 = vand.u32 %v1999, 4294901760
    %2001 = vmatpush1.msra.mxu0 %v2000
    %2002 = vmatprep.subr.mxu0 0.0
    %2003 = vmatpush1.msra.mxu0 0.0
    %2004 = vmatprep.subr.mxu0 0.0
    %2005 = vmatpush1.msra.mxu0 0.0
    %2006 = vmatprep.subr.mxu0 0.0
    %2007 = vmatpush1.msra.mxu0 0.0
    %2008 = vmatprep.subr.mxu0 0.0
    %2009 = vmatpush1.msra.mxu0 0.0
    %2010 = vmatprep.subr.mxu0 0.0
    %2011 = vmatpush1.msra.mxu0 0.0
    %2012 = vmatprep.subr.mxu0 0.0
    %2013 = vmatpush1.msra.mxu0 0.0
    %2014 = vmatprep.subr.mxu0 0.0
    %2015 = vmatpush1.msra.mxu0 0.0
    %2016 = vmatprep.subr.mxu0 0.0
    %2017 = vmatpush1.msra.mxu0 0.0
    %2018 = vmatprep.subr.mxu0 0.0
    %2019 = vmatpush1.msra.mxu0 0.0
    %2020 = vmatprep.subr.mxu0 0.0
    %2021 = vmatpush1.msra.mxu0 0.0
    %2022 = vmatprep.subr.mxu0 0.0
    %2023 = vmatpush1.msra.mxu0 0.0
    %2024 = vmatprep.subr.mxu0 0.0
    %2025 = vmatpush1.msra.mxu0 0.0
    %2026 = vmatprep.subr.mxu0 0.0
    %2027 = vmatpush1.msra.mxu0 0.0
    %2028 = vmatprep.subr.mxu0 0.0
    %2029 = vmatpush1.msra.mxu0 0.0
    %2030 = vmatprep.subr.mxu0 0.0
    %2031 = vmatpush1.msra.mxu0 0.0
    %2032 = vmatprep.subr.mxu0 0.0
    %2033 = vmatpush1.msra.mxu0 0.0
    %2034 = vmatprep.mubr.f32.mxu0 0.0
    %v2035 = vand.u32 %v1279, 4294901760
    %2036 = vmatmul.mubr.f32.gmra.mrb[0].mxu0 %v2035
    %v2037 = vpop.f32.mrb[0].mxu0
    %v2038 = vadd.f32 %v1870, %v2037
    %v2039 = vpop.f32.mrb[0].mxu0
    %v2040 = vadd.f32 %v1872, %v2039
    %2041 = vdwg.mxu0
    %v2042 = vand.u32 %v1247, 4294901760
    %2043 = vmatprep.subr.mxu0 %v2042
    %v2044 = vand.u32 %v1246, 4294901760
    %2045 = vmatpush1.msra.mxu0 %v2044
    %v2046 = vand.u32 %v1249, 4294901760
    %2047 = vmatprep.subr.mxu0 %v2046
    %v2048 = vand.u32 %v1248, 4294901760
    %2049 = vmatpush1.msra.mxu0 %v2048
    %v2050 = vand.u32 %v1251, 4294901760
    %2051 = vmatprep.subr.mxu0 %v2050
    %v2052 = vand.u32 %v1250, 4294901760
    %2053 = vmatpush1.msra.mxu0 %v2052
    %v2054 = vand.u32 %v1253, 4294901760
    %2055 = vmatprep.subr.mxu0 %v2054
    %v2056 = vand.u32 %v1252, 4294901760
    %2057 = vmatpush1.msra.mxu0 %v2056
    %v2058 = vand.u32 %v1255, 4294901760
    %2059 = vmatprep.subr.mxu0 %v2058
    %v2060 = vand.u32 %v1254, 4294901760
    %2061 = vmatpush1.msra.mxu0 %v2060
    %v2062 = vand.u32 %v1257, 4294901760
    %2063 = vmatprep.subr.mxu0 %v2062
    %v2064 = vand.u32 %v1256, 4294901760
    %2065 = vmatpush1.msra.mxu0 %v2064
    %v2066 = vand.u32 %v1259, 4294901760
    %2067 = vmatprep.subr.mxu0 %v2066
    %v2068 = vand.u32 %v1258, 4294901760
    %2069 = vmatpush1.msra.mxu0 %v2068
    %v2070 = vand.u32 %v1261, 4294901760
    %2071 = vmatprep.subr.mxu0 %v2070
    %v2072 = vand.u32 %v1260, 4294901760
    %2073 = vmatpush1.msra.mxu0 %v2072
    %v2074 = vand.u32 %v1263, 4294901760
    %2075 = vmatprep.subr.mxu0 %v2074
    %v2076 = vand.u32 %v1262, 4294901760
    %2077 = vmatpush1.msra.mxu0 %v2076
    %v2078 = vand.u32 %v1265, 4294901760
    %2079 = vmatprep.subr.mxu0 %v2078
    %v2080 = vand.u32 %v1264, 4294901760
    %2081 = vmatpush1.msra.mxu0 %v2080
    %v2082 = vand.u32 %v1267, 4294901760
    %2083 = vmatprep.subr.mxu0 %v2082
    %v2084 = vand.u32 %v1266, 4294901760
    %2085 = vmatpush1.msra.mxu0 %v2084
    %v2086 = vand.u32 %v1269, 4294901760
    %2087 = vmatprep.subr.mxu0 %v2086
    %v2088 = vand.u32 %v1268, 4294901760
    %2089 = vmatpush1.msra.mxu0 %v2088
    %v2090 = vand.u32 %v1271, 4294901760
    %2091 = vmatprep.subr.mxu0 %v2090
    %v2092 = vand.u32 %v1270, 4294901760
    %2093 = vmatpush1.msra.mxu0 %v2092
    %v2094 = vand.u32 %v1273, 4294901760
    %2095 = vmatprep.subr.mxu0 %v2094
    %v2096 = vand.u32 %v1272, 4294901760
    %2097 = vmatpush1.msra.mxu0 %v2096
    %v2098 = vand.u32 %v1275, 4294901760
    %2099 = vmatprep.subr.mxu0 %v2098
    %v2100 = vand.u32 %v1274, 4294901760
    %2101 = vmatpush1.msra.mxu0 %v2100
    %v2102 = vand.u32 %v1277, 4294901760
    %2103 = vmatprep.subr.mxu0 %v2102
    %v2104 = vand.u32 %v1276, 4294901760
    %2105 = vmatpush1.msra.mxu0 %v2104
    %2106 = vmatprep.subr.mxu0 0.0
    %2107 = vmatpush1.msra.mxu0 0.0
    %2108 = vmatprep.subr.mxu0 0.0
    %2109 = vmatpush1.msra.mxu0 0.0
    %2110 = vmatprep.subr.mxu0 0.0
    %2111 = vmatpush1.msra.mxu0 0.0
    %2112 = vmatprep.subr.mxu0 0.0
    %2113 = vmatpush1.msra.mxu0 0.0
    %2114 = vmatprep.subr.mxu0 0.0
    %2115 = vmatpush1.msra.mxu0 0.0
    %2116 = vmatprep.subr.mxu0 0.0
    %2117 = vmatpush1.msra.mxu0 0.0
    %2118 = vmatprep.subr.mxu0 0.0
    %2119 = vmatpush1.msra.mxu0 0.0
    %2120 = vmatprep.subr.mxu0 0.0
    %2121 = vmatpush1.msra.mxu0 0.0
    %2122 = vmatprep.subr.mxu0 0.0
    %2123 = vmatpush1.msra.mxu0 0.0
    %2124 = vmatprep.subr.mxu0 0.0
    %2125 = vmatpush1.msra.mxu0 0.0
    %2126 = vmatprep.subr.mxu0 0.0
    %2127 = vmatpush1.msra.mxu0 0.0
    %2128 = vmatprep.subr.mxu0 0.0
    %2129 = vmatpush1.msra.mxu0 0.0
    %2130 = vmatprep.subr.mxu0 0.0
    %2131 = vmatpush1.msra.mxu0 0.0
    %2132 = vmatprep.subr.mxu0 0.0
    %2133 = vmatpush1.msra.mxu0 0.0
    %2134 = vmatprep.subr.mxu0 0.0
    %2135 = vmatpush1.msra.mxu0 0.0
    %2136 = vmatprep.subr.mxu0 0.0
    %2137 = vmatpush1.msra.mxu0 0.0
    %2138 = vmatprep.mubr.f32.mxu0 0.0
    %v2139 = vand.u32 %v1279, 4294901760
    %2140 = vmatmul.mubr.f32.gmra.mrb[0].mxu0 %v2139
    %v2141 = vpop.f32.mrb[0].mxu0
    %v2142 = vadd.f32 %v2038, %v2141
    %v2143 = vpop.f32.mrb[0].mxu0
    %v2144 = vadd.f32 %v2040, %v2143
    %2145 = vdwg.mxu0
    %2146 = vst [vmem:[#allocation10] sm:$0xff] %v2142
    %2147 = vst [vmem:[#allocation10 + $0x8] sm:$0xff] %v2144
    // Predicated region
    $region46: #{tpu_custom_call.1} parent=1 // pred_check
      _
    $region47: #{tpu_custom_call.1} parent=1 // pred_check_branch
      %2149 = sbr.rel (0) target = $region49
    $region48: #{tpu_custom_call.1} parent=1 // pred_region
      %s2151 = ssub.s32 256, 256
      %2152 = vsyncadd [#allocation4], %s2151
      %s2154 = sshll.u32 [#allocation10], 4
      %s2155 = int_to_ptr.vmem [resolvable:$true] %s2154
      %2157 = dma.vmem_to_hbm [thread:$0]  %s2155, 256, %s7, [#allocation4]
    $region49: #{tpu_custom_call.1} parent=1 // pred_fallthru
      _
    // Predicated region
    $region50: #{tpu_custom_call.1} parent=1 // pred_check
      _
    $region51: #{tpu_custom_call.1} parent=1 // pred_check_branch
      %2159 = sbr.rel (0) target = $region53
    $region52: #{tpu_custom_call.1} parent=1 // pred_region
      %2160 = dma.done [#allocation4], 256
    $region53: #{tpu_custom_call.1} parent=1 // pred_fallthru
      _
    %2161 = vsyncpa [#allocation3], 1
    %2162 = vsyncpa [#allocation6], 1
    %2163 = vsyncpa [#allocation9], 1
    %2164 = vsyncpa [#allocation4], 1

// kernel: tpu_custom_call.1
$region0: #{tpu_custom_call.1}
  #allocation0 [shape = 'u32[]', space=smem, size = 0x4, offset = 0x4, fixed_abs, tag = 'smem constant byte address 0x4 - core index']
  #allocation1 [shape = 'u32[144,128]{1,0:T(1,128)}', space=vmem, size = 0x12000, scoped, tag = 'internal scratch']
  %s0 = inlined_call_operand.hbm [shape: f32[8,32], index: 0, kind: input, shape index: {}]
  %s1 = inlined_call_operand.hbm [shape: f32[32,128], index: 1, kind: input, shape index: {}]
  %s2 = inlined_call_operand.vmem [shape: f32[1,128], index: 2, kind: input, shape index: {}]
  %s3 = inlined_call_operand.hbm [shape: f32[128,128], index: 3, kind: input, shape index: {}]
  %s4 = inlined_call_operand.vmem [shape: f32[1,128], index: 4, kind: input, shape index: {}]
  %s5 = inlined_call_operand.hbm [shape: f32[128,256], index: 5, kind: input, shape index: {}]
  %s6 = inlined_call_operand.vmem [shape: f32[1,256], index: 6, kind: input, shape index: {}]
  %s7 = inlined_call_operand.hbm [shape: f32[8,256], index: 7, kind: output, shape index: {}]
  %s8 = sld [smem:[#allocation0]]
  $region54: #{tpu_custom_call.1} parent=0
    _
  %s10 = ssub.s32 1, %s8
  %s11 = scalar_select 0, %s10, %s8
  $region1: #{tpu_custom_call.1} parent=0
    #allocation2 [shape = 'u8[4096]{0}', space=vmem, size = 0x1000, scoped, tag = 'input window, operand 0, single buffered']
    #allocation3 [shape = 's32[1]{0}', space=sflag, size = 0x4, scoped, tag = 'scoped memory for tpu_custom_call.1']
    #allocation4 [shape = 's32[1]{0}', space=sflag, size = 0x4, scoped, tag = 'scoped memory for tpu_custom_call.1']
    #allocation5 [shape = 'u8[16384]{0}', space=vmem, size = 0x4000, scoped, tag = 'input window, operand 1, single buffered']
    #allocation6 [shape = 's32[1]{0}', space=sflag, size = 0x4, scoped, tag = 'scoped memory for tpu_custom_call.1']
    #allocation7 [shape = 'u8[65536]{0}', space=vmem, size = 0x10000, scoped, tag = 'input window, operand 3, single buffered']
    #allocation8 [shape = 'u8[131072]{0}', space=vmem, size = 0x20000, scoped, tag = 'input window, operand 5, single buffered']
    #allocation9 [shape = 's32[1]{0}', space=sflag, size = 0x4, scoped, tag = 'scoped memory for tpu_custom_call.1']
    #allocation10 [shape = 'u8[8192]{0}', space=vmem, size = 0x2000, scoped, tag = 'output window, operand 0, single buffered']
    %12 = vsyncpa [#allocation3], 0
    %13 = vsyncpa [#allocation6], 0
    %14 = vsyncpa [#allocation9], 0
    %15 = vsyncpa [#allocation4], 0
    // Predicated region
    $region2: #{tpu_custom_call.1} parent=1 // pred_check
      _
    $region3: #{tpu_custom_call.1} parent=1 // pred_check_branch
      %17 = sbr.rel (0) target = $region5
    $region4: #{tpu_custom_call.1} parent=1 // pred_region
      %s19 = ssub.s32 128, 128
      %20 = vsyncadd [#allocation3], %s19
      %s22 = sshll.u32 [#allocation2], 4
      %s23 = int_to_ptr.vmem [resolvable:$true] %s22
      %25 = dma.hbm_to_vmem [thread:$0]  %s0, 128, %s23, [#allocation3]
    $region5: #{tpu_custom_call.1} parent=1 // pred_fallthru
      _
    // Predicated region
    $region6: #{tpu_custom_call.1} parent=1 // pred_check
      _
    $region7: #{tpu_custom_call.1} parent=1 // pred_check_branch
      %27 = sbr.rel (0) target = $region9
    $region8: #{tpu_custom_call.1} parent=1 // pred_region
      %s29 = ssub.s32 512, 512
      %30 = vsyncadd [#allocation6], %s29
      %s31 = sshll.u32 [#allocation5], 4
      %s32 = int_to_ptr.vmem [resolvable:$true] %s31
      %37 = dma.hbm_to_vmem [thread:$0]  %s1, 512, %s32, [#allocation6], 128, 128, 8
    $region9: #{tpu_custom_call.1} parent=1 // pred_fallthru
      _
    // Predicated region
    $region10: #{tpu_custom_call.1} parent=1 // pred_check
      _
    $region11: #{tpu_custom_call.1} parent=1 // pred_check_branch
      %39 = sbr.rel (0) target = $region13
    $region12: #{tpu_custom_call.1} parent=1 // pred_region
      _
    $region13: #{tpu_custom_call.1} parent=1 // pred_fallthru
      _
    // Predicated region
    $region14: #{tpu_custom_call.1} parent=1 // pred_check
      _
    $region15: #{tpu_custom_call.1} parent=1 // pred_check_branch
      %41 = sbr.rel (0) target = $region17
    $region16: #{tpu_custom_call.1} parent=1 // pred_region
      %s43 = ssub.s32 2048, 2048
      %44 = vsyncadd [#allocation6], %s43
      %s45 = sshll.u32 [#allocation7], 4
      %s46 = int_to_ptr.vmem [resolvable:$true] %s45
      %51 = dma.hbm_to_vmem [thread:$0]  %s3, 2048, %s46, [#allocation6], 128, 128, 8
    $region17: #{tpu_custom_call.1} parent=1 // pred_fallthru
      _
    // Predicated region
    $region18: #{tpu_custom_call.1} parent=1 // pred_check
      _
    $region19: #{tpu_custom_call.1} parent=1 // pred_check_branch
      %53 = sbr.rel (0) target = $region21
    $region20: #{tpu_custom_call.1} parent=1 // pred_region
      _
    $region21: #{tpu_custom_call.1} parent=1 // pred_fallthru
      _
    // Predicated region
    $region22: #{tpu_custom_call.1} parent=1 // pred_check
      _
    $region23: #{tpu_custom_call.1} parent=1 // pred_check_branch
      %55 = sbr.rel (0) target = $region25
    $region24: #{tpu_custom_call.1} parent=1 // pred_region
      %s57 = ssub.s32 4096, 4096
      %58 = vsyncadd [#allocation9], %s57
      %s59 = sshll.u32 [#allocation8], 4
      %s60 = int_to_ptr.vmem [resolvable:$true] %s59
      %65 = dma.hbm_to_vmem [thread:$0]  %s5, 4096, %s60, [#allocation9], 256, 256, 16
    $region25: #{tpu_custom_call.1} parent=1 // pred_fallthru
      _
    // Predicated region
    $region26: #{tpu_custom_call.1} parent=1 // pred_check
      _
    $region27: #{tpu_custom_call.1} parent=1 // pred_check_branch
      %67 = sbr.rel (0) target = $region29
    $region28: #{tpu_custom_call.1} parent=1 // pred_region
      _
    $region29: #{tpu_custom_call.1} parent=1 // pred_fallthru
      _
    // Predicated region
    $region30: #{tpu_custom_call.1} parent=1 // pred_check
      _
    $region31: #{tpu_custom_call.1} parent=1 // pred_check_branch
      %69 = sbr.rel (0) target = $region33
    $region32: #{tpu_custom_call.1} parent=1 // pred_region
      %70 = dma.done [#allocation3], 128
    $region33: #{tpu_custom_call.1} parent=1 // pred_fallthru
      _
    // Predicated region
    $region34: #{tpu_custom_call.1} parent=1 // pred_check
      _
    $region35: #{tpu_custom_call.1} parent=1 // pred_check_branch
      %72 = sbr.rel (0) target = $region37
    $region36: #{tpu_custom_call.1} parent=1 // pred_region
      %73 = dma.done [#allocation6], 512
    $region37: #{tpu_custom_call.1} parent=1 // pred_fallthru
      _
    // Predicated region
    $region38: #{tpu_custom_call.1} parent=1 // pred_check
      _
    $region39: #{tpu_custom_call.1} parent=1 // pred_check_branch
      %75 = sbr.rel (0) target = $region41
    $region40: #{tpu_custom_call.1} parent=1 // pred_region
      %76 = dma.done [#allocation6], 2048
    $region41: #{tpu_custom_call.1} parent=1 // pred_fallthru
      _
    // Predicated region
    $region42: #{tpu_custom_call.1} parent=1 // pred_check
      _
    $region43: #{tpu_custom_call.1} parent=1 // pred_check_branch
      %78 = sbr.rel (0) target = $region45
    $region44: #{tpu_custom_call.1} parent=1 // pred_region
      %79 = dma.done [#allocation9], 4096
    $region45: #{tpu_custom_call.1} parent=1 // pred_fallthru
      _
    %v80 = vld [vmem:[#allocation2] sm:$0xff]
    %v81 = vld [vmem:[#allocation5] sm:$0xff]
    %v82 = vld [vmem:[#allocation5 + $0x8] sm:$0xff]
    %v83 = vld [vmem:[#allocation5 + $0x10] sm:$0xff]
    %v84 = vld [vmem:[#allocation5 + $0x18] sm:$0xff]
    %v85 = vld [vmem:[%s2] sm:$0x1]
    %v87 = vlaneseq
    %v88 = vshrl.u32 %v87, 7
    %v89 = vsub.s32 0, %v88
    %v90 = vrot.slane %v85, %v89
    %vm92 = vcmask 261120
    %v94 = vsel %vm92, %v80, 0
    %96 = vmatprep.subr.mxu0 0.0
    %v97 = vand.u32 %v81, 4294901760
    %98 = vmatpush1.msra.mxu0 %v97
    %99 = vmatprep.subr.mxu0 0.0
    %v100 = vand.u32 %v82, 4294901760
    %101 = vmatpush1.msra.mxu0 %v100
    %102 = vmatprep.subr.mxu0 0.0
    %v103 = vand.u32 %v83, 4294901760
    %104 = vmatpush1.msra.mxu0 %v103
    %105 = vmatprep.subr.mxu0 0.0
    %v106 = vand.u32 %v84, 4294901760
    %107 = vmatpush1.msra.mxu0 %v106
    %108 = vmatprep.subr.mxu0 0.0
    %109 = vmatpush1.msra.mxu0 0.0
    %110 = vmatprep.subr.mxu0 0.0
    %111 = vmatpush1.msra.mxu0 0.0
    %112 = vmatprep.subr.mxu0 0.0
    %113 = vmatpush1.msra.mxu0 0.0
    %114 = vmatprep.subr.mxu0 0.0
    %115 = vmatpush1.msra.mxu0 0.0
    %116 = vmatprep.subr.mxu0 0.0
    %117 = vmatpush1.msra.mxu0 0.0
    %118 = vmatprep.subr.mxu0 0.0
    %119 = vmatpush1.msra.mxu0 0.0
    %120 = vmatprep.subr.mxu0 0.0
    %121 = vmatpush1.msra.mxu0 0.0
    %122 = vmatprep.subr.mxu0 0.0
    %123 = vmatpush1.msra.mxu0 0.0
    %124 = vmatprep.subr.mxu0 0.0
    %125 = vmatpush1.msra.mxu0 0.0
    %126 = vmatprep.subr.mxu0 0.0
    %127 = vmatpush1.msra.mxu0 0.0
    %128 = vmatprep.subr.mxu0 0.0
    %129 = vmatpush1.msra.mxu0 0.0
    %130 = vmatprep.subr.mxu0 0.0
    %131 = vmatpush1.msra.mxu0 0.0
    %132 = vmatprep.subr.mxu0 0.0
    %133 = vmatpush1.msra.mxu0 0.0
    %134 = vmatprep.subr.mxu0 0.0
    %135 = vmatpush1.msra.mxu0 0.0
    %136 = vmatprep.subr.mxu0 0.0
    %137 = vmatpush1.msra.mxu0 0.0
    %138 = vmatprep.subr.mxu0 0.0
    %139 = vmatpush1.msra.mxu0 0.0
    %140 = vmatprep.subr.mxu0 0.0
    %141 = vmatpush1.msra.mxu0 0.0
    %142 = vmatprep.subr.mxu0 0.0
    %143 = vmatpush1.msra.mxu0 0.0
    %144 = vmatprep.subr.mxu0 0.0
    %145 = vmatpush1.msra.mxu0 0.0
    %146 = vmatprep.subr.mxu0 0.0
    %147 = vmatpush1.msra.mxu0 0.0
    %148 = vmatprep.subr.mxu0 0.0
    %149 = vmatpush1.msra.mxu0 0.0
    %150 = vmatprep.subr.mxu0 0.0
    %151 = vmatpush1.msra.mxu0 0.0
    %152 = vmatprep.subr.mxu0 0.0
    %153 = vmatpush1.msra.mxu0 0.0
    %154 = vmatprep.subr.mxu0 0.0
    %155 = vmatpush1.msra.mxu0 0.0
    %156 = vmatprep.subr.mxu0 0.0
    %157 = vmatpush1.msra.mxu0 0.0
    %158 = vmatprep.subr.mxu0 0.0
    %159 = vmatpush1.msra.mxu0 0.0
    %160 = vmatprep.subr.mxu0 0.0
    %161 = vmatpush1.msra.mxu0 0.0
    %162 = vmatprep.subr.mxu0 0.0
    %163 = vmatpush1.msra.mxu0 0.0
    %164 = vmatprep.mubr.f32.mxu0 0.0
    %v165 = vand.u32 %v94, 4294901760
    %v166 = vsub.f32 %v94, %v165
    %v167 = vand.u32 %v166, 4294901760
    %v168 = vsub.f32 %v166, %v167
    %v169 = vand.u32 %v168, 4294901760
    %170 = vmatmul.mubr.f32.gmra.mrb[0].mxu0 %v169
    %v171 = vpop.f32.mrb[0].mxu0
    %v172 = vadd.f32 %v90, %v171
    %v173 = vpop.f32.mrb[0].mxu0
    %174 = vdwg.mxu0
    %175 = vmatprep.subr.mxu0 0.0
    %v176 = vand.u32 %v81, 4294901760
    %v177 = vsub.f32 %v81, %v176
    %v178 = vand.u32 %v177, 4294901760
    %v179 = vsub.f32 %v177, %v178
    %v180 = vand.u32 %v179, 4294901760
    %181 = vmatpush1.msra.mxu0 %v180
    %182 = vmatprep.subr.mxu0 0.0
    %v183 = vand.u32 %v82, 4294901760
    %v184 = vsub.f32 %v82, %v183
    %v185 = vand.u32 %v184, 4294901760
    %v186 = vsub.f32 %v184, %v185
    %v187 = vand.u32 %v186, 4294901760
    %188 = vmatpush1.msra.mxu0 %v187
    %189 = vmatprep.subr.mxu0 0.0
    %v190 = vand.u32 %v83, 4294901760
    %v191 = vsub.f32 %v83, %v190
    %v192 = vand.u32 %v191, 4294901760
    %v193 = vsub.f32 %v191, %v192
    %v194 = vand.u32 %v193, 4294901760
    %195 = vmatpush1.msra.mxu0 %v194
    %196 = vmatprep.subr.mxu0 0.0
    %v197 = vand.u32 %v84, 4294901760
    %v198 = vsub.f32 %v84, %v197
    %v199 = vand.u32 %v198, 4294901760
    %v200 = vsub.f32 %v198, %v199
    %v201 = vand.u32 %v200, 4294901760
    %202 = vmatpush1.msra.mxu0 %v201
    %203 = vmatprep.subr.mxu0 0.0
    %204 = vmatpush1.msra.mxu0 0.0
    %205 = vmatprep.subr.mxu0 0.0
    %206 = vmatpush1.msra.mxu0 0.0
    %207 = vmatprep.subr.mxu0 0.0
    %208 = vmatpush1.msra.mxu0 0.0
    %209 = vmatprep.subr.mxu0 0.0
    %210 = vmatpush1.msra.mxu0 0.0
    %211 = vmatprep.subr.mxu0 0.0
    %212 = vmatpush1.msra.mxu0 0.0
    %213 = vmatprep.subr.mxu0 0.0
    %214 = vmatpush1.msra.mxu0 0.0
    %215 = vmatprep.subr.mxu0 0.0
    %216 = vmatpush1.msra.mxu0 0.0
    %217 = vmatprep.subr.mxu0 0.0
    %218 = vmatpush1.msra.mxu0 0.0
    %219 = vmatprep.subr.mxu0 0.0
    %220 = vmatpush1.msra.mxu0 0.0
    %221 = vmatprep.subr.mxu0 0.0
    %222 = vmatpush1.msra.mxu0 0.0
    %223 = vmatprep.subr.mxu0 0.0
    %224 = vmatpush1.msra.mxu0 0.0
    %225 = vmatprep.subr.mxu0 0.0
    %226 = vmatpush1.msra.mxu0 0.0
    %227 = vmatprep.subr.mxu0 0.0
    %228 = vmatpush1.msra.mxu0 0.0
    %229 = vmatprep.subr.mxu0 0.0
    %230 = vmatpush1.msra.mxu0 0.0
    %231 = vmatprep.subr.mxu0 0.0
    %232 = vmatpush1.msra.mxu0 0.0
    %233 = vmatprep.subr.mxu0 0.0
    %234 = vmatpush1.msra.mxu0 0.0
    %235 = vmatprep.subr.mxu0 0.0
    %236 = vmatpush1.msra.mxu0 0.0
    %237 = vmatprep.subr.mxu0 0.0
    %238 = vmatpush1.msra.mxu0 0.0
    %239 = vmatprep.subr.mxu0 0.0
    %240 = vmatpush1.msra.mxu0 0.0
    %241 = vmatprep.subr.mxu0 0.0
    %242 = vmatpush1.msra.mxu0 0.0
    %243 = vmatprep.subr.mxu0 0.0
    %244 = vmatpush1.msra.mxu0 0.0
    %245 = vmatprep.subr.mxu0 0.0
    %246 = vmatpush1.msra.mxu0 0.0
    %247 = vmatprep.subr.mxu0 0.0
    %248 = vmatpush1.msra.mxu0 0.0
    %249 = vmatprep.subr.mxu0 0.0
    %250 = vmatpush1.msra.mxu0 0.0
    %251 = vmatprep.subr.mxu0 0.0
    %252 = vmatpush1.msra.mxu0 0.0
    %253 = vmatprep.subr.mxu0 0.0
    %254 = vmatpush1.msra.mxu0 0.0
    %255 = vmatprep.subr.mxu0 0.0
    %256 = vmatpush1.msra.mxu0 0.0
    %257 = vmatprep.subr.mxu0 0.0
    %258 = vmatpush1.msra.mxu0 0.0
    %259 = vmatprep.mubr.f32.mxu0 0.0
    %v260 = vand.u32 %v94, 4294901760
    %261 = vmatmul.mubr.f32.gmra.mrb[0].mxu0 %v260
    %v262 = vpop.f32.mrb[0].mxu0
    %v263 = vadd.f32 %v172, %v262
    %v264 = vpop.f32.mrb[0].mxu0
    %265 = vdwg.mxu0
    %266 = vmatprep.subr.mxu0 0.0
    %v267 = vand.u32 %v81, 4294901760
    %v268 = vsub.f32 %v81, %v267
    %269 = vmatpush1.msra.mxu0 %v268
    %270 = vmatprep.subr.mxu0 0.0
    %v271 = vand.u32 %v82, 4294901760
    %v272 = vsub.f32 %v82, %v271
    %273 = vmatpush1.msra.mxu0 %v272
    %274 = vmatprep.subr.mxu0 0.0
    %v275 = vand.u32 %v83, 4294901760
    %v276 = vsub.f32 %v83, %v275
    %277 = vmatpush1.msra.mxu0 %v276
    %278 = vmatprep.subr.mxu0 0.0
    %v279 = vand.u32 %v84, 4294901760
    %v280 = vsub.f32 %v84, %v279
    %281 = vmatpush1.msra.mxu0 %v280
    %282 = vmatprep.subr.mxu0 0.0
    %283 = vmatpush1.msra.mxu0 0.0
    %284 = vmatprep.subr.mxu0 0.0
    %285 = vmatpush1.msra.mxu0 0.0
    %286 = vmatprep.subr.mxu0 0.0
    %287 = vmatpush1.msra.mxu0 0.0
    %288 = vmatprep.subr.mxu0 0.0
    %289 = vmatpush1.msra.mxu0 0.0
    %290 = vmatprep.subr.mxu0 0.0
    %291 = vmatpush1.msra.mxu0 0.0
    %292 = vmatprep.subr.mxu0 0.0
    %293 = vmatpush1.msra.mxu0 0.0
    %294 = vmatprep.subr.mxu0 0.0
    %295 = vmatpush1.msra.mxu0 0.0
    %296 = vmatprep.subr.mxu0 0.0
    %297 = vmatpush1.msra.mxu0 0.0
    %298 = vmatprep.subr.mxu0 0.0
    %299 = vmatpush1.msra.mxu0 0.0
    %300 = vmatprep.subr.mxu0 0.0
    %301 = vmatpush1.msra.mxu0 0.0
    %302 = vmatprep.subr.mxu0 0.0
    %303 = vmatpush1.msra.mxu0 0.0
    %304 = vmatprep.subr.mxu0 0.0
    %305 = vmatpush1.msra.mxu0 0.0
    %306 = vmatprep.subr.mxu0 0.0
    %307 = vmatpush1.msra.mxu0 0.0
    %308 = vmatprep.subr.mxu0 0.0
    %309 = vmatpush1.msra.mxu0 0.0
    %310 = vmatprep.subr.mxu0 0.0
    %311 = vmatpush1.msra.mxu0 0.0
    %312 = vmatprep.subr.mxu0 0.0
    %313 = vmatpush1.msra.mxu0 0.0
    %314 = vmatprep.subr.mxu0 0.0
    %315 = vmatpush1.msra.mxu0 0.0
    %316 = vmatprep.subr.mxu0 0.0
    %317 = vmatpush1.msra.mxu0 0.0
    %318 = vmatprep.subr.mxu0 0.0
    %319 = vmatpush1.msra.mxu0 0.0
    %320 = vmatprep.subr.mxu0 0.0
    %321 = vmatpush1.msra.mxu0 0.0
    %322 = vmatprep.subr.mxu0 0.0
    %323 = vmatpush1.msra.mxu0 0.0
    %324 = vmatprep.subr.mxu0 0.0
    %325 = vmatpush1.msra.mxu0 0.0
    %326 = vmatprep.subr.mxu0 0.0
    %327 = vmatpush1.msra.mxu0 0.0
    %328 = vmatprep.subr.mxu0 0.0
    %329 = vmatpush1.msra.mxu0 0.0
    %330 = vmatprep.subr.mxu0 0.0
    %331 = vmatpush1.msra.mxu0 0.0
    %332 = vmatprep.subr.mxu0 0.0
    %333 = vmatpush1.msra.mxu0 0.0
    %334 = vmatprep.subr.mxu0 0.0
    %335 = vmatpush1.msra.mxu0 0.0
    %336 = vmatprep.subr.mxu0 0.0
    %337 = vmatpush1.msra.mxu0 0.0
    %338 = vmatprep.mubr.f32.mxu0 0.0
    %v339 = vand.u32 %v94, 4294901760
    %v340 = vsub.f32 %v94, %v339
    %341 = vmatmul.mubr.f32.gmra.mrb[0].mxu0 %v340
    %v342 = vpop.f32.mrb[0].mxu0
    %v343 = vadd.f32 %v263, %v342
    %v344 = vpop.f32.mrb[0].mxu0
    %345 = vdwg.mxu0
    %346 = vmatprep.subr.mxu0 0.0
    %v347 = vand.u32 %v81, 4294901760
    %348 = vmatpush1.msra.mxu0 %v347
    %349 = vmatprep.subr.mxu0 0.0
    %v350 = vand.u32 %v82, 4294901760
    %351 = vmatpush1.msra.mxu0 %v350
    %352 = vmatprep.subr.mxu0 0.0
    %v353 = vand.u32 %v83, 4294901760
    %354 = vmatpush1.msra.mxu0 %v353
    %355 = vmatprep.subr.mxu0 0.0
    %v356 = vand.u32 %v84, 4294901760
    %357 = vmatpush1.msra.mxu0 %v356
    %358 = vmatprep.subr.mxu0 0.0
    %359 = vmatpush1.msra.mxu0 0.0
    %360 = vmatprep.subr.mxu0 0.0
    %361 = vmatpush1.msra.mxu0 0.0
    %362 = vmatprep.subr.mxu0 0.0
    %363 = vmatpush1.msra.mxu0 0.0
    %364 = vmatprep.subr.mxu0 0.0
    %365 = vmatpush1.msra.mxu0 0.0
    %366 = vmatprep.subr.mxu0 0.0
    %367 = vmatpush1.msra.mxu0 0.0
    %368 = vmatprep.subr.mxu0 0.0
    %369 = vmatpush1.msra.mxu0 0.0
    %370 = vmatprep.subr.mxu0 0.0
    %371 = vmatpush1.msra.mxu0 0.0
    %372 = vmatprep.subr.mxu0 0.0
    %373 = vmatpush1.msra.mxu0 0.0
    %374 = vmatprep.subr.mxu0 0.0
    %375 = vmatpush1.msra.mxu0 0.0
    %376 = vmatprep.subr.mxu0 0.0
    %377 = vmatpush1.msra.mxu0 0.0
    %378 = vmatprep.subr.mxu0 0.0
    %379 = vmatpush1.msra.mxu0 0.0
    %380 = vmatprep.subr.mxu0 0.0
    %381 = vmatpush1.msra.mxu0 0.0
    %382 = vmatprep.subr.mxu0 0.0
    %383 = vmatpush1.msra.mxu0 0.0
    %384 = vmatprep.subr.mxu0 0.0
    %385 = vmatpush1.msra.mxu0 0.0
    %386 = vmatprep.subr.mxu0 0.0
    %387 = vmatpush1.msra.mxu0 0.0
    %388 = vmatprep.subr.mxu0 0.0
    %389 = vmatpush1.msra.mxu0 0.0
    %390 = vmatprep.subr.mxu0 0.0
    %391 = vmatpush1.msra.mxu0 0.0
    %392 = vmatprep.subr.mxu0 0.0
    %393 = vmatpush1.msra.mxu0 0.0
    %394 = vmatprep.subr.mxu0 0.0
    %395 = vmatpush1.msra.mxu0 0.0
    %396 = vmatprep.subr.mxu0 0.0
    %397 = vmatpush1.msra.mxu0 0.0
    %398 = vmatprep.subr.mxu0 0.0
    %399 = vmatpush1.msra.mxu0 0.0
    %400 = vmatprep.subr.mxu0 0.0
    %401 = vmatpush1.msra.mxu0 0.0
    %402 = vmatprep.subr.mxu0 0.0
    %403 = vmatpush1.msra.mxu0 0.0
    %404 = vmatprep.subr.mxu0 0.0
    %405 = vmatpush1.msra.mxu0 0.0
    %406 = vmatprep.subr.mxu0 0.0
    %407 = vmatpush1.msra.mxu0 0.0
    %408 = vmatprep.subr.mxu0 0.0
    %409 = vmatpush1.msra.mxu0 0.0
    %410 = vmatprep.subr.mxu0 0.0
    %411 = vmatpush1.msra.mxu0 0.0
    %412 = vmatprep.subr.mxu0 0.0
    %413 = vmatpush1.msra.mxu0 0.0
    %414 = vmatprep.mubr.f32.mxu0 0.0
    %v415 = vand.u32 %v94, 4294901760
    %v416 = vsub.f32 %v94, %v415
    %v417 = vand.u32 %v416, 4294901760
    %418 = vmatmul.mubr.f32.gmra.mrb[0].mxu0 %v417
    %v419 = vpop.f32.mrb[0].mxu0
    %v420 = vadd.f32 %v343, %v419
    %v421 = vpop.f32.mrb[0].mxu0
    %422 = vdwg.mxu0
    %423 = vmatprep.subr.mxu0 0.0
    %v424 = vand.u32 %v81, 4294901760
    %v425 = vsub.f32 %v81, %v424
    %v426 = vand.u32 %v425, 4294901760
    %427 = vmatpush1.msra.mxu0 %v426
    %428 = vmatprep.subr.mxu0 0.0
    %v429 = vand.u32 %v82, 4294901760
    %v430 = vsub.f32 %v82, %v429
    %v431 = vand.u32 %v430, 4294901760
    %432 = vmatpush1.msra.mxu0 %v431
    %433 = vmatprep.subr.mxu0 0.0
    %v434 = vand.u32 %v83, 4294901760
    %v435 = vsub.f32 %v83, %v434
    %v436 = vand.u32 %v435, 4294901760
    %437 = vmatpush1.msra.mxu0 %v436
    %438 = vmatprep.subr.mxu0 0.0
    %v439 = vand.u32 %v84, 4294901760
    %v440 = vsub.f32 %v84, %v439
    %v441 = vand.u32 %v440, 4294901760
    %442 = vmatpush1.msra.mxu0 %v441
    %443 = vmatprep.subr.mxu0 0.0
    %444 = vmatpush1.msra.mxu0 0.0
    %445 = vmatprep.subr.mxu0 0.0
    %446 = vmatpush1.msra.mxu0 0.0
    %447 = vmatprep.subr.mxu0 0.0
    %448 = vmatpush1.msra.mxu0 0.0
    %449 = vmatprep.subr.mxu0 0.0
    %450 = vmatpush1.msra.mxu0 0.0
    %451 = vmatprep.subr.mxu0 0.0
    %452 = vmatpush1.msra.mxu0 0.0
    %453 = vmatprep.subr.mxu0 0.0
    %454 = vmatpush1.msra.mxu0 0.0
    %455 = vmatprep.subr.mxu0 0.0
    %456 = vmatpush1.msra.mxu0 0.0
    %457 = vmatprep.subr.mxu0 0.0
    %458 = vmatpush1.msra.mxu0 0.0
    %459 = vmatprep.subr.mxu0 0.0
    %460 = vmatpush1.msra.mxu0 0.0
    %461 = vmatprep.subr.mxu0 0.0
    %462 = vmatpush1.msra.mxu0 0.0
    %463 = vmatprep.subr.mxu0 0.0
    %464 = vmatpush1.msra.mxu0 0.0
    %465 = vmatprep.subr.mxu0 0.0
    %466 = vmatpush1.msra.mxu0 0.0
    %467 = vmatprep.subr.mxu0 0.0
    %468 = vmatpush1.msra.mxu0 0.0
    %469 = vmatprep.subr.mxu0 0.0
    %470 = vmatpush1.msra.mxu0 0.0
    %471 = vmatprep.subr.mxu0 0.0
    %472 = vmatpush1.msra.mxu0 0.0
    %473 = vmatprep.subr.mxu0 0.0
    %474 = vmatpush1.msra.mxu0 0.0
    %475 = vmatprep.subr.mxu0 0.0
    %476 = vmatpush1.msra.mxu0 0.0
    %477 = vmatprep.subr.mxu0 0.0
    %478 = vmatpush1.msra.mxu0 0.0
    %479 = vmatprep.subr.mxu0 0.0
    %480 = vmatpush1.msra.mxu0 0.0
    %481 = vmatprep.subr.mxu0 0.0
    %482 = vmatpush1.msra.mxu0 0.0
    %483 = vmatprep.subr.mxu0 0.0
    %484 = vmatpush1.msra.mxu0 0.0
    %485 = vmatprep.subr.mxu0 0.0
    %486 = vmatpush1.msra.mxu0 0.0
    %487 = vmatprep.subr.mxu0 0.0
    %488 = vmatpush1.msra.mxu0 0.0
    %489 = vmatprep.subr.mxu0 0.0
    %490 = vmatpush1.msra.mxu0 0.0
    %491 = vmatprep.subr.mxu0 0.0
    %492 = vmatpush1.msra.mxu0 0.0
    %493 = vmatprep.subr.mxu0 0.0
    %494 = vmatpush1.msra.mxu0 0.0
    %495 = vmatprep.subr.mxu0 0.0
    %496 = vmatpush1.msra.mxu0 0.0
    %497 = vmatprep.subr.mxu0 0.0
    %498 = vmatpush1.msra.mxu0 0.0
    %499 = vmatprep.mubr.f32.mxu0 0.0
    %v500 = vand.u32 %v94, 4294901760
    %501 = vmatmul.mubr.f32.gmra.mrb[0].mxu0 %v500
    %v502 = vpop.f32.mrb[0].mxu0
    %v503 = vadd.f32 %v420, %v502
    %v504 = vpop.f32.mrb[0].mxu0
    %505 = vdwg.mxu0
    %506 = vmatprep.subr.mxu0 0.0
    %v507 = vand.u32 %v81, 4294901760
    %508 = vmatpush1.msra.mxu0 %v507
    %509 = vmatprep.subr.mxu0 0.0
    %v510 = vand.u32 %v82, 4294901760
    %511 = vmatpush1.msra.mxu0 %v510
    %512 = vmatprep.subr.mxu0 0.0
    %v513 = vand.u32 %v83, 4294901760
    %514 = vmatpush1.msra.mxu0 %v513
    %515 = vmatprep.subr.mxu0 0.0
    %v516 = vand.u32 %v84, 4294901760
    %517 = vmatpush1.msra.mxu0 %v516
    %518 = vmatprep.subr.mxu0 0.0
    %519 = vmatpush1.msra.mxu0 0.0
    %520 = vmatprep.subr.mxu0 0.0
    %521 = vmatpush1.msra.mxu0 0.0
    %522 = vmatprep.subr.mxu0 0.0
    %523 = vmatpush1.msra.mxu0 0.0
    %524 = vmatprep.subr.mxu0 0.0
    %525 = vmatpush1.msra.mxu0 0.0
    %526 = vmatprep.subr.mxu0 0.0
    %527 = vmatpush1.msra.mxu0 0.0
    %528 = vmatprep.subr.mxu0 0.0
    %529 = vmatpush1.msra.mxu0 0.0
    %530 = vmatprep.subr.mxu0 0.0
    %531 = vmatpush1.msra.mxu0 0.0
    %532 = vmatprep.subr.mxu0 0.0
    %533 = vmatpush1.msra.mxu0 0.0
    %534 = vmatprep.subr.mxu0 0.0
    %535 = vmatpush1.msra.mxu0 0.0
    %536 = vmatprep.subr.mxu0 0.0
    %537 = vmatpush1.msra.mxu0 0.0
    %538 = vmatprep.subr.mxu0 0.0
    %539 = vmatpush1.msra.mxu0 0.0
    %540 = vmatprep.subr.mxu0 0.0
    %541 = vmatpush1.msra.mxu0 0.0
    %542 = vmatprep.subr.mxu0 0.0
    %543 = vmatpush1.msra.mxu0 0.0
    %544 = vmatprep.subr.mxu0 0.0
    %545 = vmatpush1.msra.mxu0 0.0
    %546 = vmatprep.subr.mxu0 0.0
    %547 = vmatpush1.msra.mxu0 0.0
    %548 = vmatprep.subr.mxu0 0.0
    %549 = vmatpush1.msra.mxu0 0.0
    %550 = vmatprep.subr.mxu0 0.0
    %551 = vmatpush1.msra.mxu0 0.0
    %552 = vmatprep.subr.mxu0 0.0
    %553 = vmatpush1.msra.mxu0 0.0
    %554 = vmatprep.subr.mxu0 0.0
    %555 = vmatpush1.msra.mxu0 0.0
    %556 = vmatprep.subr.mxu0 0.0
    %557 = vmatpush1.msra.mxu0 0.0
    %558 = vmatprep.subr.mxu0 0.0
    %559 = vmatpush1.msra.mxu0 0.0
    %560 = vmatprep.subr.mxu0 0.0
    %561 = vmatpush1.msra.mxu0 0.0
    %562 = vmatprep.subr.mxu0 0.0
    %563 = vmatpush1.msra.mxu0 0.0
    %564 = vmatprep.subr.mxu0 0.0
    %565 = vmatpush1.msra.mxu0 0.0
    %566 = vmatprep.subr.mxu0 0.0
    %567 = vmatpush1.msra.mxu0 0.0
    %568 = vmatprep.subr.mxu0 0.0
    %569 = vmatpush1.msra.mxu0 0.0
    %570 = vmatprep.subr.mxu0 0.0
    %571 = vmatpush1.msra.mxu0 0.0
    %572 = vmatprep.subr.mxu0 0.0
    %573 = vmatpush1.msra.mxu0 0.0
    %574 = vmatprep.mubr.f32.mxu0 0.0
    %v575 = vand.u32 %v94, 4294901760
    %576 = vmatmul.mubr.f32.gmra.mrb[0].mxu0 %v575
    %v577 = vpop.f32.mrb[0].mxu0
    %v578 = vadd.f32 %v503, %v577
    %v579 = vpop.f32.mrb[0].mxu0
    %580 = vdwg.mxu0
    %v581 = vld [vmem:[#allocation7] sm:$0xff]
    %v582 = vld [vmem:[#allocation7 + $0x8] sm:$0xff]
    %v583 = vld [vmem:[#allocation7 + $0x10] sm:$0xff]
    %v584 = vld [vmem:[#allocation7 + $0x18] sm:$0xff]
    %v585 = vld [vmem:[#allocation7 + $0x20] sm:$0xff]
    %v586 = vld [vmem:[#allocation7 + $0x28] sm:$0xff]
    %v587 = vld [vmem:[#allocation7 + $0x30] sm:$0xff]
    %v588 = vld [vmem:[#allocation7 + $0x38] sm:$0xff]
    %v589 = vld [vmem:[#allocation7 + $0x40] sm:$0xff]
    %v590 = vld [vmem:[#allocation7 + $0x48] sm:$0xff]
    %v591 = vld [vmem:[#allocation7 + $0x50] sm:$0xff]
    %v592 = vld [vmem:[#allocation7 + $0x58] sm:$0xff]
    %v593 = vld [vmem:[#allocation7 + $0x60] sm:$0xff]
    %v594 = vld [vmem:[#allocation7 + $0x68] sm:$0xff]
    %v595 = vld [vmem:[#allocation7 + $0x70] sm:$0xff]
    %v596 = vld [vmem:[#allocation7 + $0x78] sm:$0xff]
    %v597 = vld [vmem:[%s4] sm:$0x1]
    %v598 = vmax.f32 %v578, 0.0
    %v600 = vlaneseq
    %v601 = vshrl.u32 %v600, 7
    %v602 = vsub.s32 0, %v601
    %v603 = vrot.slane %v597, %v602
    %605 = vmatprep.subr.mxu0 0.0
    %v606 = vand.u32 %v581, 4294901760
    %607 = vmatpush1.msra.mxu0 %v606
    %608 = vmatprep.subr.mxu0 0.0
    %v609 = vand.u32 %v582, 4294901760
    %610 = vmatpush1.msra.mxu0 %v609
    %611 = vmatprep.subr.mxu0 0.0
    %v612 = vand.u32 %v583, 4294901760
    %613 = vmatpush1.msra.mxu0 %v612
    %614 = vmatprep.subr.mxu0 0.0
    %v615 = vand.u32 %v584, 4294901760
    %616 = vmatpush1.msra.mxu0 %v615
    %617 = vmatprep.subr.mxu0 0.0
    %v618 = vand.u32 %v585, 4294901760
    %619 = vmatpush1.msra.mxu0 %v618
    %620 = vmatprep.subr.mxu0 0.0
    %v621 = vand.u32 %v586, 4294901760
    %622 = vmatpush1.msra.mxu0 %v621
    %623 = vmatprep.subr.mxu0 0.0
    %v624 = vand.u32 %v587, 4294901760
    %625 = vmatpush1.msra.mxu0 %v624
    %626 = vmatprep.subr.mxu0 0.0
    %v627 = vand.u32 %v588, 4294901760
    %628 = vmatpush1.msra.mxu0 %v627
    %629 = vmatprep.subr.mxu0 0.0
    %v630 = vand.u32 %v589, 4294901760
    %631 = vmatpush1.msra.mxu0 %v630
    %632 = vmatprep.subr.mxu0 0.0
    %v633 = vand.u32 %v590, 4294901760
    %634 = vmatpush1.msra.mxu0 %v633
    %635 = vmatprep.subr.mxu0 0.0
    %v636 = vand.u32 %v591, 4294901760
    %637 = vmatpush1.msra.mxu0 %v636
    %638 = vmatprep.subr.mxu0 0.0
    %v639 = vand.u32 %v592, 4294901760
    %640 = vmatpush1.msra.mxu0 %v639
    %641 = vmatprep.subr.mxu0 0.0
    %v642 = vand.u32 %v593, 4294901760
    %643 = vmatpush1.msra.mxu0 %v642
    %644 = vmatprep.subr.mxu0 0.0
    %v645 = vand.u32 %v594, 4294901760
    %646 = vmatpush1.msra.mxu0 %v645
    %647 = vmatprep.subr.mxu0 0.0
    %v648 = vand.u32 %v595, 4294901760
    %649 = vmatpush1.msra.mxu0 %v648
    %650 = vmatprep.subr.mxu0 0.0
    %v651 = vand.u32 %v596, 4294901760
    %652 = vmatpush1.msra.mxu0 %v651
    %653 = vmatprep.subr.mxu0 0.0
    %654 = vmatpush1.msra.mxu0 0.0
    %655 = vmatprep.subr.mxu0 0.0
    %656 = vmatpush1.msra.mxu0 0.0
    %657 = vmatprep.subr.mxu0 0.0
    %658 = vmatpush1.msra.mxu0 0.0
    %659 = vmatprep.subr.mxu0 0.0
    %660 = vmatpush1.msra.mxu0 0.0
    %661 = vmatprep.subr.mxu0 0.0
    %662 = vmatpush1.msra.mxu0 0.0
    %663 = vmatprep.subr.mxu0 0.0
    %664 = vmatpush1.msra.mxu0 0.0
    %665 = vmatprep.subr.mxu0 0.0
    %666 = vmatpush1.msra.mxu0 0.0
    %667 = vmatprep.subr.mxu0 0.0
    %668 = vmatpush1.msra.mxu0 0.0
    %669 = vmatprep.subr.mxu0 0.0
    %670 = vmatpush1.msra.mxu0 0.0
    %671 = vmatprep.subr.mxu0 0.0
    %672 = vmatpush1.msra.mxu0 0.0
    %673 = vmatprep.subr.mxu0 0.0
    %674 = vmatpush1.msra.mxu0 0.0
    %675 = vmatprep.subr.mxu0 0.0
    %676 = vmatpush1.msra.mxu0 0.0
    %677 = vmatprep.subr.mxu0 0.0
    %678 = vmatpush1.msra.mxu0 0.0
    %679 = vmatprep.subr.mxu0 0.0
    %680 = vmatpush1.msra.mxu0 0.0
    %681 = vmatprep.subr.mxu0 0.0
    %682 = vmatpush1.msra.mxu0 0.0
    %683 = vmatprep.subr.mxu0 0.0
    %684 = vmatpush1.msra.mxu0 0.0
    %685 = vmatprep.mubr.f32.mxu0 0.0
    %v686 = vand.u32 %v598, 4294901760
    %v687 = vsub.f32 %v598, %v686
    %v688 = vand.u32 %v687, 4294901760
    %v689 = vsub.f32 %v687, %v688
    %v690 = vand.u32 %v689, 4294901760
    %691 = vmatmul.mubr.f32.gmra.mrb[0].mxu0 %v690
    %v692 = vpop.f32.mrb[0].mxu0
    %v693 = vadd.f32 %v603, %v692
    %v694 = vpop.f32.mrb[0].mxu0
    %695 = vdwg.mxu0
    %696 = vmatprep.subr.mxu0 0.0
    %v697 = vand.u32 %v581, 4294901760
    %v698 = vsub.f32 %v581, %v697
    %v699 = vand.u32 %v698, 4294901760
    %v700 = vsub.f32 %v698, %v699
    %v701 = vand.u32 %v700, 4294901760
    %702 = vmatpush1.msra.mxu0 %v701
    %703 = vmatprep.subr.mxu0 0.0
    %v704 = vand.u32 %v582, 4294901760
    %v705 = vsub.f32 %v582, %v704
    %v706 = vand.u32 %v705, 4294901760
    %v707 = vsub.f32 %v705, %v706
    %v708 = vand.u32 %v707, 4294901760
    %709 = vmatpush1.msra.mxu0 %v708
    %710 = vmatprep.subr.mxu0 0.0
    %v711 = vand.u32 %v583, 4294901760
    %v712 = vsub.f32 %v583, %v711
    %v713 = vand.u32 %v712, 4294901760
    %v714 = vsub.f32 %v712, %v713
    %v715 = vand.u32 %v714, 4294901760
    %716 = vmatpush1.msra.mxu0 %v715
    %717 = vmatprep.subr.mxu0 0.0
    %v718 = vand.u32 %v584, 4294901760
    %v719 = vsub.f32 %v584, %v718
    %v720 = vand.u32 %v719, 4294901760
    %v721 = vsub.f32 %v719, %v720
    %v722 = vand.u32 %v721, 4294901760
    %723 = vmatpush1.msra.mxu0 %v722
    %724 = vmatprep.subr.mxu0 0.0
    %v725 = vand.u32 %v585, 4294901760
    %v726 = vsub.f32 %v585, %v725
    %v727 = vand.u32 %v726, 4294901760
    %v728 = vsub.f32 %v726, %v727
    %v729 = vand.u32 %v728, 4294901760
    %730 = vmatpush1.msra.mxu0 %v729
    %731 = vmatprep.subr.mxu0 0.0
    %v732 = vand.u32 %v586, 4294901760
    %v733 = vsub.f32 %v586, %v732
    %v734 = vand.u32 %v733, 4294901760
    %v735 = vsub.f32 %v733, %v734
    %v736 = vand.u32 %v735, 4294901760
    %737 = vmatpush1.msra.mxu0 %v736
    %738 = vmatprep.subr.mxu0 0.0
    %v739 = vand.u32 %v587, 4294901760
    %v740 = vsub.f32 %v587, %v739
    %v741 = vand.u32 %v740, 4294901760
    %v742 = vsub.f32 %v740, %v741
    %v743 = vand.u32 %v742, 4294901760
    %744 = vmatpush1.msra.mxu0 %v743
    %745 = vmatprep.subr.mxu0 0.0
    %v746 = vand.u32 %v588, 4294901760
    %v747 = vsub.f32 %v588, %v746
    %v748 = vand.u32 %v747, 4294901760
    %v749 = vsub.f32 %v747, %v748
    %v750 = vand.u32 %v749, 4294901760
    %751 = vmatpush1.msra.mxu0 %v750
    %752 = vmatprep.subr.mxu0 0.0
    %v753 = vand.u32 %v589, 4294901760
    %v754 = vsub.f32 %v589, %v753
    %v755 = vand.u32 %v754, 4294901760
    %v756 = vsub.f32 %v754, %v755
    %v757 = vand.u32 %v756, 4294901760
    %758 = vmatpush1.msra.mxu0 %v757
    %759 = vmatprep.subr.mxu0 0.0
    %v760 = vand.u32 %v590, 4294901760
    %v761 = vsub.f32 %v590, %v760
    %v762 = vand.u32 %v761, 4294901760
    %v763 = vsub.f32 %v761, %v762
    %v764 = vand.u32 %v763, 4294901760
    %765 = vmatpush1.msra.mxu0 %v764
    %766 = vmatprep.subr.mxu0 0.0
    %v767 = vand.u32 %v591, 4294901760
    %v768 = vsub.f32 %v591, %v767
    %v769 = vand.u32 %v768, 4294901760
    %v770 = vsub.f32 %v768, %v769
    %v771 = vand.u32 %v770, 4294901760
    %772 = vmatpush1.msra.mxu0 %v771
    %773 = vmatprep.subr.mxu0 0.0
    %v774 = vand.u32 %v592, 4294901760
    %v775 = vsub.f32 %v592, %v774
    %v776 = vand.u32 %v775, 4294901760
    %v777 = vsub.f32 %v775, %v776
    %v778 = vand.u32 %v777, 4294901760
    %779 = vmatpush1.msra.mxu0 %v778
    %780 = vmatprep.subr.mxu0 0.0
    %v781 = vand.u32 %v593, 4294901760
    %v782 = vsub.f32 %v593, %v781
    %v783 = vand.u32 %v782, 4294901760
    %v784 = vsub.f32 %v782, %v783
    %v785 = vand.u32 %v784, 4294901760
    %786 = vmatpush1.msra.mxu0 %v785
    %787 = vmatprep.subr.mxu0 0.0
    %v788 = vand.u32 %v594, 4294901760
    %v789 = vsub.f32 %v594, %v788
    %v790 = vand.u32 %v789, 4294901760
    %v791 = vsub.f32 %v789, %v790
    %v792 = vand.u32 %v791, 4294901760
    %793 = vmatpush1.msra.mxu0 %v792
    %794 = vmatprep.subr.mxu0 0.0
    %v795 = vand.u32 %v595, 4294901760
    %v796 = vsub.f32 %v595, %v795
    %v797 = vand.u32 %v796, 4294901760
    %v798 = vsub.f32 %v796, %v797
    %v799 = vand.u32 %v798, 4294901760
    %800 = vmatpush1.msra.mxu0 %v799
    %801 = vmatprep.subr.mxu0 0.0
    %v802 = vand.u32 %v596, 4294901760
    %v803 = vsub.f32 %v596, %v802
    %v804 = vand.u32 %v803, 4294901760
    %v805 = vsub.f32 %v803, %v804
    %v806 = vand.u32 %v805, 4294901760
    %807 = vmatpush1.msra.mxu0 %v806
    %808 = vmatprep.subr.mxu0 0.0
    %809 = vmatpush1.msra.mxu0 0.0
    %810 = vmatprep.subr.mxu0 0.0
    %811 = vmatpush1.msra.mxu0 0.0
    %812 = vmatprep.subr.mxu0 0.0
    %813 = vmatpush1.msra.mxu0 0.0
    %814 = vmatprep.subr.mxu0 0.0
    %815 = vmatpush1.msra.mxu0 0.0
    %816 = vmatprep.subr.mxu0 0.0
    %817 = vmatpush1.msra.mxu0 0.0
    %818 = vmatprep.subr.mxu0 0.0
    %819 = vmatpush1.msra.mxu0 0.0
    %820 = vmatprep.subr.mxu0 0.0
    %821 = vmatpush1.msra.mxu0 0.0
    %822 = vmatprep.subr.mxu0 0.0
    %823 = vmatpush1.msra.mxu0 0.0
    %824 = vmatprep.subr.mxu0 0.0
    %825 = vmatpush1.msra.mxu0 0.0
    %826 = vmatprep.subr.mxu0 0.0
    %827 = vmatpush1.msra.mxu0 0.0
    %828 = vmatprep.subr.mxu0 0.0
    %829 = vmatpush1.msra.mxu0 0.0
    %830 = vmatprep.subr.mxu0 0.0
    %831 = vmatpush1.msra.mxu0 0.0
    %832 = vmatprep.subr.mxu0 0.0
    %833 = vmatpush1.msra.mxu0 0.0
    %834 = vmatprep.subr.mxu0 0.0
    %835 = vmatpush1.msra.mxu0 0.0
    %836 = vmatprep.subr.mxu0 0.0
    %837 = vmatpush1.msra.mxu0 0.0
    %838 = vmatprep.subr.mxu0 0.0
    %839 = vmatpush1.msra.mxu0 0.0
    %840 = vmatprep.mubr.f32.mxu0 0.0
    %v841 = vand.u32 %v598, 4294901760
    %842 = vmatmul.mubr.f32.gmra.mrb[0].mxu0 %v841
    %v843 = vpop.f32.mrb[0].mxu0
    %v844 = vadd.f32 %v693, %v843
    %v845 = vpop.f32.mrb[0].mxu0
    %846 = vdwg.mxu0
    %847 = vmatprep.subr.mxu0 0.0
    %v848 = vand.u32 %v581, 4294901760
    %v849 = vsub.f32 %v581, %v848
    %850 = vmatpush1.msra.mxu0 %v849
    %851 = vmatprep.subr.mxu0 0.0
    %v852 = vand.u32 %v582, 4294901760
    %v853 = vsub.f32 %v582, %v852
    %854 = vmatpush1.msra.mxu0 %v853
    %855 = vmatprep.subr.mxu0 0.0
    %v856 = vand.u32 %v583, 4294901760
    %v857 = vsub.f32 %v583, %v856
    %858 = vmatpush1.msra.mxu0 %v857
    %859 = vmatprep.subr.mxu0 0.0
    %v860 = vand.u32 %v584, 4294901760
    %v861 = vsub.f32 %v584, %v860
    %862 = vmatpush1.msra.mxu0 %v861
    %863 = vmatprep.subr.mxu0 0.0
    %v864 = vand.u32 %v585, 4294901760
    %v865 = vsub.f32 %v585, %v864
    %866 = vmatpush1.msra.mxu0 %v865
    %867 = vmatprep.subr.mxu0 0.0
    %v868 = vand.u32 %v586, 4294901760
    %v869 = vsub.f32 %v586, %v868
    %870 = vmatpush1.msra.mxu0 %v869
    %871 = vmatprep.subr.mxu0 0.0
    %v872 = vand.u32 %v587, 4294901760
    %v873 = vsub.f32 %v587, %v872
    %874 = vmatpush1.msra.mxu0 %v873
    %875 = vmatprep.subr.mxu0 0.0
    %v876 = vand.u32 %v588, 4294901760
    %v877 = vsub.f32 %v588, %v876
    %878 = vmatpush1.msra.mxu0 %v877
    %879 = vmatprep.subr.mxu0 0.0
    %v880 = vand.u32 %v589, 4294901760
    %v881 = vsub.f32 %v589, %v880
    %882 = vmatpush1.msra.mxu0 %v881
    %883 = vmatprep.subr.mxu0 0.0
    %v884 = vand.u32 %v590, 4294901760
    %v885 = vsub.f32 %v590, %v884
    %886 = vmatpush1.msra.mxu0 %v885
    %887 = vmatprep.subr.mxu0 0.0
    %v888 = vand.u32 %v591, 4294901760
    %v889 = vsub.f32 %v591, %v888
    %890 = vmatpush1.msra.mxu0 %v889
    %891 = vmatprep.subr.mxu0 0.0
    %v892 = vand.u32 %v592, 4294901760
    %v893 = vsub.f32 %v592, %v892
    %894 = vmatpush1.msra.mxu0 %v893
    %895 = vmatprep.subr.mxu0 0.0
    %v896 = vand.u32 %v593, 4294901760
    %v897 = vsub.f32 %v593, %v896
    %898 = vmatpush1.msra.mxu0 %v897
    %899 = vmatprep.subr.mxu0 0.0
    %v900 = vand.u32 %v594, 4294901760
    %v901 = vsub.f32 %v594, %v900
    %902 = vmatpush1.msra.mxu0 %v901
    %903 = vmatprep.subr.mxu0 0.0
    %v904 = vand.u32 %v595, 4294901760
    %v905 = vsub.f32 %v595, %v904
    %906 = vmatpush1.msra.mxu0 %v905
    %907 = vmatprep.subr.mxu0 0.0
    %v908 = vand.u32 %v596, 4294901760
    %v909 = vsub.f32 %v596, %v908
    %910 = vmatpush1.msra.mxu0 %v909
    %911 = vmatprep.subr.mxu0 0.0
    %912 = vmatpush1.msra.mxu0 0.0
    %913 = vmatprep.subr.mxu0 0.0
    %914 = vmatpush1.msra.mxu0 0.0
    %915 = vmatprep.subr.mxu0 0.0
    %916 = vmatpush1.msra.mxu0 0.0
    %917 = vmatprep.subr.mxu0 0.0
    %918 = vmatpush1.msra.mxu0 0.0
    %919 = vmatprep.subr.mxu0 0.0
    %920 = vmatpush1.msra.mxu0 0.0
    %921 = vmatprep.subr.mxu0 0.0
    %922 = vmatpush1.msra.mxu0 0.0
    %923 = vmatprep.subr.mxu0 0.0
    %924 = vmatpush1.msra.mxu0 0.0
    %925 = vmatprep.subr.mxu0 0.0
    %926 = vmatpush1.msra.mxu0 0.0
    %927 = vmatprep.subr.mxu0 0.0
    %928 = vmatpush1.msra.mxu0 0.0
    %929 = vmatprep.subr.mxu0 0.0
    %930 = vmatpush1.msra.mxu0 0.0
    %931 = vmatprep.subr.mxu0 0.0
    %932 = vmatpush1.msra.mxu0 0.0
    %933 = vmatprep.subr.mxu0 0.0
    %934 = vmatpush1.msra.mxu0 0.0
    %935 = vmatprep.subr.mxu0 0.0
    %936 = vmatpush1.msra.mxu0 0.0
    %937 = vmatprep.subr.mxu0 0.0
    %938 = vmatpush1.msra.mxu0 0.0
    %939 = vmatprep.subr.mxu0 0.0
    %940 = vmatpush1.msra.mxu0 0.0
    %941 = vmatprep.subr.mxu0 0.0
    %942 = vmatpush1.msra.mxu0 0.0
    %943 = vmatprep.mubr.f32.mxu0 0.0
    %v944 = vand.u32 %v598, 4294901760
    %v945 = vsub.f32 %v598, %v944
    %946 = vmatmul.mubr.f32.gmra.mrb[0].mxu0 %v945
    %v947 = vpop.f32.mrb[0].mxu0
    %v948 = vadd.f32 %v844, %v947
    %v949 = vpop.f32.mrb[0].mxu0
    %950 = vdwg.mxu0
    %951 = vmatprep.subr.mxu0 0.0
    %v952 = vand.u32 %v581, 4294901760
    %953 = vmatpush1.msra.mxu0 %v952
    %954 = vmatprep.subr.mxu0 0.0
    %v955 = vand.u32 %v582, 4294901760
    %956 = vmatpush1.msra.mxu0 %v955
    %957 = vmatprep.subr.mxu0 0.0
    %v958 = vand.u32 %v583, 4294901760
    %959 = vmatpush1.msra.mxu0 %v958
    %960 = vmatprep.subr.mxu0 0.0
    %v961 = vand.u32 %v584, 4294901760
    %962 = vmatpush1.msra.mxu0 %v961
    %963 = vmatprep.subr.mxu0 0.0
    %v964 = vand.u32 %v585, 4294901760
    %965 = vmatpush1.msra.mxu0 %v964
    %966 = vmatprep.subr.mxu0 0.0
    %v967 = vand.u32 %v586, 4294901760
    %968 = vmatpush1.msra.mxu0 %v967
    %969 = vmatprep.subr.mxu0 0.0
    %v970 = vand.u32 %v587, 4294901760
    %971 = vmatpush1.msra.mxu0 %v970
    %972 = vmatprep.subr.mxu0 0.0
    %v973 = vand.u32 %v588, 4294901760
    %974 = vmatpush1.msra.mxu0 %v973
    %975 = vmatprep.subr.mxu0 0.0
    %v976 = vand.u32 %v589, 4294901760
    %977 = vmatpush1.msra.mxu0 %v976
    %978 = vmatprep.subr.mxu0 0.0
    %v979 = vand.u32 %v590, 4294901760
    %980 = vmatpush1.msra.mxu0 %v979
    %981 = vmatprep.subr.mxu0 0.0
    %v982 = vand.u32 %v591, 4294901760
    %983 = vmatpush1.msra.mxu0 %v982
    %984 = vmatprep.subr.mxu0 0.0
    %v985 = vand.u32 %v592, 4294901760
    %986 = vmatpush1.msra.mxu0 %v985
    %987 = vmatprep.subr.mxu0 0.0
    %v988 = vand.u32 %v593, 4294901760
    %989 = vmatpush1.msra.mxu0 %v988
    %990 = vmatprep.subr.mxu0 0.0
    %v991 = vand.u32 %v594, 4294901760
    %992 = vmatpush1.msra.mxu0 %v991
    %993 = vmatprep.subr.mxu0 0.0
    %v994 = vand.u32 %v595, 4294901760
    %995 = vmatpush1.msra.mxu0 %v994
    %996 = vmatprep.subr.mxu0 0.0
    %v997 = vand.u32 %v596, 4294901760
    %998 = vmatpush1.msra.mxu0 %v997
    %999 = vmatprep.subr.mxu0 0.0
    %1000 = vmatpush1.msra.mxu0 0.0
    %1001 = vmatprep.subr.mxu0 0.0
    %1002 = vmatpush1.msra.mxu0 0.0
    %1003 = vmatprep.subr.mxu0 0.0
    %1004 = vmatpush1.msra.mxu0 0.0
    %1005 = vmatprep.subr.mxu0 0.0
    %1006 = vmatpush1.msra.mxu0 0.0
    %1007 = vmatprep.subr.mxu0 0.0
    %1008 = vmatpush1.msra.mxu0 0.0
    %1009 = vmatprep.subr.mxu0 0.0
    %1010 = vmatpush1.msra.mxu0 0.0
    %1011 = vmatprep.subr.mxu0 0.0
    %1012 = vmatpush1.msra.mxu0 0.0
    %1013 = vmatprep.subr.mxu0 0.0
    %1014 = vmatpush1.msra.mxu0 0.0
    %1015 = vmatprep.subr.mxu0 0.0
    %1016 = vmatpush1.msra.mxu0 0.0
    %1017 = vmatprep.subr.mxu0 0.0
    %1018 = vmatpush1.msra.mxu0 0.0
    %1019 = vmatprep.subr.mxu0 0.0
    %1020 = vmatpush1.msra.mxu0 0.0
    %1021 = vmatprep.subr.mxu0 0.0
    %1022 = vmatpush1.msra.mxu0 0.0
    %1023 = vmatprep.subr.mxu0 0.0
    %1024 = vmatpush1.msra.mxu0 0.0
    %1025 = vmatprep.subr.mxu0 0.0
    %1026 = vmatpush1.msra.mxu0 0.0
    %1027 = vmatprep.subr.mxu0 0.0
    %1028 = vmatpush1.msra.mxu0 0.0
    %1029 = vmatprep.subr.mxu0 0.0
    %1030 = vmatpush1.msra.mxu0 0.0
    %1031 = vmatprep.mubr.f32.mxu0 0.0
    %v1032 = vand.u32 %v598, 4294901760
    %v1033 = vsub.f32 %v598, %v1032
    %v1034 = vand.u32 %v1033, 4294901760
    %1035 = vmatmul.mubr.f32.gmra.mrb[0].mxu0 %v1034
    %v1036 = vpop.f32.mrb[0].mxu0
    %v1037 = vadd.f32 %v948, %v1036
    %v1038 = vpop.f32.mrb[0].mxu0
    %1039 = vdwg.mxu0
    %1040 = vmatprep.subr.mxu0 0.0
    %v1041 = vand.u32 %v581, 4294901760
    %v1042 = vsub.f32 %v581, %v1041
    %v1043 = vand.u32 %v1042, 4294901760
    %1044 = vmatpush1.msra.mxu0 %v1043
    %1045 = vmatprep.subr.mxu0 0.0
    %v1046 = vand.u32 %v582, 4294901760
    %v1047 = vsub.f32 %v582, %v1046
    %v1048 = vand.u32 %v1047, 4294901760
    %1049 = vmatpush1.msra.mxu0 %v1048
    %1050 = vmatprep.subr.mxu0 0.0
    %v1051 = vand.u32 %v583, 4294901760
    %v1052 = vsub.f32 %v583, %v1051
    %v1053 = vand.u32 %v1052, 4294901760
    %1054 = vmatpush1.msra.mxu0 %v1053
    %1055 = vmatprep.subr.mxu0 0.0
    %v1056 = vand.u32 %v584, 4294901760
    %v1057 = vsub.f32 %v584, %v1056
    %v1058 = vand.u32 %v1057, 4294901760
    %1059 = vmatpush1.msra.mxu0 %v1058
    %1060 = vmatprep.subr.mxu0 0.0
    %v1061 = vand.u32 %v585, 4294901760
    %v1062 = vsub.f32 %v585, %v1061
    %v1063 = vand.u32 %v1062, 4294901760
    %1064 = vmatpush1.msra.mxu0 %v1063
    %1065 = vmatprep.subr.mxu0 0.0
    %v1066 = vand.u32 %v586, 4294901760
    %v1067 = vsub.f32 %v586, %v1066
    %v1068 = vand.u32 %v1067, 4294901760
    %1069 = vmatpush1.msra.mxu0 %v1068
    %1070 = vmatprep.subr.mxu0 0.0
    %v1071 = vand.u32 %v587, 4294901760
    %v1072 = vsub.f32 %v587, %v1071
    %v1073 = vand.u32 %v1072, 4294901760
    %1074 = vmatpush1.msra.mxu0 %v1073
    %1075 = vmatprep.subr.mxu0 0.0
    %v1076 = vand.u32 %v588, 4294901760
    %v1077 = vsub.f32 %v588, %v1076
    %v1078 = vand.u32 %v1077, 4294901760
    %1079 = vmatpush1.msra.mxu0 %v1078
    %1080 = vmatprep.subr.mxu0 0.0
    %v1081 = vand.u32 %v589, 4294901760
    %v1082 = vsub.f32 %v589, %v1081
    %v1083 = vand.u32 %v1082, 4294901760
    %1084 = vmatpush1.msra.mxu0 %v1083
    %1085 = vmatprep.subr.mxu0 0.0
    %v1086 = vand.u32 %v590, 4294901760
    %v1087 = vsub.f32 %v590, %v1086
    %v1088 = vand.u32 %v1087, 4294901760
    %1089 = vmatpush1.msra.mxu0 %v1088
    %1090 = vmatprep.subr.mxu0 0.0
    %v1091 = vand.u32 %v591, 4294901760
    %v1092 = vsub.f32 %v591, %v1091
    %v1093 = vand.u32 %v1092, 4294901760
    %1094 = vmatpush1.msra.mxu0 %v1093
    %1095 = vmatprep.subr.mxu0 0.0
    %v1096 = vand.u32 %v592, 4294901760
    %v1097 = vsub.f32 %v592, %v1096
    %v1098 = vand.u32 %v1097, 4294901760
    %1099 = vmatpush1.msra.mxu0 %v1098
    %1100 = vmatprep.subr.mxu0 0.0
    %v1101 = vand.u32 %v593, 4294901760
    %v1102 = vsub.f32 %v593, %v1101
    %v1103 = vand.u32 %v1102, 4294901760
    %1104 = vmatpush1.msra.mxu0 %v1103
    %1105 = vmatprep.subr.mxu0 0.0
    %v1106 = vand.u32 %v594, 4294901760
    %v1107 = vsub.f32 %v594, %v1106
    %v1108 = vand.u32 %v1107, 4294901760
    %1109 = vmatpush1.msra.mxu0 %v1108
    %1110 = vmatprep.subr.mxu0 0.0
    %v1111 = vand.u32 %v595, 4294901760
    %v1112 = vsub.f32 %v595, %v1111
    %v1113 = vand.u32 %v1112, 4294901760
    %1114 = vmatpush1.msra.mxu0 %v1113
    %1115 = vmatprep.subr.mxu0 0.0
    %v1116 = vand.u32 %v596, 4294901760
    %v1117 = vsub.f32 %v596, %v1116
    %v1118 = vand.u32 %v1117, 4294901760
    %1119 = vmatpush1.msra.mxu0 %v1118
    %1120 = vmatprep.subr.mxu0 0.0
    %1121 = vmatpush1.msra.mxu0 0.0
    %1122 = vmatprep.subr.mxu0 0.0
    %1123 = vmatpush1.msra.mxu0 0.0
    %1124 = vmatprep.subr.mxu0 0.0
    %1125 = vmatpush1.msra.mxu0 0.0
    %1126 = vmatprep.subr.mxu0 0.0
    %1127 = vmatpush1.msra.mxu0 0.0
    %1128 = vmatprep.subr.mxu0 0.0
    %1129 = vmatpush1.msra.mxu0 0.0
    %1130 = vmatprep.subr.mxu0 0.0
    %1131 = vmatpush1.msra.mxu0 0.0
    %1132 = vmatprep.subr.mxu0 0.0
    %1133 = vmatpush1.msra.mxu0 0.0
    %1134 = vmatprep.subr.mxu0 0.0
    %1135 = vmatpush1.msra.mxu0 0.0
    %1136 = vmatprep.subr.mxu0 0.0
    %1137 = vmatpush1.msra.mxu0 0.0
    %1138 = vmatprep.subr.mxu0 0.0
    %1139 = vmatpush1.msra.mxu0 0.0
    %1140 = vmatprep.subr.mxu0 0.0
    %1141 = vmatpush1.msra.mxu0 0.0
    %1142 = vmatprep.subr.mxu0 0.0
    %1143 = vmatpush1.msra.mxu0 0.0
    %1144 = vmatprep.subr.mxu0 0.0
    %1145 = vmatpush1.msra.mxu0 0.0
    %1146 = vmatprep.subr.mxu0 0.0
    %1147 = vmatpush1.msra.mxu0 0.0
    %1148 = vmatprep.subr.mxu0 0.0
    %1149 = vmatpush1.msra.mxu0 0.0
    %1150 = vmatprep.subr.mxu0 0.0
    %1151 = vmatpush1.msra.mxu0 0.0
    %1152 = vmatprep.mubr.f32.mxu0 0.0
    %v1153 = vand.u32 %v598, 4294901760
    %1154 = vmatmul.mubr.f32.gmra.mrb[0].mxu0 %v1153
    %v1155 = vpop.f32.mrb[0].mxu0
    %v1156 = vadd.f32 %v1037, %v1155
    %v1157 = vpop.f32.mrb[0].mxu0
    %1158 = vdwg.mxu0
    %1159 = vmatprep.subr.mxu0 0.0
    %v1160 = vand.u32 %v581, 4294901760
    %1161 = vmatpush1.msra.mxu0 %v1160
    %1162 = vmatprep.subr.mxu0 0.0
    %v1163 = vand.u32 %v582, 4294901760
    %1164 = vmatpush1.msra.mxu0 %v1163
    %1165 = vmatprep.subr.mxu0 0.0
    %v1166 = vand.u32 %v583, 4294901760
    %1167 = vmatpush1.msra.mxu0 %v1166
    %1168 = vmatprep.subr.mxu0 0.0
    %v1169 = vand.u32 %v584, 4294901760
    %1170 = vmatpush1.msra.mxu0 %v1169
    %1171 = vmatprep.subr.mxu0 0.0
    %v1172 = vand.u32 %v585, 4294901760
    %1173 = vmatpush1.msra.mxu0 %v1172
    %1174 = vmatprep.subr.mxu0 0.0
    %v1175 = vand.u32 %v586, 4294901760
    %1176 = vmatpush1.msra.mxu0 %v1175
    %1177 = vmatprep.subr.mxu0 0.0
    %v1178 = vand.u32 %v587, 4294901760
    %1179 = vmatpush1.msra.mxu0 %v1178
    %1180 = vmatprep.subr.mxu0 0.0
    %v1181 = vand.u32 %v588, 4294901760
    %1182 = vmatpush1.msra.mxu0 %v1181
    %1183 = vmatprep.subr.mxu0 0.0
    %v1184 = vand.u32 %v589, 4294901760
    %1185 = vmatpush1.msra.mxu0 %v1184
    %1186 = vmatprep.subr.mxu0 0.0
    %v1187 = vand.u32 %v590, 4294901760
    %1188 = vmatpush1.msra.mxu0 %v1187
    %1189 = vmatprep.subr.mxu0 0.0
    %v1190 = vand.u32 %v591, 4294901760
    %1191 = vmatpush1.msra.mxu0 %v1190
    %1192 = vmatprep.subr.mxu0 0.0
    %v1193 = vand.u32 %v592, 4294901760
    %1194 = vmatpush1.msra.mxu0 %v1193
    %1195 = vmatprep.subr.mxu0 0.0
    %v1196 = vand.u32 %v593, 4294901760
    %1197 = vmatpush1.msra.mxu0 %v1196
    %1198 = vmatprep.subr.mxu0 0.0
    %v1199 = vand.u32 %v594, 4294901760
    %1200 = vmatpush1.msra.mxu0 %v1199
    %1201 = vmatprep.subr.mxu0 0.0
    %v1202 = vand.u32 %v595, 4294901760
    %1203 = vmatpush1.msra.mxu0 %v1202
    %1204 = vmatprep.subr.mxu0 0.0
    %v1205 = vand.u32 %v596, 4294901760
    %1206 = vmatpush1.msra.mxu0 %v1205
    %1207 = vmatprep.subr.mxu0 0.0
    %1208 = vmatpush1.msra.mxu0 0.0
    %1209 = vmatprep.subr.mxu0 0.0
    %1210 = vmatpush1.msra.mxu0 0.0
    %1211 = vmatprep.subr.mxu0 0.0
    %1212 = vmatpush1.msra.mxu0 0.0
    %1213 = vmatprep.subr.mxu0 0.0
    %1214 = vmatpush1.msra.mxu0 0.0
    %1215 = vmatprep.subr.mxu0 0.0
    %1216 = vmatpush1.msra.mxu0 0.0
    %1217 = vmatprep.subr.mxu0 0.0
    %1218 = vmatpush1.msra.mxu0 0.0
    %1219 = vmatprep.subr.mxu0 0.0
    %1220 = vmatpush1.msra.mxu0 0.0
    %1221 = vmatprep.subr.mxu0 0.0
    %1222 = vmatpush1.msra.mxu0 0.0
    %1223 = vmatprep.subr.mxu0 0.0
    %1224 = vmatpush1.msra.mxu0 0.0
    %1225 = vmatprep.subr.mxu0 0.0
    %1226 = vmatpush1.msra.mxu0 0.0
    %1227 = vmatprep.subr.mxu0 0.0
    %1228 = vmatpush1.msra.mxu0 0.0
    %1229 = vmatprep.subr.mxu0 0.0
    %1230 = vmatpush1.msra.mxu0 0.0
    %1231 = vmatprep.subr.mxu0 0.0
    %1232 = vmatpush1.msra.mxu0 0.0
    %1233 = vmatprep.subr.mxu0 0.0
    %1234 = vmatpush1.msra.mxu0 0.0
    %1235 = vmatprep.subr.mxu0 0.0
    %1236 = vmatpush1.msra.mxu0 0.0
    %1237 = vmatprep.subr.mxu0 0.0
    %1238 = vmatpush1.msra.mxu0 0.0
    %1239 = vmatprep.mubr.f32.mxu0 0.0
    %v1240 = vand.u32 %v598, 4294901760
    %1241 = vmatmul.mubr.f32.gmra.mrb[0].mxu0 %v1240
    %v1242 = vpop.f32.mrb[0].mxu0
    %v1243 = vadd.f32 %v1156, %v1242
    %v1244 = vpop.f32.mrb[0].mxu0
    %1245 = vdwg.mxu0
    %v1246 = vld [vmem:[#allocation8] sm:$0xff]
    %v1247 = vld [vmem:[#allocation8 + $0x8] sm:$0xff]
    %v1248 = vld [vmem:[#allocation8 + $0x10] sm:$0xff]
    %v1249 = vld [vmem:[#allocation8 + $0x18] sm:$0xff]
    %v1250 = vld [vmem:[#allocation8 + $0x20] sm:$0xff]
    %v1251 = vld [vmem:[#allocation8 + $0x28] sm:$0xff]
    %v1252 = vld [vmem:[#allocation8 + $0x30] sm:$0xff]
    %v1253 = vld [vmem:[#allocation8 + $0x38] sm:$0xff]
    %v1254 = vld [vmem:[#allocation8 + $0x40] sm:$0xff]
    %v1255 = vld [vmem:[#allocation8 + $0x48] sm:$0xff]
    %v1256 = vld [vmem:[#allocation8 + $0x50] sm:$0xff]
    %v1257 = vld [vmem:[#allocation8 + $0x58] sm:$0xff]
    %v1258 = vld [vmem:[#allocation8 + $0x60] sm:$0xff]
    %v1259 = vld [vmem:[#allocation8 + $0x68] sm:$0xff]
    %v1260 = vld [vmem:[#allocation8 + $0x70] sm:$0xff]
    %v1261 = vld [vmem:[#allocation8 + $0x78] sm:$0xff]
    %v1262 = vld [vmem:[#allocation8 + $0x80] sm:$0xff]
    %v1263 = vld [vmem:[#allocation8 + $0x88] sm:$0xff]
    %v1264 = vld [vmem:[#allocation8 + $0x90] sm:$0xff]
    %v1265 = vld [vmem:[#allocation8 + $0x98] sm:$0xff]
    %v1266 = vld [vmem:[#allocation8 + $0xa0] sm:$0xff]
    %v1267 = vld [vmem:[#allocation8 + $0xa8] sm:$0xff]
    %v1268 = vld [vmem:[#allocation8 + $0xb0] sm:$0xff]
    %v1269 = vld [vmem:[#allocation8 + $0xb8] sm:$0xff]
    %v1270 = vld [vmem:[#allocation8 + $0xc0] sm:$0xff]
    %v1271 = vld [vmem:[#allocation8 + $0xc8] sm:$0xff]
    %v1272 = vld [vmem:[#allocation8 + $0xd0] sm:$0xff]
    %v1273 = vld [vmem:[#allocation8 + $0xd8] sm:$0xff]
    %v1274 = vld [vmem:[#allocation8 + $0xe0] sm:$0xff]
    %v1275 = vld [vmem:[#allocation8 + $0xe8] sm:$0xff]
    %v1276 = vld [vmem:[#allocation8 + $0xf0] sm:$0xff]
    %v1277 = vld [vmem:[#allocation8 + $0xf8] sm:$0xff]
    %v1278 = vld [vmem:[%s6] sm:$0x3]
    %v1279 = vmax.f32 %v1243, 0.0
    %v1281 = vlaneseq
    %v1282 = vshrl.u32 %v1281, 7
    %v1283 = vsub.s32 0, %v1282
    %v1284 = vrot.slane %v1278, %v1283
    %v1285 = vlaneseq
    %v1286 = vshrl.u32 %v1285, 7
    %v1287 = vsub.s32 1, %v1286
    %v1288 = vrot.slane %v1278, %v1287
    %v1291 = vand.u32 %v1247, 4294901760
    %1292 = vmatprep.subr.mxu0 %v1291
    %v1293 = vand.u32 %v1246, 4294901760
    %1294 = vmatpush1.msra.mxu0 %v1293
    %v1295 = vand.u32 %v1249, 4294901760
    %1296 = vmatprep.subr.mxu0 %v1295
    %v1297 = vand.u32 %v1248, 4294901760
    %1298 = vmatpush1.msra.mxu0 %v1297
    %v1299 = vand.u32 %v1251, 4294901760
    %1300 = vmatprep.subr.mxu0 %v1299
    %v1301 = vand.u32 %v1250, 4294901760
    %1302 = vmatpush1.msra.mxu0 %v1301
    %v1303 = vand.u32 %v1253, 4294901760
    %1304 = vmatprep.subr.mxu0 %v1303
    %v1305 = vand.u32 %v1252, 4294901760
    %1306 = vmatpush1.msra.mxu0 %v1305
    %v1307 = vand.u32 %v1255, 4294901760
    %1308 = vmatprep.subr.mxu0 %v1307
    %v1309 = vand.u32 %v1254, 4294901760
    %1310 = vmatpush1.msra.mxu0 %v1309
    %v1311 = vand.u32 %v1257, 4294901760
    %1312 = vmatprep.subr.mxu0 %v1311
    %v1313 = vand.u32 %v1256, 4294901760
    %1314 = vmatpush1.msra.mxu0 %v1313
    %v1315 = vand.u32 %v1259, 4294901760
    %1316 = vmatprep.subr.mxu0 %v1315
    %v1317 = vand.u32 %v1258, 4294901760
    %1318 = vmatpush1.msra.mxu0 %v1317
    %v1319 = vand.u32 %v1261, 4294901760
    %1320 = vmatprep.subr.mxu0 %v1319
    %v1321 = vand.u32 %v1260, 4294901760
    %1322 = vmatpush1.msra.mxu0 %v1321
    %v1323 = vand.u32 %v1263, 4294901760
    %1324 = vmatprep.subr.mxu0 %v1323
    %v1325 = vand.u32 %v1262, 4294901760
    %1326 = vmatpush1.msra.mxu0 %v1325
    %v1327 = vand.u32 %v1265, 4294901760
    %1328 = vmatprep.subr.mxu0 %v1327
    %v1329 = vand.u32 %v1264, 4294901760
    %1330 = vmatpush1.msra.mxu0 %v1329
    %v1331 = vand.u32 %v1267, 4294901760
    %1332 = vmatprep.subr.mxu0 %v1331
    %v1333 = vand.u32 %v1266, 4294901760
    %1334 = vmatpush1.msra.mxu0 %v1333
    %v1335 = vand.u32 %v1269, 4294901760
    %1336 = vmatprep.subr.mxu0 %v1335
    %v1337 = vand.u32 %v1268, 4294901760
    %1338 = vmatpush1.msra.mxu0 %v1337
    %v1339 = vand.u32 %v1271, 4294901760
    %1340 = vmatprep.subr.mxu0 %v1339
    %v1341 = vand.u32 %v1270, 4294901760
    %1342 = vmatpush1.msra.mxu0 %v1341
    %v1343 = vand.u32 %v1273, 4294901760
    %1344 = vmatprep.subr.mxu0 %v1343
    %v1345 = vand.u32 %v1272, 4294901760
    %1346 = vmatpush1.msra.mxu0 %v1345
    %v1347 = vand.u32 %v1275, 4294901760
    %1348 = vmatprep.subr.mxu0 %v1347
    %v1349 = vand.u32 %v1274, 4294901760
    %1350 = vmatpush1.msra.mxu0 %v1349
    %v1351 = vand.u32 %v1277, 4294901760
    %1352 = vmatprep.subr.mxu0 %v1351
    %v1353 = vand.u32 %v1276, 4294901760
    %1354 = vmatpush1.msra.mxu0 %v1353
    %1355 = vmatprep.subr.mxu0 0.0
    %1356 = vmatpush1.msra.mxu0 0.0
    %1357 = vmatprep.subr.mxu0 0.0
    %1358 = vmatpush1.msra.mxu0 0.0
    %1359 = vmatprep.subr.mxu0 0.0
    %1360 = vmatpush1.msra.mxu0 0.0
    %1361 = vmatprep.subr.mxu0 0.0
    %1362 = vmatpush1.msra.mxu0 0.0
    %1363 = vmatprep.subr.mxu0 0.0
    %1364 = vmatpush1.msra.mxu0 0.0
    %1365 = vmatprep.subr.mxu0 0.0
    %1366 = vmatpush1.msra.mxu0 0.0
    %1367 = vmatprep.subr.mxu0 0.0
    %1368 = vmatpush1.msra.mxu0 0.0
    %1369 = vmatprep.subr.mxu0 0.0
    %1370 = vmatpush1.msra.mxu0 0.0
    %1371 = vmatprep.subr.mxu0 0.0
    %1372 = vmatpush1.msra.mxu0 0.0
    %1373 = vmatprep.subr.mxu0 0.0
    %1374 = vmatpush1.msra.mxu0 0.0
    %1375 = vmatprep.subr.mxu0 0.0
    %1376 = vmatpush1.msra.mxu0 0.0
    %1377 = vmatprep.subr.mxu0 0.0
    %1378 = vmatpush1.msra.mxu0 0.0
    %1379 = vmatprep.subr.mxu0 0.0
    %1380 = vmatpush1.msra.mxu0 0.0
    %1381 = vmatprep.subr.mxu0 0.0
    %1382 = vmatpush1.msra.mxu0 0.0
    %1383 = vmatprep.subr.mxu0 0.0
    %1384 = vmatpush1.msra.mxu0 0.0
    %1385 = vmatprep.subr.mxu0 0.0
    %1386 = vmatpush1.msra.mxu0 0.0
    %1387 = vmatprep.mubr.f32.mxu0 0.0
    %v1388 = vand.u32 %v1279, 4294901760
    %v1389 = vsub.f32 %v1279, %v1388
    %v1390 = vand.u32 %v1389, 4294901760
    %v1391 = vsub.f32 %v1389, %v1390
    %v1392 = vand.u32 %v1391, 4294901760
    %1393 = vmatmul.mubr.f32.gmra.mrb[0].mxu0 %v1392
    %v1394 = vpop.f32.mrb[0].mxu0
    %v1395 = vadd.f32 %v1284, %v1394
    %v1396 = vpop.f32.mrb[0].mxu0
    %v1397 = vadd.f32 %v1288, %v1396
    %1398 = vdwg.mxu0
    %v1399 = vand.u32 %v1247, 4294901760
    %v1400 = vsub.f32 %v1247, %v1399
    %v1401 = vand.u32 %v1400, 4294901760
    %v1402 = vsub.f32 %v1400, %v1401
    %v1403 = vand.u32 %v1402, 4294901760
    %1404 = vmatprep.subr.mxu0 %v1403
    %v1405 = vand.u32 %v1246, 4294901760
    %v1406 = vsub.f32 %v1246, %v1405
    %v1407 = vand.u32 %v1406, 4294901760
    %v1408 = vsub.f32 %v1406, %v1407
    %v1409 = vand.u32 %v1408, 4294901760
    %1410 = vmatpush1.msra.mxu0 %v1409
    %v1411 = vand.u32 %v1249, 4294901760
    %v1412 = vsub.f32 %v1249, %v1411
    %v1413 = vand.u32 %v1412, 4294901760
    %v1414 = vsub.f32 %v1412, %v1413
    %v1415 = vand.u32 %v1414, 4294901760
    %1416 = vmatprep.subr.mxu0 %v1415
    %v1417 = vand.u32 %v1248, 4294901760
    %v1418 = vsub.f32 %v1248, %v1417
    %v1419 = vand.u32 %v1418, 4294901760
    %v1420 = vsub.f32 %v1418, %v1419
    %v1421 = vand.u32 %v1420, 4294901760
    %1422 = vmatpush1.msra.mxu0 %v1421
    %v1423 = vand.u32 %v1251, 4294901760
    %v1424 = vsub.f32 %v1251, %v1423
    %v1425 = vand.u32 %v1424, 4294901760
    %v1426 = vsub.f32 %v1424, %v1425
    %v1427 = vand.u32 %v1426, 4294901760
    %1428 = vmatprep.subr.mxu0 %v1427
    %v1429 = vand.u32 %v1250, 4294901760
    %v1430 = vsub.f32 %v1250, %v1429
    %v1431 = vand.u32 %v1430, 4294901760
    %v1432 = vsub.f32 %v1430, %v1431
    %v1433 = vand.u32 %v1432, 4294901760
    %1434 = vmatpush1.msra.mxu0 %v1433
    %v1435 = vand.u32 %v1253, 4294901760
    %v1436 = vsub.f32 %v1253, %v1435
    %v1437 = vand.u32 %v1436, 4294901760
    %v1438 = vsub.f32 %v1436, %v1437
    %v1439 = vand.u32 %v1438, 4294901760
    %1440 = vmatprep.subr.mxu0 %v1439
    %v1441 = vand.u32 %v1252, 4294901760
    %v1442 = vsub.f32 %v1252, %v1441
    %v1443 = vand.u32 %v1442, 4294901760
    %v1444 = vsub.f32 %v1442, %v1443
    %v1445 = vand.u32 %v1444, 4294901760
    %1446 = vmatpush1.msra.mxu0 %v1445
    %v1447 = vand.u32 %v1255, 4294901760
    %v1448 = vsub.f32 %v1255, %v1447
    %v1449 = vand.u32 %v1448, 4294901760
    %v1450 = vsub.f32 %v1448, %v1449
    %v1451 = vand.u32 %v1450, 4294901760
    %1452 = vmatprep.subr.mxu0 %v1451
    %v1453 = vand.u32 %v1254, 4294901760
    %v1454 = vsub.f32 %v1254, %v1453
    %v1455 = vand.u32 %v1454, 4294901760
    %v1456 = vsub.f32 %v1454, %v1455
    %v1457 = vand.u32 %v1456, 4294901760
    %1458 = vmatpush1.msra.mxu0 %v1457
    %v1459 = vand.u32 %v1257, 4294901760
    %v1460 = vsub.f32 %v1257, %v1459
    %v1461 = vand.u32 %v1460, 4294901760
    %v1462 = vsub.f32 %v1460, %v1461
    %v1463 = vand.u32 %v1462, 4294901760
    %1464 = vmatprep.subr.mxu0 %v1463
    %v1465 = vand.u32 %v1256, 4294901760
    %v1466 = vsub.f32 %v1256, %v1465
    %v1467 = vand.u32 %v1466, 4294901760
    %v1468 = vsub.f32 %v1466, %v1467
    %v1469 = vand.u32 %v1468, 4294901760
    %1470 = vmatpush1.msra.mxu0 %v1469
    %v1471 = vand.u32 %v1259, 4294901760
    %v1472 = vsub.f32 %v1259, %v1471
    %v1473 = vand.u32 %v1472, 4294901760
    %v1474 = vsub.f32 %v1472, %v1473
    %v1475 = vand.u32 %v1474, 4294901760
    %1476 = vmatprep.subr.mxu0 %v1475
    %v1477 = vand.u32 %v1258, 4294901760
    %v1478 = vsub.f32 %v1258, %v1477
    %v1479 = vand.u32 %v1478, 4294901760
    %v1480 = vsub.f32 %v1478, %v1479
    %v1481 = vand.u32 %v1480, 4294901760
    %1482 = vmatpush1.msra.mxu0 %v1481
    %v1483 = vand.u32 %v1261, 4294901760
    %v1484 = vsub.f32 %v1261, %v1483
    %v1485 = vand.u32 %v1484, 4294901760
    %v1486 = vsub.f32 %v1484, %v1485
    %v1487 = vand.u32 %v1486, 4294901760
    %1488 = vmatprep.subr.mxu0 %v1487
    %v1489 = vand.u32 %v1260, 4294901760
    %v1490 = vsub.f32 %v1260, %v1489
    %v1491 = vand.u32 %v1490, 4294901760
    %v1492 = vsub.f32 %v1490, %v1491
    %v1493 = vand.u32 %v1492, 4294901760
    %1494 = vmatpush1.msra.mxu0 %v1493
    %v1495 = vand.u32 %v1263, 4294901760
    %v1496 = vsub.f32 %v1263, %v1495
    %v1497 = vand.u32 %v1496, 4294901760
    %v1498 = vsub.f32 %v1496, %v1497
    %v1499 = vand.u32 %v1498, 4294901760
    %1500 = vmatprep.subr.mxu0 %v1499
    %v1501 = vand.u32 %v1262, 4294901760
    %v1502 = vsub.f32 %v1262, %v1501
    %v1503 = vand.u32 %v1502, 4294901760
    %v1504 = vsub.f32 %v1502, %v1503
    %v1505 = vand.u32 %v1504, 4294901760
    %1506 = vmatpush1.msra.mxu0 %v1505
    %v1507 = vand.u32 %v1265, 4294901760
    %v1508 = vsub.f32 %v1265, %v1507
    %v1509 = vand.u32 %v1508, 4294901760
    %v1510 = vsub.f32 %v1508, %v1509
    %v1511 = vand.u32 %v1510, 4294901760
    %1512 = vmatprep.subr.mxu0 %v1511
    %v1513 = vand.u32 %v1264, 4294901760
    %v1514 = vsub.f32 %v1264, %v1513
    %v1515 = vand.u32 %v1514, 4294901760
    %v1516 = vsub.f32 %v1514, %v1515
    %v1517 = vand.u32 %v1516, 4294901760
    %1518 = vmatpush1.msra.mxu0 %v1517
    %v1519 = vand.u32 %v1267, 4294901760
    %v1520 = vsub.f32 %v1267, %v1519
    %v1521 = vand.u32 %v1520, 4294901760
    %v1522 = vsub.f32 %v1520, %v1521
    %v1523 = vand.u32 %v1522, 4294901760
    %1524 = vmatprep.subr.mxu0 %v1523
    %v1525 = vand.u32 %v1266, 4294901760
    %v1526 = vsub.f32 %v1266, %v1525
    %v1527 = vand.u32 %v1526, 4294901760
    %v1528 = vsub.f32 %v1526, %v1527
    %v1529 = vand.u32 %v1528, 4294901760
    %1530 = vmatpush1.msra.mxu0 %v1529
    %v1531 = vand.u32 %v1269, 4294901760
    %v1532 = vsub.f32 %v1269, %v1531
    %v1533 = vand.u32 %v1532, 4294901760
    %v1534 = vsub.f32 %v1532, %v1533
    %v1535 = vand.u32 %v1534, 4294901760
    %1536 = vmatprep.subr.mxu0 %v1535
    %v1537 = vand.u32 %v1268, 4294901760
    %v1538 = vsub.f32 %v1268, %v1537
    %v1539 = vand.u32 %v1538, 4294901760
    %v1540 = vsub.f32 %v1538, %v1539
    %v1541 = vand.u32 %v1540, 4294901760
    %1542 = vmatpush1.msra.mxu0 %v1541
    %v1543 = vand.u32 %v1271, 4294901760
    %v1544 = vsub.f32 %v1271, %v1543
    %v1545 = vand.u32 %v1544, 4294901760
    %v1546 = vsub.f32 %v1544, %v1545
    %v1547 = vand.u32 %v1546, 4294901760
    %1548 = vmatprep.subr.mxu0 %v1547
    %v1549 = vand.u32 %v1270, 4294901760
    %v1550 = vsub.f32 %v1270, %v1549
    %v1551 = vand.u32 %v1550, 4294901760
    %v1552 = vsub.f32 %v1550, %v1551
    %v1553 = vand.u32 %v1552, 4294901760
    %1554 = vmatpush1.msra.mxu0 %v1553
    %v1555 = vand.u32 %v1273, 4294901760
    %v1556 = vsub.f32 %v1273, %v1555
    %v1557 = vand.u32 %v1556, 4294901760
    %v1558 = vsub.f32 %v1556, %v1557
    %v1559 = vand.u32 %v1558, 4294901760
    %1560 = vmatprep.subr.mxu0 %v1559
    %v1561 = vand.u32 %v1272, 4294901760
    %v1562 = vsub.f32 %v1272, %v1561
    %v1563 = vand.u32 %v1562, 4294901760
    %v1564 = vsub.f32 %v1562, %v1563
    %v1565 = vand.u32 %v1564, 4294901760
    %1566 = vmatpush1.msra.mxu0 %v1565
    %v1567 = vand.u32 %v1275, 4294901760
    %v1568 = vsub.f32 %v1275, %v1567
    %v1569 = vand.u32 %v1568, 4294901760
    %v1570 = vsub.f32 %v1568, %v1569
    %v1571 = vand.u32 %v1570, 4294901760
    %1572 = vmatprep.subr.mxu0 %v1571
    %v1573 = vand.u32 %v1274, 4294901760
    %v1574 = vsub.f32 %v1274, %v1573
    %v1575 = vand.u32 %v1574, 4294901760
    %v1576 = vsub.f32 %v1574, %v1575
    %v1577 = vand.u32 %v1576, 4294901760
    %1578 = vmatpush1.msra.mxu0 %v1577
    %v1579 = vand.u32 %v1277, 4294901760
    %v1580 = vsub.f32 %v1277, %v1579
    %v1581 = vand.u32 %v1580, 4294901760
    %v1582 = vsub.f32 %v1580, %v1581
    %v1583 = vand.u32 %v1582, 4294901760
    %1584 = vmatprep.subr.mxu0 %v1583
    %v1585 = vand.u32 %v1276, 4294901760
    %v1586 = vsub.f32 %v1276, %v1585
    %v1587 = vand.u32 %v1586, 4294901760
    %v1588 = vsub.f32 %v1586, %v1587
    %v1589 = vand.u32 %v1588, 4294901760
    %1590 = vmatpush1.msra.mxu0 %v1589
    %1591 = vmatprep.subr.mxu0 0.0
    %1592 = vmatpush1.msra.mxu0 0.0
    %1593 = vmatprep.subr.mxu0 0.0
    %1594 = vmatpush1.msra.mxu0 0.0
    %1595 = vmatprep.subr.mxu0 0.0
    %1596 = vmatpush1.msra.mxu0 0.0
    %1597 = vmatprep.subr.mxu0 0.0
    %1598 = vmatpush1.msra.mxu0 0.0
    %1599 = vmatprep.subr.mxu0 0.0
    %1600 = vmatpush1.msra.mxu0 0.0
    %1601 = vmatprep.subr.mxu0 0.0
    %1602 = vmatpush1.msra.mxu0 0.0
    %1603 = vmatprep.subr.mxu0 0.0
    %1604 = vmatpush1.msra.mxu0 0.0
    %1605 = vmatprep.subr.mxu0 0.0
    %1606 = vmatpush1.msra.mxu0 0.0
    %1607 = vmatprep.subr.mxu0 0.0
    %1608 = vmatpush1.msra.mxu0 0.0
    %1609 = vmatprep.subr.mxu0 0.0
    %1610 = vmatpush1.msra.mxu0 0.0
    %1611 = vmatprep.subr.mxu0 0.0
    %1612 = vmatpush1.msra.mxu0 0.0
    %1613 = vmatprep.subr.mxu0 0.0
    %1614 = vmatpush1.msra.mxu0 0.0
    %1615 = vmatprep.subr.mxu0 0.0
    %1616 = vmatpush1.msra.mxu0 0.0
    %1617 = vmatprep.subr.mxu0 0.0
    %1618 = vmatpush1.msra.mxu0 0.0
    %1619 = vmatprep.subr.mxu0 0.0
    %1620 = vmatpush1.msra.mxu0 0.0
    %1621 = vmatprep.subr.mxu0 0.0
    %1622 = vmatpush1.msra.mxu0 0.0
    %1623 = vmatprep.mubr.f32.mxu0 0.0
    %v1624 = vand.u32 %v1279, 4294901760
    %1625 = vmatmul.mubr.f32.gmra.mrb[0].mxu0 %v1624
    %v1626 = vpop.f32.mrb[0].mxu0
    %v1627 = vadd.f32 %v1395, %v1626
    %v1628 = vpop.f32.mrb[0].mxu0
    %v1629 = vadd.f32 %v1397, %v1628
    %1630 = vdwg.mxu0
    %v1631 = vand.u32 %v1247, 4294901760
    %v1632 = vsub.f32 %v1247, %v1631
    %1633 = vmatprep.subr.mxu0 %v1632
    %v1634 = vand.u32 %v1246, 4294901760
    %v1635 = vsub.f32 %v1246, %v1634
    %1636 = vmatpush1.msra.mxu0 %v1635
    %v1637 = vand.u32 %v1249, 4294901760
    %v1638 = vsub.f32 %v1249, %v1637
    %1639 = vmatprep.subr.mxu0 %v1638
    %v1640 = vand.u32 %v1248, 4294901760
    %v1641 = vsub.f32 %v1248, %v1640
    %1642 = vmatpush1.msra.mxu0 %v1641
    %v1643 = vand.u32 %v1251, 4294901760
    %v1644 = vsub.f32 %v1251, %v1643
    %1645 = vmatprep.subr.mxu0 %v1644
    %v1646 = vand.u32 %v1250, 4294901760
    %v1647 = vsub.f32 %v1250, %v1646
    %1648 = vmatpush1.msra.mxu0 %v1647
    %v1649 = vand.u32 %v1253, 4294901760
    %v1650 = vsub.f32 %v1253, %v1649
    %1651 = vmatprep.subr.mxu0 %v1650
    %v1652 = vand.u32 %v1252, 4294901760
    %v1653 = vsub.f32 %v1252, %v1652
    %1654 = vmatpush1.msra.mxu0 %v1653
    %v1655 = vand.u32 %v1255, 4294901760
    %v1656 = vsub.f32 %v1255, %v1655
    %1657 = vmatprep.subr.mxu0 %v1656
    %v1658 = vand.u32 %v1254, 4294901760
    %v1659 = vsub.f32 %v1254, %v1658
    %1660 = vmatpush1.msra.mxu0 %v1659
    %v1661 = vand.u32 %v1257, 4294901760
    %v1662 = vsub.f32 %v1257, %v1661
    %1663 = vmatprep.subr.mxu0 %v1662
    %v1664 = vand.u32 %v1256, 4294901760
    %v1665 = vsub.f32 %v1256, %v1664
    %1666 = vmatpush1.msra.mxu0 %v1665
    %v1667 = vand.u32 %v1259, 4294901760
    %v1668 = vsub.f32 %v1259, %v1667
    %1669 = vmatprep.subr.mxu0 %v1668
    %v1670 = vand.u32 %v1258, 4294901760
    %v1671 = vsub.f32 %v1258, %v1670
    %1672 = vmatpush1.msra.mxu0 %v1671
    %v1673 = vand.u32 %v1261, 4294901760
    %v1674 = vsub.f32 %v1261, %v1673
    %1675 = vmatprep.subr.mxu0 %v1674
    %v1676 = vand.u32 %v1260, 4294901760
    %v1677 = vsub.f32 %v1260, %v1676
    %1678 = vmatpush1.msra.mxu0 %v1677
    %v1679 = vand.u32 %v1263, 4294901760
    %v1680 = vsub.f32 %v1263, %v1679
    %1681 = vmatprep.subr.mxu0 %v1680
    %v1682 = vand.u32 %v1262, 4294901760
    %v1683 = vsub.f32 %v1262, %v1682
    %1684 = vmatpush1.msra.mxu0 %v1683
    %v1685 = vand.u32 %v1265, 4294901760
    %v1686 = vsub.f32 %v1265, %v1685
    %1687 = vmatprep.subr.mxu0 %v1686
    %v1688 = vand.u32 %v1264, 4294901760
    %v1689 = vsub.f32 %v1264, %v1688
    %1690 = vmatpush1.msra.mxu0 %v1689
    %v1691 = vand.u32 %v1267, 4294901760
    %v1692 = vsub.f32 %v1267, %v1691
    %1693 = vmatprep.subr.mxu0 %v1692
    %v1694 = vand.u32 %v1266, 4294901760
    %v1695 = vsub.f32 %v1266, %v1694
    %1696 = vmatpush1.msra.mxu0 %v1695
    %v1697 = vand.u32 %v1269, 4294901760
    %v1698 = vsub.f32 %v1269, %v1697
    %1699 = vmatprep.subr.mxu0 %v1698
    %v1700 = vand.u32 %v1268, 4294901760
    %v1701 = vsub.f32 %v1268, %v1700
    %1702 = vmatpush1.msra.mxu0 %v1701
    %v1703 = vand.u32 %v1271, 4294901760
    %v1704 = vsub.f32 %v1271, %v1703
    %1705 = vmatprep.subr.mxu0 %v1704
    %v1706 = vand.u32 %v1270, 4294901760
    %v1707 = vsub.f32 %v1270, %v1706
    %1708 = vmatpush1.msra.mxu0 %v1707
    %v1709 = vand.u32 %v1273, 4294901760
    %v1710 = vsub.f32 %v1273, %v1709
    %1711 = vmatprep.subr.mxu0 %v1710
    %v1712 = vand.u32 %v1272, 4294901760
    %v1713 = vsub.f32 %v1272, %v1712
    %1714 = vmatpush1.msra.mxu0 %v1713
    %v1715 = vand.u32 %v1275, 4294901760
    %v1716 = vsub.f32 %v1275, %v1715
    %1717 = vmatprep.subr.mxu0 %v1716
    %v1718 = vand.u32 %v1274, 4294901760
    %v1719 = vsub.f32 %v1274, %v1718
    %1720 = vmatpush1.msra.mxu0 %v1719
    %v1721 = vand.u32 %v1277, 4294901760
    %v1722 = vsub.f32 %v1277, %v1721
    %1723 = vmatprep.subr.mxu0 %v1722
    %v1724 = vand.u32 %v1276, 4294901760
    %v1725 = vsub.f32 %v1276, %v1724
    %1726 = vmatpush1.msra.mxu0 %v1725
    %1727 = vmatprep.subr.mxu0 0.0
    %1728 = vmatpush1.msra.mxu0 0.0
    %1729 = vmatprep.subr.mxu0 0.0
    %1730 = vmatpush1.msra.mxu0 0.0
    %1731 = vmatprep.subr.mxu0 0.0
    %1732 = vmatpush1.msra.mxu0 0.0
    %1733 = vmatprep.subr.mxu0 0.0
    %1734 = vmatpush1.msra.mxu0 0.0
    %1735 = vmatprep.subr.mxu0 0.0
    %1736 = vmatpush1.msra.mxu0 0.0
    %1737 = vmatprep.subr.mxu0 0.0
    %1738 = vmatpush1.msra.mxu0 0.0
    %1739 = vmatprep.subr.mxu0 0.0
    %1740 = vmatpush1.msra.mxu0 0.0
    %1741 = vmatprep.subr.mxu0 0.0
    %1742 = vmatpush1.msra.mxu0 0.0
    %1743 = vmatprep.subr.mxu0 0.0
    %1744 = vmatpush1.msra.mxu0 0.0
    %1745 = vmatprep.subr.mxu0 0.0
    %1746 = vmatpush1.msra.mxu0 0.0
    %1747 = vmatprep.subr.mxu0 0.0
    %1748 = vmatpush1.msra.mxu0 0.0
    %1749 = vmatprep.subr.mxu0 0.0
    %1750 = vmatpush1.msra.mxu0 0.0
    %1751 = vmatprep.subr.mxu0 0.0
    %1752 = vmatpush1.msra.mxu0 0.0
    %1753 = vmatprep.subr.mxu0 0.0
    %1754 = vmatpush1.msra.mxu0 0.0
    %1755 = vmatprep.subr.mxu0 0.0
    %1756 = vmatpush1.msra.mxu0 0.0
    %1757 = vmatprep.subr.mxu0 0.0
    %1758 = vmatpush1.msra.mxu0 0.0
    %1759 = vmatprep.mubr.f32.mxu0 0.0
    %v1760 = vand.u32 %v1279, 4294901760
    %v1761 = vsub.f32 %v1279, %v1760
    %1762 = vmatmul.mubr.f32.gmra.mrb[0].mxu0 %v1761
    %v1763 = vpop.f32.mrb[0].mxu0
    %v1764 = vadd.f32 %v1627, %v1763
    %v1765 = vpop.f32.mrb[0].mxu0
    %v1766 = vadd.f32 %v1629, %v1765
    %1767 = vdwg.mxu0
    %v1768 = vand.u32 %v1247, 4294901760
    %1769 = vmatprep.subr.mxu0 %v1768
    %v1770 = vand.u32 %v1246, 4294901760
    %1771 = vmatpush1.msra.mxu0 %v1770
    %v1772 = vand.u32 %v1249, 4294901760
    %1773 = vmatprep.subr.mxu0 %v1772
    %v1774 = vand.u32 %v1248, 4294901760
    %1775 = vmatpush1.msra.mxu0 %v1774
    %v1776 = vand.u32 %v1251, 4294901760
    %1777 = vmatprep.subr.mxu0 %v1776
    %v1778 = vand.u32 %v1250, 4294901760
    %1779 = vmatpush1.msra.mxu0 %v1778
    %v1780 = vand.u32 %v1253, 4294901760
    %1781 = vmatprep.subr.mxu0 %v1780
    %v1782 = vand.u32 %v1252, 4294901760
    %1783 = vmatpush1.msra.mxu0 %v1782
    %v1784 = vand.u32 %v1255, 4294901760
    %1785 = vmatprep.subr.mxu0 %v1784
    %v1786 = vand.u32 %v1254, 4294901760
    %1787 = vmatpush1.msra.mxu0 %v1786
    %v1788 = vand.u32 %v1257, 4294901760
    %1789 = vmatprep.subr.mxu0 %v1788
    %v1790 = vand.u32 %v1256, 4294901760
    %1791 = vmatpush1.msra.mxu0 %v1790
    %v1792 = vand.u32 %v1259, 4294901760
    %1793 = vmatprep.subr.mxu0 %v1792
    %v1794 = vand.u32 %v1258, 4294901760
    %1795 = vmatpush1.msra.mxu0 %v1794
    %v1796 = vand.u32 %v1261, 4294901760
    %1797 = vmatprep.subr.mxu0 %v1796
    %v1798 = vand.u32 %v1260, 4294901760
    %1799 = vmatpush1.msra.mxu0 %v1798
    %v1800 = vand.u32 %v1263, 4294901760
    %1801 = vmatprep.subr.mxu0 %v1800
    %v1802 = vand.u32 %v1262, 4294901760
    %1803 = vmatpush1.msra.mxu0 %v1802
    %v1804 = vand.u32 %v1265, 4294901760
    %1805 = vmatprep.subr.mxu0 %v1804
    %v1806 = vand.u32 %v1264, 4294901760
    %1807 = vmatpush1.msra.mxu0 %v1806
    %v1808 = vand.u32 %v1267, 4294901760
    %1809 = vmatprep.subr.mxu0 %v1808
    %v1810 = vand.u32 %v1266, 4294901760
    %1811 = vmatpush1.msra.mxu0 %v1810
    %v1812 = vand.u32 %v1269, 4294901760
    %1813 = vmatprep.subr.mxu0 %v1812
    %v1814 = vand.u32 %v1268, 4294901760
    %1815 = vmatpush1.msra.mxu0 %v1814
    %v1816 = vand.u32 %v1271, 4294901760
    %1817 = vmatprep.subr.mxu0 %v1816
    %v1818 = vand.u32 %v1270, 4294901760
    %1819 = vmatpush1.msra.mxu0 %v1818
    %v1820 = vand.u32 %v1273, 4294901760
    %1821 = vmatprep.subr.mxu0 %v1820
    %v1822 = vand.u32 %v1272, 4294901760
    %1823 = vmatpush1.msra.mxu0 %v1822
    %v1824 = vand.u32 %v1275, 4294901760
    %1825 = vmatprep.subr.mxu0 %v1824
    %v1826 = vand.u32 %v1274, 4294901760
    %1827 = vmatpush1.msra.mxu0 %v1826
    %v1828 = vand.u32 %v1277, 4294901760
    %1829 = vmatprep.subr.mxu0 %v1828
    %v1830 = vand.u32 %v1276, 4294901760
    %1831 = vmatpush1.msra.mxu0 %v1830
    %1832 = vmatprep.subr.mxu0 0.0
    %1833 = vmatpush1.msra.mxu0 0.0
    %1834 = vmatprep.subr.mxu0 0.0
    %1835 = vmatpush1.msra.mxu0 0.0
    %1836 = vmatprep.subr.mxu0 0.0
    %1837 = vmatpush1.msra.mxu0 0.0
    %1838 = vmatprep.subr.mxu0 0.0
    %1839 = vmatpush1.msra.mxu0 0.0
    %1840 = vmatprep.subr.mxu0 0.0
    %1841 = vmatpush1.msra.mxu0 0.0
    %1842 = vmatprep.subr.mxu0 0.0
    %1843 = vmatpush1.msra.mxu0 0.0
    %1844 = vmatprep.subr.mxu0 0.0
    %1845 = vmatpush1.msra.mxu0 0.0
    %1846 = vmatprep.subr.mxu0 0.0
    %1847 = vmatpush1.msra.mxu0 0.0
    %1848 = vmatprep.subr.mxu0 0.0
    %1849 = vmatpush1.msra.mxu0 0.0
    %1850 = vmatprep.subr.mxu0 0.0
    %1851 = vmatpush1.msra.mxu0 0.0
    %1852 = vmatprep.subr.mxu0 0.0
    %1853 = vmatpush1.msra.mxu0 0.0
    %1854 = vmatprep.subr.mxu0 0.0
    %1855 = vmatpush1.msra.mxu0 0.0
    %1856 = vmatprep.subr.mxu0 0.0
    %1857 = vmatpush1.msra.mxu0 0.0
    %1858 = vmatprep.subr.mxu0 0.0
    %1859 = vmatpush1.msra.mxu0 0.0
    %1860 = vmatprep.subr.mxu0 0.0
    %1861 = vmatpush1.msra.mxu0 0.0
    %1862 = vmatprep.subr.mxu0 0.0
    %1863 = vmatpush1.msra.mxu0 0.0
    %1864 = vmatprep.mubr.f32.mxu0 0.0
    %v1865 = vand.u32 %v1279, 4294901760
    %v1866 = vsub.f32 %v1279, %v1865
    %v1867 = vand.u32 %v1866, 4294901760
    %1868 = vmatmul.mubr.f32.gmra.mrb[0].mxu0 %v1867
    %v1869 = vpop.f32.mrb[0].mxu0
    %v1870 = vadd.f32 %v1764, %v1869
    %v1871 = vpop.f32.mrb[0].mxu0
    %v1872 = vadd.f32 %v1766, %v1871
    %1873 = vdwg.mxu0
    %v1874 = vand.u32 %v1247, 4294901760
    %v1875 = vsub.f32 %v1247, %v1874
    %v1876 = vand.u32 %v1875, 4294901760
    %1877 = vmatprep.subr.mxu0 %v1876
    %v1878 = vand.u32 %v1246, 4294901760
    %v1879 = vsub.f32 %v1246, %v1878
    %v1880 = vand.u32 %v1879, 4294901760
    %1881 = vmatpush1.msra.mxu0 %v1880
    %v1882 = vand.u32 %v1249, 4294901760
    %v1883 = vsub.f32 %v1249, %v1882
    %v1884 = vand.u32 %v1883, 4294901760
    %1885 = vmatprep.subr.mxu0 %v1884
    %v1886 = vand.u32 %v1248, 4294901760
    %v1887 = vsub.f32 %v1248, %v1886
    %v1888 = vand.u32 %v1887, 4294901760
    %1889 = vmatpush1.msra.mxu0 %v1888
    %v1890 = vand.u32 %v1251, 4294901760
    %v1891 = vsub.f32 %v1251, %v1890
    %v1892 = vand.u32 %v1891, 4294901760
    %1893 = vmatprep.subr.mxu0 %v1892
    %v1894 = vand.u32 %v1250, 4294901760
    %v1895 = vsub.f32 %v1250, %v1894
    %v1896 = vand.u32 %v1895, 4294901760
    %1897 = vmatpush1.msra.mxu0 %v1896
    %v1898 = vand.u32 %v1253, 4294901760
    %v1899 = vsub.f32 %v1253, %v1898
    %v1900 = vand.u32 %v1899, 4294901760
    %1901 = vmatprep.subr.mxu0 %v1900
    %v1902 = vand.u32 %v1252, 4294901760
    %v1903 = vsub.f32 %v1252, %v1902
    %v1904 = vand.u32 %v1903, 4294901760
    %1905 = vmatpush1.msra.mxu0 %v1904
    %v1906 = vand.u32 %v1255, 4294901760
    %v1907 = vsub.f32 %v1255, %v1906
    %v1908 = vand.u32 %v1907, 4294901760
    %1909 = vmatprep.subr.mxu0 %v1908
    %v1910 = vand.u32 %v1254, 4294901760
    %v1911 = vsub.f32 %v1254, %v1910
    %v1912 = vand.u32 %v1911, 4294901760
    %1913 = vmatpush1.msra.mxu0 %v1912
    %v1914 = vand.u32 %v1257, 4294901760
    %v1915 = vsub.f32 %v1257, %v1914
    %v1916 = vand.u32 %v1915, 4294901760
    %1917 = vmatprep.subr.mxu0 %v1916
    %v1918 = vand.u32 %v1256, 4294901760
    %v1919 = vsub.f32 %v1256, %v1918
    %v1920 = vand.u32 %v1919, 4294901760
    %1921 = vmatpush1.msra.mxu0 %v1920
    %v1922 = vand.u32 %v1259, 4294901760
    %v1923 = vsub.f32 %v1259, %v1922
    %v1924 = vand.u32 %v1923, 4294901760
    %1925 = vmatprep.subr.mxu0 %v1924
    %v1926 = vand.u32 %v1258, 4294901760
    %v1927 = vsub.f32 %v1258, %v1926
    %v1928 = vand.u32 %v1927, 4294901760
    %1929 = vmatpush1.msra.mxu0 %v1928
    %v1930 = vand.u32 %v1261, 4294901760
    %v1931 = vsub.f32 %v1261, %v1930
    %v1932 = vand.u32 %v1931, 4294901760
    %1933 = vmatprep.subr.mxu0 %v1932
    %v1934 = vand.u32 %v1260, 4294901760
    %v1935 = vsub.f32 %v1260, %v1934
    %v1936 = vand.u32 %v1935, 4294901760
    %1937 = vmatpush1.msra.mxu0 %v1936
    %v1938 = vand.u32 %v1263, 4294901760
    %v1939 = vsub.f32 %v1263, %v1938
    %v1940 = vand.u32 %v1939, 4294901760
    %1941 = vmatprep.subr.mxu0 %v1940
    %v1942 = vand.u32 %v1262, 4294901760
    %v1943 = vsub.f32 %v1262, %v1942
    %v1944 = vand.u32 %v1943, 4294901760
    %1945 = vmatpush1.msra.mxu0 %v1944
    %v1946 = vand.u32 %v1265, 4294901760
    %v1947 = vsub.f32 %v1265, %v1946
    %v1948 = vand.u32 %v1947, 4294901760
    %1949 = vmatprep.subr.mxu0 %v1948
    %v1950 = vand.u32 %v1264, 4294901760
    %v1951 = vsub.f32 %v1264, %v1950
    %v1952 = vand.u32 %v1951, 4294901760
    %1953 = vmatpush1.msra.mxu0 %v1952
    %v1954 = vand.u32 %v1267, 4294901760
    %v1955 = vsub.f32 %v1267, %v1954
    %v1956 = vand.u32 %v1955, 4294901760
    %1957 = vmatprep.subr.mxu0 %v1956
    %v1958 = vand.u32 %v1266, 4294901760
    %v1959 = vsub.f32 %v1266, %v1958
    %v1960 = vand.u32 %v1959, 4294901760
    %1961 = vmatpush1.msra.mxu0 %v1960
    %v1962 = vand.u32 %v1269, 4294901760
    %v1963 = vsub.f32 %v1269, %v1962
    %v1964 = vand.u32 %v1963, 4294901760
    %1965 = vmatprep.subr.mxu0 %v1964
    %v1966 = vand.u32 %v1268, 4294901760
    %v1967 = vsub.f32 %v1268, %v1966
    %v1968 = vand.u32 %v1967, 4294901760
    %1969 = vmatpush1.msra.mxu0 %v1968
    %v1970 = vand.u32 %v1271, 4294901760
    %v1971 = vsub.f32 %v1271, %v1970
    %v1972 = vand.u32 %v1971, 4294901760
    %1973 = vmatprep.subr.mxu0 %v1972
    %v1974 = vand.u32 %v1270, 4294901760
    %v1975 = vsub.f32 %v1270, %v1974
    %v1976 = vand.u32 %v1975, 4294901760
    %1977 = vmatpush1.msra.mxu0 %v1976
    %v1978 = vand.u32 %v1273, 4294901760
    %v1979 = vsub.f32 %v1273, %v1978
    %v1980 = vand.u32 %v1979, 4294901760
    %1981 = vmatprep.subr.mxu0 %v1980
    %v1982 = vand.u32 %v1272, 4294901760
    %v1983 = vsub.f32 %v1272, %v1982
    %v1984 = vand.u32 %v1983, 4294901760
    %1985 = vmatpush1.msra.mxu0 %v1984
    %v1986 = vand.u32 %v1275, 4294901760
    %v1987 = vsub.f32 %v1275, %v1986
    %v1988 = vand.u32 %v1987, 4294901760
    %1989 = vmatprep.subr.mxu0 %v1988
    %v1990 = vand.u32 %v1274, 4294901760
    %v1991 = vsub.f32 %v1274, %v1990
    %v1992 = vand.u32 %v1991, 4294901760
    %1993 = vmatpush1.msra.mxu0 %v1992
    %v1994 = vand.u32 %v1277, 4294901760
    %v1995 = vsub.f32 %v1277, %v1994
    %v1996 = vand.u32 %v1995, 4294901760
    %1997 = vmatprep.subr.mxu0 %v1996
    %v1998 = vand.u32 %v1276, 4294901760
    %v1999 = vsub.f32 %v1276, %v1998
    %v2000 = vand.u32 %v1999, 4294901760
    %2001 = vmatpush1.msra.mxu0 %v2000
    %2002 = vmatprep.subr.mxu0 0.0
    %2003 = vmatpush1.msra.mxu0 0.0
    %2004 = vmatprep.subr.mxu0 0.0
    %2005 = vmatpush1.msra.mxu0 0.0
    %2006 = vmatprep.subr.mxu0 0.0
    %2007 = vmatpush1.msra.mxu0 0.0
    %2008 = vmatprep.subr.mxu0 0.0
    %2009 = vmatpush1.msra.mxu0 0.0
    %2010 = vmatprep.subr.mxu0 0.0
    %2011 = vmatpush1.msra.mxu0 0.0
    %2012 = vmatprep.subr.mxu0 0.0
    %2013 = vmatpush1.msra.mxu0 0.0
    %2014 = vmatprep.subr.mxu0 0.0
    %2015 = vmatpush1.msra.mxu0 0.0
    %2016 = vmatprep.subr.mxu0 0.0
    %2017 = vmatpush1.msra.mxu0 0.0
    %2018 = vmatprep.subr.mxu0 0.0
    %2019 = vmatpush1.msra.mxu0 0.0
    %2020 = vmatprep.subr.mxu0 0.0
    %2021 = vmatpush1.msra.mxu0 0.0
    %2022 = vmatprep.subr.mxu0 0.0
    %2023 = vmatpush1.msra.mxu0 0.0
    %2024 = vmatprep.subr.mxu0 0.0
    %2025 = vmatpush1.msra.mxu0 0.0
    %2026 = vmatprep.subr.mxu0 0.0
    %2027 = vmatpush1.msra.mxu0 0.0
    %2028 = vmatprep.subr.mxu0 0.0
    %2029 = vmatpush1.msra.mxu0 0.0
    %2030 = vmatprep.subr.mxu0 0.0
    %2031 = vmatpush1.msra.mxu0 0.0
    %2032 = vmatprep.subr.mxu0 0.0
    %2033 = vmatpush1.msra.mxu0 0.0
    %2034 = vmatprep.mubr.f32.mxu0 0.0
    %v2035 = vand.u32 %v1279, 4294901760
    %2036 = vmatmul.mubr.f32.gmra.mrb[0].mxu0 %v2035
    %v2037 = vpop.f32.mrb[0].mxu0
    %v2038 = vadd.f32 %v1870, %v2037
    %v2039 = vpop.f32.mrb[0].mxu0
    %v2040 = vadd.f32 %v1872, %v2039
    %2041 = vdwg.mxu0
    %v2042 = vand.u32 %v1247, 4294901760
    %2043 = vmatprep.subr.mxu0 %v2042
    %v2044 = vand.u32 %v1246, 4294901760
    %2045 = vmatpush1.msra.mxu0 %v2044
    %v2046 = vand.u32 %v1249, 4294901760
    %2047 = vmatprep.subr.mxu0 %v2046
    %v2048 = vand.u32 %v1248, 4294901760
    %2049 = vmatpush1.msra.mxu0 %v2048
    %v2050 = vand.u32 %v1251, 4294901760
    %2051 = vmatprep.subr.mxu0 %v2050
    %v2052 = vand.u32 %v1250, 4294901760
    %2053 = vmatpush1.msra.mxu0 %v2052
    %v2054 = vand.u32 %v1253, 4294901760
    %2055 = vmatprep.subr.mxu0 %v2054
    %v2056 = vand.u32 %v1252, 4294901760
    %2057 = vmatpush1.msra.mxu0 %v2056
    %v2058 = vand.u32 %v1255, 4294901760
    %2059 = vmatprep.subr.mxu0 %v2058
    %v2060 = vand.u32 %v1254, 4294901760
    %2061 = vmatpush1.msra.mxu0 %v2060
    %v2062 = vand.u32 %v1257, 4294901760
    %2063 = vmatprep.subr.mxu0 %v2062
    %v2064 = vand.u32 %v1256, 4294901760
    %2065 = vmatpush1.msra.mxu0 %v2064
    %v2066 = vand.u32 %v1259, 4294901760
    %2067 = vmatprep.subr.mxu0 %v2066
    %v2068 = vand.u32 %v1258, 4294901760
    %2069 = vmatpush1.msra.mxu0 %v2068
    %v2070 = vand.u32 %v1261, 4294901760
    %2071 = vmatprep.subr.mxu0 %v2070
    %v2072 = vand.u32 %v1260, 4294901760
    %2073 = vmatpush1.msra.mxu0 %v2072
    %v2074 = vand.u32 %v1263, 4294901760
    %2075 = vmatprep.subr.mxu0 %v2074
    %v2076 = vand.u32 %v1262, 4294901760
    %2077 = vmatpush1.msra.mxu0 %v2076
    %v2078 = vand.u32 %v1265, 4294901760
    %2079 = vmatprep.subr.mxu0 %v2078
    %v2080 = vand.u32 %v1264, 4294901760
    %2081 = vmatpush1.msra.mxu0 %v2080
    %v2082 = vand.u32 %v1267, 4294901760
    %2083 = vmatprep.subr.mxu0 %v2082
    %v2084 = vand.u32 %v1266, 4294901760
    %2085 = vmatpush1.msra.mxu0 %v2084
    %v2086 = vand.u32 %v1269, 4294901760
    %2087 = vmatprep.subr.mxu0 %v2086
    %v2088 = vand.u32 %v1268, 4294901760
    %2089 = vmatpush1.msra.mxu0 %v2088
    %v2090 = vand.u32 %v1271, 4294901760
    %2091 = vmatprep.subr.mxu0 %v2090
    %v2092 = vand.u32 %v1270, 4294901760
    %2093 = vmatpush1.msra.mxu0 %v2092
    %v2094 = vand.u32 %v1273, 4294901760
    %2095 = vmatprep.subr.mxu0 %v2094
    %v2096 = vand.u32 %v1272, 4294901760
    %2097 = vmatpush1.msra.mxu0 %v2096
    %v2098 = vand.u32 %v1275, 4294901760
    %2099 = vmatprep.subr.mxu0 %v2098
    %v2100 = vand.u32 %v1274, 4294901760
    %2101 = vmatpush1.msra.mxu0 %v2100
    %v2102 = vand.u32 %v1277, 4294901760
    %2103 = vmatprep.subr.mxu0 %v2102
    %v2104 = vand.u32 %v1276, 4294901760
    %2105 = vmatpush1.msra.mxu0 %v2104
    %2106 = vmatprep.subr.mxu0 0.0
    %2107 = vmatpush1.msra.mxu0 0.0
    %2108 = vmatprep.subr.mxu0 0.0
    %2109 = vmatpush1.msra.mxu0 0.0
    %2110 = vmatprep.subr.mxu0 0.0
    %2111 = vmatpush1.msra.mxu0 0.0
    %2112 = vmatprep.subr.mxu0 0.0
    %2113 = vmatpush1.msra.mxu0 0.0
    %2114 = vmatprep.subr.mxu0 0.0
    %2115 = vmatpush1.msra.mxu0 0.0
    %2116 = vmatprep.subr.mxu0 0.0
    %2117 = vmatpush1.msra.mxu0 0.0
    %2118 = vmatprep.subr.mxu0 0.0
    %2119 = vmatpush1.msra.mxu0 0.0
    %2120 = vmatprep.subr.mxu0 0.0
    %2121 = vmatpush1.msra.mxu0 0.0
    %2122 = vmatprep.subr.mxu0 0.0
    %2123 = vmatpush1.msra.mxu0 0.0
    %2124 = vmatprep.subr.mxu0 0.0
    %2125 = vmatpush1.msra.mxu0 0.0
    %2126 = vmatprep.subr.mxu0 0.0
    %2127 = vmatpush1.msra.mxu0 0.0
    %2128 = vmatprep.subr.mxu0 0.0
    %2129 = vmatpush1.msra.mxu0 0.0
    %2130 = vmatprep.subr.mxu0 0.0
    %2131 = vmatpush1.msra.mxu0 0.0
    %2132 = vmatprep.subr.mxu0 0.0
    %2133 = vmatpush1.msra.mxu0 0.0
    %2134 = vmatprep.subr.mxu0 0.0
    %2135 = vmatpush1.msra.mxu0 0.0
    %2136 = vmatprep.subr.mxu0 0.0
    %2137 = vmatpush1.msra.mxu0 0.0
    %2138 = vmatprep.mubr.f32.mxu0 0.0
    %v2139 = vand.u32 %v1279, 4294901760
    %2140 = vmatmul.mubr.f32.gmra.mrb[0].mxu0 %v2139
    %v2141 = vpop.f32.mrb[0].mxu0
    %v2142 = vadd.f32 %v2038, %v2141
    %v2143 = vpop.f32.mrb[0].mxu0
    %v2144 = vadd.f32 %v2040, %v2143
    %2145 = vdwg.mxu0
    %2146 = vst [vmem:[#allocation10] sm:$0xff] %v2142
    %2147 = vst [vmem:[#allocation10 + $0x8] sm:$0xff] %v2144
    // Predicated region
    $region46: #{tpu_custom_call.1} parent=1 // pred_check
      _
    $region47: #{tpu_custom_call.1} parent=1 // pred_check_branch
      %2149 = sbr.rel (0) target = $region49
    $region48: #{tpu_custom_call.1} parent=1 // pred_region
      %s2151 = ssub.s32 256, 256
      %2152 = vsyncadd [#allocation4], %s2151
      %s2154 = sshll.u32 [#allocation10], 4
      %s2155 = int_to_ptr.vmem [resolvable:$true] %s2154
      %2157 = dma.vmem_to_hbm [thread:$0]  %s2155, 256, %s7, [#allocation4]
    $region49: #{tpu_custom_call.1} parent=1 // pred_fallthru
      _
    // Predicated region
    $region50: #{tpu_custom_call.1} parent=1 // pred_check
      _
    $region51: #{tpu_custom_call.1} parent=1 // pred_check_branch
      %2159 = sbr.rel (0) target = $region53
    $region52: #{tpu_custom_call.1} parent=1 // pred_region
      %2160 = dma.done [#allocation4], 256
    $region53: #{tpu_custom_call.1} parent=1 // pred_fallthru
      _
    %2161 = vsyncpa [#allocation3], 1
    %2162 = vsyncpa [#allocation6], 1
    %2163 = vsyncpa [#allocation9], 1
    %2164 = vsyncpa [#allocation4], 1

</llo_original>
